<compile_context>
chip_gen: v5e
topology: v5e:2x2
jax: 0.10.0
libtpu: 0.0.40
codegen_flags: <defaults>
</compile_context>

<pallas_src>
import functools

import jax
import jax.numpy as jnp
from jax.experimental import pallas as pl
from jax.experimental.pallas import tpu as pltpu

EPS = 1e-5


# --------------------------------------------------------------------------
# Host-side packing helpers (pure JAX, run outside the kernel)
# --------------------------------------------------------------------------


def _conv_band_matrices(w_hwio, w_in, w_out, x_off):
    """Pack a 3x3 conv (HWIO weights) into per-ky banded matrices.

    Returns m of shape (kh, w_in*cin, w_out*cout) such that for a (W, C)
    row-major packed input row r (shape (w_in*cin,)), `r @ m[ky]` is the
    contribution of vertical tap `ky` to the packed output row
    (shape (w_out*cout,)).  `x_off` is the amount of left zero padding
    absorbed into the matrix (2 for the padded first conv, 0 for the valid
    second conv).
    """
    kh, kw, cin, cout = w_hwio.shape
    x = jnp.arange(w_in)[:, None]        # input x position
    xo = jnp.arange(w_out)[None, :]      # output x position
    kx = x - xo + x_off                  # horizontal tap connecting them
    valid = (kx >= 0) & (kx < kw)
    kxc = jnp.clip(kx, 0, kw - 1)
    m = w_hwio[:, kxc]                                   # (kh, w_in, w_out, cin, cout)
    m = jnp.where(valid[None, :, :, None, None], m, 0.0)
    m = jnp.transpose(m, (0, 1, 3, 2, 4))                # (kh, w_in, cin, w_out, cout)
    return m.reshape(kh, w_in * cin, w_out * cout)


# --------------------------------------------------------------------------
# Fused, batch-blocked kernel: 3 dense layers for B_TILE elements at once
# --------------------------------------------------------------------------


def _dense_block3_kernel(x1_ref, x2_ref, w1_ref, w2_ref, st1_ref, st2_ref,
                         out_ref, s_ref, y_ref, *, bt, h, hp):
    wc = s_ref.shape[1]          # W*C lanes (128 for the test shapes)
    ly = y_ref.shape[0]          # bt*hp - 6 conv1-output rows
    lz = ly - 2                  # bt*hp - 8 conv2-output rows

    # Stacked-slab layout of s_ref (bf16), T = 8 + bt*hp rows:
    #   rows [0, 8)                      : global top zero pad
    #   element b data rows              : [8 + b*hp, 8 + b*hp + h)
    #   element b bottom zero pad rows   : [8 + b*hp + h, 8 + (b+1)*hp)
    # -> every element sees 2 zero rows above and below its data, so the
    #    shifted conv taps below never read a neighbour's data.
    zpad = jnp.zeros((8, wc), s_ref.dtype)
    s_ref[0:8, :] = zpad
    for b in range(bt):
        s_ref[8 + b * hp + h: 8 + (b + 1) * hp, :] = zpad
        # layer-0 input: relu(x1) into the (8-row aligned) data rows
        s_ref[8 + b * hp: 8 + b * hp + h, :] = jnp.maximum(x1_ref[b], 0)

    for li in range(3):
        # ---- conv1 (3x3, padding=2): 3 ky taps, one f32 accumulation chain.
        #      RHS sliced directly from the weight ref (streams from VMEM).
        acc = jax.lax.dot(s_ref[6:6 + ly, :], w1_ref[li, 0],
                          preferred_element_type=jnp.float32)
        acc = acc + jax.lax.dot(s_ref[7:7 + ly, :], w1_ref[li, 1],
                                preferred_element_type=jnp.float32)
        acc = acc + jax.lax.dot(s_ref[8:8 + ly, :], w1_ref[li, 2],
                                preferred_element_type=jnp.float32)
        # BN1 (+ folded conv1 bias) + ReLU in f32, stored in MXU dtype
        y = jnp.maximum(acc * st1_ref[li, 0:1, :] + st1_ref[li, 1:2, :], 0.0)
        y_ref[...] = y.astype(y_ref.dtype)

        # ---- conv2 (3x3, valid): 3 ky taps, one f32 accumulation chain ------
        acc2 = jax.lax.dot(y_ref[0:lz, :], w2_ref[li, 0],
                           preferred_element_type=jnp.float32)
        acc2 = acc2 + jax.lax.dot(y_ref[1:1 + lz, :], w2_ref[li, 1],
                                  preferred_element_type=jnp.float32)
        acc2 = acc2 + jax.lax.dot(y_ref[2:2 + lz, :], w2_ref[li, 2],
                                  preferred_element_type=jnp.float32)

        # ---- BN2 (+ folded conv2 bias), residual mix, write-back (aligned) --
        s2 = st2_ref[li, 0:1, :]
        t2 = st2_ref[li, 1:2, :]
        for b in range(bt):
            cur = 0.5 * (acc2[b * hp: b * hp + h, :] * s2 + t2 + x2_ref[b])
            if li < 2:
                # next layer's x1 = cur; next layer starts with relu(x1)
                s_ref[8 + b * hp: 8 + b * hp + h, :] = (
                    jnp.maximum(cur, 0.0).astype(s_ref.dtype))
            else:
                out_ref[b] = cur.astype(out_ref.dtype)


# --------------------------------------------------------------------------
# Public wrapper (NCHW in / NCHW out, like the torch module)
# --------------------------------------------------------------------------


def dense_block3_forward(x, params, *, mxu_dtype=jnp.bfloat16):
    """x = (x1, x2) in NCHW; returns (out, x2) in NCHW (like the torch module)."""
    x1, x2 = x
    n, cin, h, w = x1.shape
    c = x2.shape[1]
    if cin > c:
        # TODO(synk): input_features > out_features (wider layer-0 slab) not implemented.
        raise NotImplementedError("requires input_features <= out_features")

    # Layout glue: NCHW -> lane-packed (N, H, W*C).
    # TODO(synk): if the surrounding network can carry this packed layout, the
    # transposes/reshapes (extra HBM passes over the activations) go away.
    x1n = jnp.transpose(x1, (0, 2, 3, 1)).astype(jnp.float32)
    if cin < c:
        x1n = jnp.pad(x1n, ((0, 0), (0, 0), (0, 0), (0, c - cin)))
    x1p = x1n.reshape(n, h, w * c).astype(mxu_dtype)
    x2p = jnp.transpose(x2, (0, 2, 3, 1)).reshape(n, h, w * c)
    x2p = x2p.astype(jnp.float32)           # residual stays in the f32 epilogue

    # Banded conv matrices (kx taps, channel mixing and x-padding folded in).
    w1_list = []
    for p in params:
        w1 = p["w1"].astype(jnp.float32)
        if w1.shape[2] < c:                 # pad layer-0 input channels to C
            w1 = jnp.pad(w1, ((0, 0), (0, 0), (0, c - w1.shape[2]), (0, 0)))
        w1_list.append(_conv_band_matrices(w1, w, w + 2, x_off=2))
    w1b = jnp.stack(w1_list).astype(mxu_dtype)               # (3, 3, W*C, (W+2)*C)
    w2b = jnp.stack(
        [_conv_band_matrices(p["w2"].astype(jnp.float32), w + 2, w, x_off=0)
         for p in params]).astype(mxu_dtype)                 # (3, 3, (W+2)*C, W*C)

    # Width-tiled, folded BN scale/shift (kept f32 for the epilogue).
    st1 = jnp.stack([jnp.stack([jnp.tile(p["s1"], w + 2), jnp.tile(p["t1"], w + 2)])
                     for p in params]).astype(jnp.float32)   # (3, 2, (W+2)*C)
    st2 = jnp.stack([jnp.stack([jnp.tile(p["s2"], w), jnp.tile(p["t2"], w)])
                     for p in params]).astype(jnp.float32)   # (3, 2, W*C)

    # Batch tile: largest divisor of n that is <= 8 (M rows for the MXU).
    # For very large n one may instead cap at ~n/8 to keep >= 4-8 grid steps
    # for megacore pipelining; VMEM is nowhere near a constraint either way.
    bt = 1
    for d in range(1, min(n, 8) + 1):
        if n % d == 0:
            bt = d
    hp = h + 8                     # per-element slab height (8-row aligned)
    t_rows = 8 + bt * hp
    ly = bt * hp - 6               # conv1 output rows per grid step
    lz = bt * hp - 8               # conv2 output rows per grid step

    # Advisory cost estimate.
    flops = 3 * (3 * 2 * ly * (w * c) * ((w + 2) * c) +
                 3 * 2 * lz * ((w + 2) * c) * (w * c)) * (n // bt)
    bytes_accessed = (x1p.size * x1p.dtype.itemsize + x2p.size * 4 +
                      w1b.size * w1b.dtype.itemsize +
                      w2b.size * w2b.dtype.itemsize +
                      st1.size * 4 + st2.size * 4 + n * h * w * c * 4)

    kernel = functools.partial(_dense_block3_kernel, bt=bt, h=h, hp=hp)
    out = pl.pallas_call(
        kernel,
        out_shape=jax.ShapeDtypeStruct((n, h, w * c), jnp.float32),
        grid_spec=pltpu.PrefetchScalarGridSpec(
            num_scalar_prefetch=0,
            grid=(n // bt,),
            in_specs=[
                pl.BlockSpec((bt, h, w * c), lambda i: (i, 0, 0)),     # x1 (packed)
                pl.BlockSpec((bt, h, w * c), lambda i: (i, 0, 0)),     # x2 (packed)
                pl.BlockSpec(w1b.shape, lambda i: (0, 0, 0, 0)),       # conv1 bands
                pl.BlockSpec(w2b.shape, lambda i: (0, 0, 0, 0)),       # conv2 bands
                pl.BlockSpec(st1.shape, lambda i: (0, 0, 0)),          # BN1 scale/shift
                pl.BlockSpec(st2.shape, lambda i: (0, 0, 0)),          # BN2 scale/shift
            ],
            out_specs=pl.BlockSpec((bt, h, w * c), lambda i: (i, 0, 0)),
            scratch_shapes=[
                pltpu.VMEM((t_rows, w * c), mxu_dtype),      # stacked padded slabs
                pltpu.VMEM((ly, (w + 2) * c), mxu_dtype),    # conv1 out (post BN+ReLU)
            ],
        ),
        compiler_params=pltpu.CompilerParams(
            dimension_semantics=("parallel",)),
        cost_estimate=pl.CostEstimate(
            flops=int(flops), transcendentals=0,
            bytes_accessed=int(bytes_accessed)),
    )(x1p, x2p, w1b, w2b, st1, st2)

    out_nchw = jnp.transpose(out.reshape(n, h, w, c), (0, 3, 1, 2))
    # x2 passes through the block untouched -> return it directly.
    return out_nchw, x2


# ---------------- deterministic parameter construction -------------------


def init_dense_layer_params(key, cin, cout):
    ks = jax.random.split(key, 12)

    def nrm(k, shape, scale=1.0):
        return scale * jax.random.normal(k, shape, jnp.float32)

    p = dict(
        w1=nrm(ks[0], (3, 3, cin, cout), 0.2),    # HWIO
        b1=nrm(ks[1], (cout,), 0.1),
        g1=1.0 + nrm(ks[2], (cout,), 0.1),
        be1=nrm(ks[3], (cout,), 0.1),
        rm1=nrm(ks[4], (cout,), 0.1),
        rv1=1.0 + 0.1 * jnp.abs(nrm(ks[5], (cout,))),
        w2=nrm(ks[6], (3, 3, cout, cout), 0.2),   # HWIO
        b2=nrm(ks[7], (cout,), 0.1),
        g2=1.0 + nrm(ks[8], (cout,), 0.1),
        be2=nrm(ks[9], (cout,), 0.1),
        rm2=nrm(ks[10], (cout,), 0.1),
        rv2=1.0 + 0.1 * jnp.abs(nrm(ks[11], (cout,))),
    )
    # fold conv bias + eval-mode BN into per-channel scale / shift (1-D)
    s1 = p["g1"] * jax.lax.rsqrt(p["rv1"] + EPS)
    p["s1"] = s1
    p["t1"] = p["be1"] + s1 * (p["b1"] - p["rm1"])
    s2 = p["g2"] * jax.lax.rsqrt(p["rv2"] + EPS)
    p["s2"] = s2
    p["t2"] = p["be2"] + s2 * (p["b2"] - p["rm2"])
    return p


# ---------------- pure-JAX reference (for verification) ------------------


def _ref_layer(x1, x2, p):  # NHWC
    a = jnp.maximum(x1, 0.0)
    y = jax.lax.conv_general_dilated(
        a, p["w1"], (1, 1), ((2, 2), (2, 2)),
        dimension_numbers=("NHWC", "HWIO", "NHWC")) + p["b1"]
    y = p["g1"] * (y - p["rm1"]) * jax.lax.rsqrt(p["rv1"] + EPS) + p["be1"]
    y = jnp.maximum(y, 0.0)
    z = jax.lax.conv_general_dilated(
        y, p["w2"], (1, 1), "VALID",
        dimension_numbers=("NHWC", "HWIO", "NHWC")) + p["b2"]
    z = p["g2"] * (z - p["rm2"]) * jax.lax.rsqrt(p["rv2"] + EPS) + p["be2"]
    return 0.5 * (z + x2)


if __name__ == "__main__":
    N, CIN, COUT, H, W = 2, 4, 8, 16, 16
    key = jax.random.PRNGKey(0)
    kx1, kx2, kp = jax.random.split(key, 3)

    # x1 has `input_features` channels, x2 has `out_features` channels
    x1 = jax.random.normal(kx1, (N, CIN, H, W), jnp.float32)
    x2 = jax.random.normal(kx2, (N, COUT, H, W), jnp.float32)

    pkeys = jax.random.split(kp, 3)
    params = [
        init_dense_layer_params(pkeys[0], CIN, COUT),
        init_dense_layer_params(pkeys[1], COUT, COUT),
        init_dense_layer_params(pkeys[2], COUT, COUT),
    ]

    # pure-JAX f32 reference
    r1 = jnp.transpose(x1, (0, 2, 3, 1))
    r2 = jnp.transpose(x2, (0, 2, 3, 1))
    for p in params:
        r1 = _ref_layer(r1, r2, p)
    ref1 = jnp.transpose(r1, (0, 3, 1, 2))

    # 1) f32-MXU path: tight check of the kernel math / indexing.
    o32_1, o32_2 = dense_block3_forward((x1, x2), params, mxu_dtype=jnp.float32)
    o32_1 = jax.block_until_ready(o32_1)
    assert o32_1.shape == (N, COUT, H, W) and o32_2.shape == (N, COUT, H, W)
    assert jnp.allclose(o32_1, ref1, atol=2e-3, rtol=2e-3), (
        float(jnp.max(jnp.abs(o32_1 - ref1))))
    assert jnp.allclose(o32_2, x2)

    # 2) bf16-MXU path (default / performance configuration): looser tolerance
    #    since activations + weights are rounded to bfloat16 (f32 accumulate).
    obf_1, obf_2 = dense_block3_forward((x1, x2), params)
    obf_1 = jax.block_until_ready(obf_1)
    assert obf_1.shape == (N, COUT, H, W) and obf_2.shape == (N, COUT, H, W)
    assert jnp.allclose(obf_1, ref1, atol=6e-2, rtol=6e-2), (
        float(jnp.max(jnp.abs(obf_1 - ref1))))
    assert jnp.allclose(obf_2, x2)

    print("KERNEL_OK")
</pallas_src>

<mosaic_0001>
module attributes {stable_mosaic.version = 11 : i64} {
  func.func @_dense_block3_kernel(%arg0: i32, %arg1: memref<2x16x128xf32, #tpu.memory_space<vmem>>, %arg2: memref<2x16x128xf32, #tpu.memory_space<vmem>>, %arg3: memref<3x3x128x144xf32, #tpu.memory_space<vmem>>, %arg4: memref<3x3x144x128xf32, #tpu.memory_space<vmem>>, %arg5: memref<3x2x144xf32, #tpu.memory_space<vmem>>, %arg6: memref<3x2x128xf32, #tpu.memory_space<vmem>>, %arg7: memref<2x16x128xf32, #tpu.memory_space<vmem>>, %arg8: memref<56x128xf32, #tpu.memory_space<vmem>>, %arg9: memref<42x144xf32, #tpu.memory_space<vmem>>) attributes {dimension_semantics = [#tpu.dimension_semantics<parallel>], iteration_bounds = array<i64: 1>, scalar_prefetch = 0 : i64, scratch_operands = 2 : i64, tpu.core_type = #tpu.core_type<tc>, window_params = [{transform_indices = @transform_0, window_bounds = array<i64: 2, 16, 128>}, {transform_indices = @transform_1, window_bounds = array<i64: 2, 16, 128>}, {pipeline_mode = #tpu.pipeline_mode<synchronous>, transform_indices = @transform_2, window_bounds = array<i64: 3, 3, 128, 144>}, {pipeline_mode = #tpu.pipeline_mode<synchronous>, transform_indices = @transform_3, window_bounds = array<i64: 3, 3, 144, 128>}, {pipeline_mode = #tpu.pipeline_mode<synchronous>, transform_indices = @transform_4, window_bounds = array<i64: 3, 2, 144>}, {pipeline_mode = #tpu.pipeline_mode<synchronous>, transform_indices = @transform_5, window_bounds = array<i64: 3, 2, 128>}, {transform_indices = @transform_6, window_bounds = array<i64: 2, 16, 128>}]} {
    %cst = arith.constant 0.000000e+00 : f32
    %0 = vector.broadcast %cst : f32 to vector<8x128xf32>
    %c0 = arith.constant 0 : index
    %c0_0 = arith.constant 0 : index
    %1 = vector.load %arg8[%c0, %c0_0] : memref<56x128xf32, #tpu.memory_space<vmem>>, vector<8x128xf32>
    tpu.vector_store %arg8[%c0, %c0_0], %0 {strides = array<i32>} : memref<56x128xf32, #tpu.memory_space<vmem>>, vector<8x128xf32>,
    %c24 = arith.constant 24 : index
    %c0_1 = arith.constant 0 : index
    %2 = vector.load %arg8[%c24, %c0_1] : memref<56x128xf32, #tpu.memory_space<vmem>>, vector<8x128xf32>
    tpu.vector_store %arg8[%c24, %c0_1], %0 {strides = array<i32>} : memref<56x128xf32, #tpu.memory_space<vmem>>, vector<8x128xf32>,
    %c0_2 = arith.constant 0 : index
    %c0_3 = arith.constant 0 : index
    %c0_4 = arith.constant 0 : index
    %3 = vector.load %arg1[%c0_2, %c0_3, %c0_4] : memref<2x16x128xf32, #tpu.memory_space<vmem>>, vector<1x16x128xf32>
    %4 = vector.shape_cast %3 : vector<1x16x128xf32> to vector<16x128xf32>
    %cst_5 = arith.constant 0.000000e+00 : f32
    %5 = vector.broadcast %cst_5 : f32 to vector<16x128xf32>
    %6 = arith.maximumf %4, %5 : vector<16x128xf32>
    %c8 = arith.constant 8 : index
    %c0_6 = arith.constant 0 : index
    %7 = vector.load %arg8[%c8, %c0_6] : memref<56x128xf32, #tpu.memory_space<vmem>>, vector<16x128xf32>
    tpu.vector_store %arg8[%c8, %c0_6], %6 {strides = array<i32>} : memref<56x128xf32, #tpu.memory_space<vmem>>, vector<16x128xf32>,
    %c48 = arith.constant 48 : index
    %c0_7 = arith.constant 0 : index
    %8 = vector.load %arg8[%c48, %c0_7] : memref<56x128xf32, #tpu.memory_space<vmem>>, vector<8x128xf32>
    tpu.vector_store %arg8[%c48, %c0_7], %0 {strides = array<i32>} : memref<56x128xf32, #tpu.memory_space<vmem>>, vector<8x128xf32>,
    %c1 = arith.constant 1 : index
    %c0_8 = arith.constant 0 : index
    %c0_9 = arith.constant 0 : index
    %9 = vector.load %arg1[%c1, %c0_8, %c0_9] : memref<2x16x128xf32, #tpu.memory_space<vmem>>, vector<1x16x128xf32>
    %10 = vector.shape_cast %9 : vector<1x16x128xf32> to vector<16x128xf32>
    %cst_10 = arith.constant 0.000000e+00 : f32
    %11 = vector.broadcast %cst_10 : f32 to vector<16x128xf32>
    %12 = arith.maximumf %10, %11 : vector<16x128xf32>
    %c32 = arith.constant 32 : index
    %c0_11 = arith.constant 0 : index
    %13 = vector.load %arg8[%c32, %c0_11] : memref<56x128xf32, #tpu.memory_space<vmem>>, vector<16x128xf32>
    tpu.vector_store %arg8[%c32, %c0_11], %12 {strides = array<i32>} : memref<56x128xf32, #tpu.memory_space<vmem>>, vector<16x128xf32>,
    %c6 = arith.constant 6 : index
    %c0_12 = arith.constant 0 : index
    %14 = vector.load %arg8[%c6, %c0_12] : memref<56x128xf32, #tpu.memory_space<vmem>>, vector<42x128xf32>
    %c0_13 = arith.constant 0 : index
    %c0_14 = arith.constant 0 : index
    %c0_15 = arith.constant 0 : index
    %c0_16 = arith.constant 0 : index
    %15 = vector.load %arg3[%c0_13, %c0_14, %c0_15, %c0_16] : memref<3x3x128x144xf32, #tpu.memory_space<vmem>>, vector<1x1x128x144xf32>
    %16 = vector.shape_cast %15 : vector<1x1x128x144xf32> to vector<128x144xf32>
    %cst_17 = arith.constant dense<0.000000e+00> : vector<42x144xf32>
    %17 = tpu.matmul %14, %16, %cst_17 {dimension_numbers = #tpu.dot_dimension_numbers<[1], [0], [0], [1], [0, 0, 1, 1], [], []>} : vector<42x128xf32>, vector<128x144xf32>, vector<42x144xf32> -> vector<42x144xf32>
    %c7 = arith.constant 7 : index
    %c0_18 = arith.constant 0 : index
    %18 = vector.load %arg8[%c7, %c0_18] : memref<56x128xf32, #tpu.memory_space<vmem>>, vector<42x128xf32>
    %c0_19 = arith.constant 0 : index
    %c1_20 = arith.constant 1 : index
    %c0_21 = arith.constant 0 : index
    %c0_22 = arith.constant 0 : index
    %19 = vector.load %arg3[%c0_19, %c1_20, %c0_21, %c0_22] : memref<3x3x128x144xf32, #tpu.memory_space<vmem>>, vector<1x1x128x144xf32>
    %20 = vector.shape_cast %19 : vector<1x1x128x144xf32> to vector<128x144xf32>
    %cst_23 = arith.constant dense<0.000000e+00> : vector<42x144xf32>
    %21 = tpu.matmul %18, %20, %cst_23 {dimension_numbers = #tpu.dot_dimension_numbers<[1], [0], [0], [1], [0, 0, 1, 1], [], []>} : vector<42x128xf32>, vector<128x144xf32>, vector<42x144xf32> -> vector<42x144xf32>
    %22 = arith.addf %17, %21 : vector<42x144xf32>
    %c8_24 = arith.constant 8 : index
    %c0_25 = arith.constant 0 : index
    %23 = vector.load %arg8[%c8_24, %c0_25] : memref<56x128xf32, #tpu.memory_space<vmem>>, vector<42x128xf32>
    %c0_26 = arith.constant 0 : index
    %c2 = arith.constant 2 : index
    %c0_27 = arith.constant 0 : index
    %c0_28 = arith.constant 0 : index
    %24 = vector.load %arg3[%c0_26, %c2, %c0_27, %c0_28] : memref<3x3x128x144xf32, #tpu.memory_space<vmem>>, vector<1x1x128x144xf32>
    %25 = vector.shape_cast %24 : vector<1x1x128x144xf32> to vector<128x144xf32>
    %cst_29 = arith.constant dense<0.000000e+00> : vector<42x144xf32>
    %26 = tpu.matmul %23, %25, %cst_29 {dimension_numbers = #tpu.dot_dimension_numbers<[1], [0], [0], [1], [0, 0, 1, 1], [], []>} : vector<42x128xf32>, vector<128x144xf32>, vector<42x144xf32> -> vector<42x144xf32>
    %27 = arith.addf %22, %26 : vector<42x144xf32>
    %c0_30 = arith.constant 0 : index
    %c0_31 = arith.constant 0 : index
    %c0_32 = arith.constant 0 : index
    %28 = vector.load %arg5[%c0_30, %c0_31, %c0_32] : memref<3x2x144xf32, #tpu.memory_space<vmem>>, vector<1x1x144xf32>
    %29 = vector.shape_cast %28 : vector<1x1x144xf32> to vector<1x144xf32>
    %30 = vector.broadcast %29 : vector<1x144xf32> to vector<42x144xf32>
    %31 = arith.mulf %27, %30 : vector<42x144xf32>
    %c0_33 = arith.constant 0 : index
    %c1_34 = arith.constant 1 : index
    %c0_35 = arith.constant 0 : index
    %32 = vector.load %arg5[%c0_33, %c1_34, %c0_35] : memref<3x2x144xf32, #tpu.memory_space<vmem>>, vector<1x1x144xf32>
    %33 = vector.shape_cast %32 : vector<1x1x144xf32> to vector<1x144xf32>
    %34 = vector.broadcast %33 : vector<1x144xf32> to vector<42x144xf32>
    %35 = arith.addf %31, %34 : vector<42x144xf32>
    %cst_36 = arith.constant 0.000000e+00 : f32
    %36 = vector.broadcast %cst_36 : f32 to vector<42x144xf32>
    %37 = arith.maximumf %35, %36 : vector<42x144xf32>
    %c0_37 = arith.constant 0 : index
    %c0_38 = arith.constant 0 : index
    %38 = vector.load %arg9[%c0_37, %c0_38] : memref<42x144xf32, #tpu.memory_space<vmem>>, vector<42x144xf32>
    tpu.vector_store %arg9[%c0_37, %c0_38], %37 {strides = array<i32>} : memref<42x144xf32, #tpu.memory_space<vmem>>, vector<42x144xf32>,
    %c0_39 = arith.constant 0 : index
    %c0_40 = arith.constant 0 : index
    %39 = vector.load %arg9[%c0_39, %c0_40] : memref<42x144xf32, #tpu.memory_space<vmem>>, vector<40x144xf32>
    %c0_41 = arith.constant 0 : index
    %c0_42 = arith.constant 0 : index
    %c0_43 = arith.constant 0 : index
    %c0_44 = arith.constant 0 : index
    %40 = vector.load %arg4[%c0_41, %c0_42, %c0_43, %c0_44] : memref<3x3x144x128xf32, #tpu.memory_space<vmem>>, vector<1x1x144x128xf32>
    %41 = vector.shape_cast %40 : vector<1x1x144x128xf32> to vector<144x128xf32>
    %cst_45 = arith.constant dense<0.000000e+00> : vector<40x128xf32>
    %42 = tpu.matmul %39, %41, %cst_45 {dimension_numbers = #tpu.dot_dimension_numbers<[1], [0], [0], [1], [0, 0, 1, 1], [], []>} : vector<40x144xf32>, vector<144x128xf32>, vector<40x128xf32> -> vector<40x128xf32>
    %c1_46 = arith.constant 1 : index
    %c0_47 = arith.constant 0 : index
    %43 = vector.load %arg9[%c1_46, %c0_47] : memref<42x144xf32, #tpu.memory_space<vmem>>, vector<40x144xf32>
    %c0_48 = arith.constant 0 : index
    %c1_49 = arith.constant 1 : index
    %c0_50 = arith.constant 0 : index
    %c0_51 = arith.constant 0 : index
    %44 = vector.load %arg4[%c0_48, %c1_49, %c0_50, %c0_51] : memref<3x3x144x128xf32, #tpu.memory_space<vmem>>, vector<1x1x144x128xf32>
    %45 = vector.shape_cast %44 : vector<1x1x144x128xf32> to vector<144x128xf32>
    %cst_52 = arith.constant dense<0.000000e+00> : vector<40x128xf32>
    %46 = tpu.matmul %43, %45, %cst_52 {dimension_numbers = #tpu.dot_dimension_numbers<[1], [0], [0], [1], [0, 0, 1, 1], [], []>} : vector<40x144xf32>, vector<144x128xf32>, vector<40x128xf32> -> vector<40x128xf32>
    %47 = arith.addf %42, %46 : vector<40x128xf32>
    %c2_53 = arith.constant 2 : index
    %c0_54 = arith.constant 0 : index
    %48 = vector.load %arg9[%c2_53, %c0_54] : memref<42x144xf32, #tpu.memory_space<vmem>>, vector<40x144xf32>
    %c0_55 = arith.constant 0 : index
    %c2_56 = arith.constant 2 : index
    %c0_57 = arith.constant 0 : index
    %c0_58 = arith.constant 0 : index
    %49 = vector.load %arg4[%c0_55, %c2_56, %c0_57, %c0_58] : memref<3x3x144x128xf32, #tpu.memory_space<vmem>>, vector<1x1x144x128xf32>
    %50 = vector.shape_cast %49 : vector<1x1x144x128xf32> to vector<144x128xf32>
    %cst_59 = arith.constant dense<0.000000e+00> : vector<40x128xf32>
    %51 = tpu.matmul %48, %50, %cst_59 {dimension_numbers = #tpu.dot_dimension_numbers<[1], [0], [0], [1], [0, 0, 1, 1], [], []>} : vector<40x144xf32>, vector<144x128xf32>, vector<40x128xf32> -> vector<40x128xf32>
    %52 = arith.addf %47, %51 : vector<40x128xf32>
    %c0_60 = arith.constant 0 : index
    %c0_61 = arith.constant 0 : index
    %c0_62 = arith.constant 0 : index
    %53 = vector.load %arg6[%c0_60, %c0_61, %c0_62] : memref<3x2x128xf32, #tpu.memory_space<vmem>>, vector<1x1x128xf32>
    %54 = vector.shape_cast %53 : vector<1x1x128xf32> to vector<1x128xf32>
    %c0_63 = arith.constant 0 : index
    %c1_64 = arith.constant 1 : index
    %c0_65 = arith.constant 0 : index
    %55 = vector.load %arg6[%c0_63, %c1_64, %c0_65] : memref<3x2x128xf32, #tpu.memory_space<vmem>>, vector<1x1x128xf32>
    %56 = vector.shape_cast %55 : vector<1x1x128xf32> to vector<1x128xf32>
    %57 = vector.extract_strided_slice %52 {offsets = [0, 0], sizes = [16, 128], strides = [1, 1]} : vector<40x128xf32> to vector<16x128xf32>
    %58 = vector.broadcast %54 : vector<1x128xf32> to vector<16x128xf32>
    %59 = arith.mulf %57, %58 : vector<16x128xf32>
    %60 = vector.broadcast %56 : vector<1x128xf32> to vector<16x128xf32>
    %61 = arith.addf %59, %60 : vector<16x128xf32>
    %c0_66 = arith.constant 0 : index
    %c0_67 = arith.constant 0 : index
    %c0_68 = arith.constant 0 : index
    %62 = vector.load %arg2[%c0_66, %c0_67, %c0_68] : memref<2x16x128xf32, #tpu.memory_space<vmem>>, vector<1x16x128xf32>
    %63 = vector.shape_cast %62 : vector<1x16x128xf32> to vector<16x128xf32>
    %64 = arith.addf %61, %63 : vector<16x128xf32>
    %cst_69 = arith.constant 5.000000e-01 : f32
    %65 = vector.broadcast %cst_69 : f32 to vector<16x128xf32>
    %66 = arith.mulf %65, %64 : vector<16x128xf32>
    %cst_70 = arith.constant 0.000000e+00 : f32
    %67 = vector.broadcast %cst_70 : f32 to vector<16x128xf32>
    %68 = arith.maximumf %66, %67 : vector<16x128xf32>
    %c8_71 = arith.constant 8 : index
    %c0_72 = arith.constant 0 : index
    %69 = vector.load %arg8[%c8_71, %c0_72] : memref<56x128xf32, #tpu.memory_space<vmem>>, vector<16x128xf32>
    tpu.vector_store %arg8[%c8_71, %c0_72], %68 {strides = array<i32>} : memref<56x128xf32, #tpu.memory_space<vmem>>, vector<16x128xf32>,
    %70 = vector.extract_strided_slice %52 {offsets = [24, 0], sizes = [16, 128], strides = [1, 1]} : vector<40x128xf32> to vector<16x128xf32>
    %71 = vector.broadcast %54 : vector<1x128xf32> to vector<16x128xf32>
    %72 = arith.mulf %70, %71 : vector<16x128xf32>
    %73 = vector.broadcast %56 : vector<1x128xf32> to vector<16x128xf32>
    %74 = arith.addf %72, %73 : vector<16x128xf32>
    %c1_73 = arith.constant 1 : index
    %c0_74 = arith.constant 0 : index
    %c0_75 = arith.constant 0 : index
    %75 = vector.load %arg2[%c1_73, %c0_74, %c0_75] : memref<2x16x128xf32, #tpu.memory_space<vmem>>, vector<1x16x128xf32>
    %76 = vector.shape_cast %75 : vector<1x16x128xf32> to vector<16x128xf32>
    %77 = arith.addf %74, %76 : vector<16x128xf32>
    %cst_76 = arith.constant 5.000000e-01 : f32
    %78 = vector.broadcast %cst_76 : f32 to vector<16x128xf32>
    %79 = arith.mulf %78, %77 : vector<16x128xf32>
    %cst_77 = arith.constant 0.000000e+00 : f32
    %80 = vector.broadcast %cst_77 : f32 to vector<16x128xf32>
    %81 = arith.maximumf %79, %80 : vector<16x128xf32>
    %c32_78 = arith.constant 32 : index
    %c0_79 = arith.constant 0 : index
    %82 = vector.load %arg8[%c32_78, %c0_79] : memref<56x128xf32, #tpu.memory_space<vmem>>, vector<16x128xf32>
    tpu.vector_store %arg8[%c32_78, %c0_79], %81 {strides = array<i32>} : memref<56x128xf32, #tpu.memory_space<vmem>>, vector<16x128xf32>,
    %c6_80 = arith.constant 6 : index
    %c0_81 = arith.constant 0 : index
    %83 = vector.load %arg8[%c6_80, %c0_81] : memref<56x128xf32, #tpu.memory_space<vmem>>, vector<42x128xf32>
    %c1_82 = arith.constant 1 : index
    %c0_83 = arith.constant 0 : index
    %c0_84 = arith.constant 0 : index
    %c0_85 = arith.constant 0 : index
    %84 = vector.load %arg3[%c1_82, %c0_83, %c0_84, %c0_85] : memref<3x3x128x144xf32, #tpu.memory_space<vmem>>, vector<1x1x128x144xf32>
    %85 = vector.shape_cast %84 : vector<1x1x128x144xf32> to vector<128x144xf32>
    %cst_86 = arith.constant dense<0.000000e+00> : vector<42x144xf32>
    %86 = tpu.matmul %83, %85, %cst_86 {dimension_numbers = #tpu.dot_dimension_numbers<[1], [0], [0], [1], [0, 0, 1, 1], [], []>} : vector<42x128xf32>, vector<128x144xf32>, vector<42x144xf32> -> vector<42x144xf32>
    %c7_87 = arith.constant 7 : index
    %c0_88 = arith.constant 0 : index
    %87 = vector.load %arg8[%c7_87, %c0_88] : memref<56x128xf32, #tpu.memory_space<vmem>>, vector<42x128xf32>
    %c1_89 = arith.constant 1 : index
    %c1_90 = arith.constant 1 : index
    %c0_91 = arith.constant 0 : index
    %c0_92 = arith.constant 0 : index
    %88 = vector.load %arg3[%c1_89, %c1_90, %c0_91, %c0_92] : memref<3x3x128x144xf32, #tpu.memory_space<vmem>>, vector<1x1x128x144xf32>
    %89 = vector.shape_cast %88 : vector<1x1x128x144xf32> to vector<128x144xf32>
    %cst_93 = arith.constant dense<0.000000e+00> : vector<42x144xf32>
    %90 = tpu.matmul %87, %89, %cst_93 {dimension_numbers = #tpu.dot_dimension_numbers<[1], [0], [0], [1], [0, 0, 1, 1], [], []>} : vector<42x128xf32>, vector<128x144xf32>, vector<42x144xf32> -> vector<42x144xf32>
    %91 = arith.addf %86, %90 : vector<42x144xf32>
    %c8_94 = arith.constant 8 : index
    %c0_95 = arith.constant 0 : index
    %92 = vector.load %arg8[%c8_94, %c0_95] : memref<56x128xf32, #tpu.memory_space<vmem>>, vector<42x128xf32>
    %c1_96 = arith.constant 1 : index
    %c2_97 = arith.constant 2 : index
    %c0_98 = arith.constant 0 : index
    %c0_99 = arith.constant 0 : index
    %93 = vector.load %arg3[%c1_96, %c2_97, %c0_98, %c0_99] : memref<3x3x128x144xf32, #tpu.memory_space<vmem>>, vector<1x1x128x144xf32>
    %94 = vector.shape_cast %93 : vector<1x1x128x144xf32> to vector<128x144xf32>
    %cst_100 = arith.constant dense<0.000000e+00> : vector<42x144xf32>
    %95 = tpu.matmul %92, %94, %cst_100 {dimension_numbers = #tpu.dot_dimension_numbers<[1], [0], [0], [1], [0, 0, 1, 1], [], []>} : vector<42x128xf32>, vector<128x144xf32>, vector<42x144xf32> -> vector<42x144xf32>
    %96 = arith.addf %91, %95 : vector<42x144xf32>
    %c1_101 = arith.constant 1 : index
    %c0_102 = arith.constant 0 : index
    %c0_103 = arith.constant 0 : index
    %97 = vector.load %arg5[%c1_101, %c0_102, %c0_103] : memref<3x2x144xf32, #tpu.memory_space<vmem>>, vector<1x1x144xf32>
    %98 = vector.shape_cast %97 : vector<1x1x144xf32> to vector<1x144xf32>
    %99 = vector.broadcast %98 : vector<1x144xf32> to vector<42x144xf32>
    %100 = arith.mulf %96, %99 : vector<42x144xf32>
    %c1_104 = arith.constant 1 : index
    %c1_105 = arith.constant 1 : index
    %c0_106 = arith.constant 0 : index
    %101 = vector.load %arg5[%c1_104, %c1_105, %c0_106] : memref<3x2x144xf32, #tpu.memory_space<vmem>>, vector<1x1x144xf32>
    %102 = vector.shape_cast %101 : vector<1x1x144xf32> to vector<1x144xf32>
    %103 = vector.broadcast %102 : vector<1x144xf32> to vector<42x144xf32>
    %104 = arith.addf %100, %103 : vector<42x144xf32>
    %cst_107 = arith.constant 0.000000e+00 : f32
    %105 = vector.broadcast %cst_107 : f32 to vector<42x144xf32>
    %106 = arith.maximumf %104, %105 : vector<42x144xf32>
    %c0_108 = arith.constant 0 : index
    %c0_109 = arith.constant 0 : index
    %107 = vector.load %arg9[%c0_108, %c0_109] : memref<42x144xf32, #tpu.memory_space<vmem>>, vector<42x144xf32>
    tpu.vector_store %arg9[%c0_108, %c0_109], %106 {strides = array<i32>} : memref<42x144xf32, #tpu.memory_space<vmem>>, vector<42x144xf32>,
    %c0_110 = arith.constant 0 : index
    %c0_111 = arith.constant 0 : index
    %108 = vector.load %arg9[%c0_110, %c0_111] : memref<42x144xf32, #tpu.memory_space<vmem>>, vector<40x144xf32>
    %c1_112 = arith.constant 1 : index
    %c0_113 = arith.constant 0 : index
    %c0_114 = arith.constant 0 : index
    %c0_115 = arith.constant 0 : index
    %109 = vector.load %arg4[%c1_112, %c0_113, %c0_114, %c0_115] : memref<3x3x144x128xf32, #tpu.memory_space<vmem>>, vector<1x1x144x128xf32>
    %110 = vector.shape_cast %109 : vector<1x1x144x128xf32> to vector<144x128xf32>
    %cst_116 = arith.constant dense<0.000000e+00> : vector<40x128xf32>
    %111 = tpu.matmul %108, %110, %cst_116 {dimension_numbers = #tpu.dot_dimension_numbers<[1], [0], [0], [1], [0, 0, 1, 1], [], []>} : vector<40x144xf32>, vector<144x128xf32>, vector<40x128xf32> -> vector<40x128xf32>
    %c1_117 = arith.constant 1 : index
    %c0_118 = arith.constant 0 : index
    %112 = vector.load %arg9[%c1_117, %c0_118] : memref<42x144xf32, #tpu.memory_space<vmem>>, vector<40x144xf32>
    %c1_119 = arith.constant 1 : index
    %c1_120 = arith.constant 1 : index
    %c0_121 = arith.constant 0 : index
    %c0_122 = arith.constant 0 : index
    %113 = vector.load %arg4[%c1_119, %c1_120, %c0_121, %c0_122] : memref<3x3x144x128xf32, #tpu.memory_space<vmem>>, vector<1x1x144x128xf32>
    %114 = vector.shape_cast %113 : vector<1x1x144x128xf32> to vector<144x128xf32>
    %cst_123 = arith.constant dense<0.000000e+00> : vector<40x128xf32>
    %115 = tpu.matmul %112, %114, %cst_123 {dimension_numbers = #tpu.dot_dimension_numbers<[1], [0], [0], [1], [0, 0, 1, 1], [], []>} : vector<40x144xf32>, vector<144x128xf32>, vector<40x128xf32> -> vector<40x128xf32>
    %116 = arith.addf %111, %115 : vector<40x128xf32>
    %c2_124 = arith.constant 2 : index
    %c0_125 = arith.constant 0 : index
    %117 = vector.load %arg9[%c2_124, %c0_125] : memref<42x144xf32, #tpu.memory_space<vmem>>, vector<40x144xf32>
    %c1_126 = arith.constant 1 : index
    %c2_127 = arith.constant 2 : index
    %c0_128 = arith.constant 0 : index
    %c0_129 = arith.constant 0 : index
    %118 = vector.load %arg4[%c1_126, %c2_127, %c0_128, %c0_129] : memref<3x3x144x128xf32, #tpu.memory_space<vmem>>, vector<1x1x144x128xf32>
    %119 = vector.shape_cast %118 : vector<1x1x144x128xf32> to vector<144x128xf32>
    %cst_130 = arith.constant dense<0.000000e+00> : vector<40x128xf32>
    %120 = tpu.matmul %117, %119, %cst_130 {dimension_numbers = #tpu.dot_dimension_numbers<[1], [0], [0], [1], [0, 0, 1, 1], [], []>} : vector<40x144xf32>, vector<144x128xf32>, vector<40x128xf32> -> vector<40x128xf32>
    %121 = arith.addf %116, %120 : vector<40x128xf32>
    %c1_131 = arith.constant 1 : index
    %c0_132 = arith.constant 0 : index
    %c0_133 = arith.constant 0 : index
    %122 = vector.load %arg6[%c1_131, %c0_132, %c0_133] : memref<3x2x128xf32, #tpu.memory_space<vmem>>, vector<1x1x128xf32>
    %123 = vector.shape_cast %122 : vector<1x1x128xf32> to vector<1x128xf32>
    %c1_134 = arith.constant 1 : index
    %c1_135 = arith.constant 1 : index
    %c0_136 = arith.constant 0 : index
    %124 = vector.load %arg6[%c1_134, %c1_135, %c0_136] : memref<3x2x128xf32, #tpu.memory_space<vmem>>, vector<1x1x128xf32>
    %125 = vector.shape_cast %124 : vector<1x1x128xf32> to vector<1x128xf32>
    %126 = vector.extract_strided_slice %121 {offsets = [0, 0], sizes = [16, 128], strides = [1, 1]} : vector<40x128xf32> to vector<16x128xf32>
    %127 = vector.broadcast %123 : vector<1x128xf32> to vector<16x128xf32>
    %128 = arith.mulf %126, %127 : vector<16x128xf32>
    %129 = vector.broadcast %125 : vector<1x128xf32> to vector<16x128xf32>
    %130 = arith.addf %128, %129 : vector<16x128xf32>
    %c0_137 = arith.constant 0 : index
    %c0_138 = arith.constant 0 : index
    %c0_139 = arith.constant 0 : index
    %131 = vector.load %arg2[%c0_137, %c0_138, %c0_139] : memref<2x16x128xf32, #tpu.memory_space<vmem>>, vector<1x16x128xf32>
    %132 = vector.shape_cast %131 : vector<1x16x128xf32> to vector<16x128xf32>
    %133 = arith.addf %130, %132 : vector<16x128xf32>
    %cst_140 = arith.constant 5.000000e-01 : f32
    %134 = vector.broadcast %cst_140 : f32 to vector<16x128xf32>
    %135 = arith.mulf %134, %133 : vector<16x128xf32>
    %cst_141 = arith.constant 0.000000e+00 : f32
    %136 = vector.broadcast %cst_141 : f32 to vector<16x128xf32>
    %137 = arith.maximumf %135, %136 : vector<16x128xf32>
    %c8_142 = arith.constant 8 : index
    %c0_143 = arith.constant 0 : index
    %138 = vector.load %arg8[%c8_142, %c0_143] : memref<56x128xf32, #tpu.memory_space<vmem>>, vector<16x128xf32>
    tpu.vector_store %arg8[%c8_142, %c0_143], %137 {strides = array<i32>} : memref<56x128xf32, #tpu.memory_space<vmem>>, vector<16x128xf32>,
    %139 = vector.extract_strided_slice %121 {offsets = [24, 0], sizes = [16, 128], strides = [1, 1]} : vector<40x128xf32> to vector<16x128xf32>
    %140 = vector.broadcast %123 : vector<1x128xf32> to vector<16x128xf32>
    %141 = arith.mulf %139, %140 : vector<16x128xf32>
    %142 = vector.broadcast %125 : vector<1x128xf32> to vector<16x128xf32>
    %143 = arith.addf %141, %142 : vector<16x128xf32>
    %c1_144 = arith.constant 1 : index
    %c0_145 = arith.constant 0 : index
    %c0_146 = arith.constant 0 : index
    %144 = vector.load %arg2[%c1_144, %c0_145, %c0_146] : memref<2x16x128xf32, #tpu.memory_space<vmem>>, vector<1x16x128xf32>
    %145 = vector.shape_cast %144 : vector<1x16x128xf32> to vector<16x128xf32>
    %146 = arith.addf %143, %145 : vector<16x128xf32>
    %cst_147 = arith.constant 5.000000e-01 : f32
    %147 = vector.broadcast %cst_147 : f32 to vector<16x128xf32>
    %148 = arith.mulf %147, %146 : vector<16x128xf32>
    %cst_148 = arith.constant 0.000000e+00 : f32
    %149 = vector.broadcast %cst_148 : f32 to vector<16x128xf32>
    %150 = arith.maximumf %148, %149 : vector<16x128xf32>
    %c32_149 = arith.constant 32 : index
    %c0_150 = arith.constant 0 : index
    %151 = vector.load %arg8[%c32_149, %c0_150] : memref<56x128xf32, #tpu.memory_space<vmem>>, vector<16x128xf32>
    tpu.vector_store %arg8[%c32_149, %c0_150], %150 {strides = array<i32>} : memref<56x128xf32, #tpu.memory_space<vmem>>, vector<16x128xf32>,
    %c6_151 = arith.constant 6 : index
    %c0_152 = arith.constant 0 : index
    %152 = vector.load %arg8[%c6_151, %c0_152] : memref<56x128xf32, #tpu.memory_space<vmem>>, vector<42x128xf32>
    %c2_153 = arith.constant 2 : index
    %c0_154 = arith.constant 0 : index
    %c0_155 = arith.constant 0 : index
    %c0_156 = arith.constant 0 : index
    %153 = vector.load %arg3[%c2_153, %c0_154, %c0_155, %c0_156] : memref<3x3x128x144xf32, #tpu.memory_space<vmem>>, vector<1x1x128x144xf32>
    %154 = vector.shape_cast %153 : vector<1x1x128x144xf32> to vector<128x144xf32>
    %cst_157 = arith.constant dense<0.000000e+00> : vector<42x144xf32>
    %155 = tpu.matmul %152, %154, %cst_157 {dimension_numbers = #tpu.dot_dimension_numbers<[1], [0], [0], [1], [0, 0, 1, 1], [], []>} : vector<42x128xf32>, vector<128x144xf32>, vector<42x144xf32> -> vector<42x144xf32>
    %c7_158 = arith.constant 7 : index
    %c0_159 = arith.constant 0 : index
    %156 = vector.load %arg8[%c7_158, %c0_159] : memref<56x128xf32, #tpu.memory_space<vmem>>, vector<42x128xf32>
    %c2_160 = arith.constant 2 : index
    %c1_161 = arith.constant 1 : index
    %c0_162 = arith.constant 0 : index
    %c0_163 = arith.constant 0 : index
    %157 = vector.load %arg3[%c2_160, %c1_161, %c0_162, %c0_163] : memref<3x3x128x144xf32, #tpu.memory_space<vmem>>, vector<1x1x128x144xf32>
    %158 = vector.shape_cast %157 : vector<1x1x128x144xf32> to vector<128x144xf32>
    %cst_164 = arith.constant dense<0.000000e+00> : vector<42x144xf32>
    %159 = tpu.matmul %156, %158, %cst_164 {dimension_numbers = #tpu.dot_dimension_numbers<[1], [0], [0], [1], [0, 0, 1, 1], [], []>} : vector<42x128xf32>, vector<128x144xf32>, vector<42x144xf32> -> vector<42x144xf32>
    %160 = arith.addf %155, %159 : vector<42x144xf32>
    %c8_165 = arith.constant 8 : index
    %c0_166 = arith.constant 0 : index
    %161 = vector.load %arg8[%c8_165, %c0_166] : memref<56x128xf32, #tpu.memory_space<vmem>>, vector<42x128xf32>
    %c2_167 = arith.constant 2 : index
    %c2_168 = arith.constant 2 : index
    %c0_169 = arith.constant 0 : index
    %c0_170 = arith.constant 0 : index
    %162 = vector.load %arg3[%c2_167, %c2_168, %c0_169, %c0_170] : memref<3x3x128x144xf32, #tpu.memory_space<vmem>>, vector<1x1x128x144xf32>
    %163 = vector.shape_cast %162 : vector<1x1x128x144xf32> to vector<128x144xf32>
    %cst_171 = arith.constant dense<0.000000e+00> : vector<42x144xf32>
    %164 = tpu.matmul %161, %163, %cst_171 {dimension_numbers = #tpu.dot_dimension_numbers<[1], [0], [0], [1], [0, 0, 1, 1], [], []>} : vector<42x128xf32>, vector<128x144xf32>, vector<42x144xf32> -> vector<42x144xf32>
    %165 = arith.addf %160, %164 : vector<42x144xf32>
    %c2_172 = arith.constant 2 : index
    %c0_173 = arith.constant 0 : index
    %c0_174 = arith.constant 0 : index
    %166 = vector.load %arg5[%c2_172, %c0_173, %c0_174] : memref<3x2x144xf32, #tpu.memory_space<vmem>>, vector<1x1x144xf32>
    %167 = vector.shape_cast %166 : vector<1x1x144xf32> to vector<1x144xf32>
    %168 = vector.broadcast %167 : vector<1x144xf32> to vector<42x144xf32>
    %169 = arith.mulf %165, %168 : vector<42x144xf32>
    %c2_175 = arith.constant 2 : index
    %c1_176 = arith.constant 1 : index
    %c0_177 = arith.constant 0 : index
    %170 = vector.load %arg5[%c2_175, %c1_176, %c0_177] : memref<3x2x144xf32, #tpu.memory_space<vmem>>, vector<1x1x144xf32>
    %171 = vector.shape_cast %170 : vector<1x1x144xf32> to vector<1x144xf32>
    %172 = vector.broadcast %171 : vector<1x144xf32> to vector<42x144xf32>
    %173 = arith.addf %169, %172 : vector<42x144xf32>
    %cst_178 = arith.constant 0.000000e+00 : f32
    %174 = vector.broadcast %cst_178 : f32 to vector<42x144xf32>
    %175 = arith.maximumf %173, %174 : vector<42x144xf32>
    %c0_179 = arith.constant 0 : index
    %c0_180 = arith.constant 0 : index
    %176 = vector.load %arg9[%c0_179, %c0_180] : memref<42x144xf32, #tpu.memory_space<vmem>>, vector<42x144xf32>
    tpu.vector_store %arg9[%c0_179, %c0_180], %175 {strides = array<i32>} : memref<42x144xf32, #tpu.memory_space<vmem>>, vector<42x144xf32>,
    %c0_181 = arith.constant 0 : index
    %c0_182 = arith.constant 0 : index
    %177 = vector.load %arg9[%c0_181, %c0_182] : memref<42x144xf32, #tpu.memory_space<vmem>>, vector<40x144xf32>
    %c2_183 = arith.constant 2 : index
    %c0_184 = arith.constant 0 : index
    %c0_185 = arith.constant 0 : index
    %c0_186 = arith.constant 0 : index
    %178 = vector.load %arg4[%c2_183, %c0_184, %c0_185, %c0_186] : memref<3x3x144x128xf32, #tpu.memory_space<vmem>>, vector<1x1x144x128xf32>
    %179 = vector.shape_cast %178 : vector<1x1x144x128xf32> to vector<144x128xf32>
    %cst_187 = arith.constant dense<0.000000e+00> : vector<40x128xf32>
    %180 = tpu.matmul %177, %179, %cst_187 {dimension_numbers = #tpu.dot_dimension_numbers<[1], [0], [0], [1], [0, 0, 1, 1], [], []>} : vector<40x144xf32>, vector<144x128xf32>, vector<40x128xf32> -> vector<40x128xf32>
    %c1_188 = arith.constant 1 : index
    %c0_189 = arith.constant 0 : index
    %181 = vector.load %arg9[%c1_188, %c0_189] : memref<42x144xf32, #tpu.memory_space<vmem>>, vector<40x144xf32>
    %c2_190 = arith.constant 2 : index
    %c1_191 = arith.constant 1 : index
    %c0_192 = arith.constant 0 : index
    %c0_193 = arith.constant 0 : index
    %182 = vector.load %arg4[%c2_190, %c1_191, %c0_192, %c0_193] : memref<3x3x144x128xf32, #tpu.memory_space<vmem>>, vector<1x1x144x128xf32>
    %183 = vector.shape_cast %182 : vector<1x1x144x128xf32> to vector<144x128xf32>
    %cst_194 = arith.constant dense<0.000000e+00> : vector<40x128xf32>
    %184 = tpu.matmul %181, %183, %cst_194 {dimension_numbers = #tpu.dot_dimension_numbers<[1], [0], [0], [1], [0, 0, 1, 1], [], []>} : vector<40x144xf32>, vector<144x128xf32>, vector<40x128xf32> -> vector<40x128xf32>
    %185 = arith.addf %180, %184 : vector<40x128xf32>
    %c2_195 = arith.constant 2 : index
    %c0_196 = arith.constant 0 : index
    %186 = vector.load %arg9[%c2_195, %c0_196] : memref<42x144xf32, #tpu.memory_space<vmem>>, vector<40x144xf32>
    %c2_197 = arith.constant 2 : index
    %c2_198 = arith.constant 2 : index
    %c0_199 = arith.constant 0 : index
    %c0_200 = arith.constant 0 : index
    %187 = vector.load %arg4[%c2_197, %c2_198, %c0_199, %c0_200] : memref<3x3x144x128xf32, #tpu.memory_space<vmem>>, vector<1x1x144x128xf32>
    %188 = vector.shape_cast %187 : vector<1x1x144x128xf32> to vector<144x128xf32>
    %cst_201 = arith.constant dense<0.000000e+00> : vector<40x128xf32>
    %189 = tpu.matmul %186, %188, %cst_201 {dimension_numbers = #tpu.dot_dimension_numbers<[1], [0], [0], [1], [0, 0, 1, 1], [], []>} : vector<40x144xf32>, vector<144x128xf32>, vector<40x128xf32> -> vector<40x128xf32>
    %190 = arith.addf %185, %189 : vector<40x128xf32>
    %c2_202 = arith.constant 2 : index
    %c0_203 = arith.constant 0 : index
    %c0_204 = arith.constant 0 : index
    %191 = vector.load %arg6[%c2_202, %c0_203, %c0_204] : memref<3x2x128xf32, #tpu.memory_space<vmem>>, vector<1x1x128xf32>
    %192 = vector.shape_cast %191 : vector<1x1x128xf32> to vector<1x128xf32>
    %c2_205 = arith.constant 2 : index
    %c1_206 = arith.constant 1 : index
    %c0_207 = arith.constant 0 : index
    %193 = vector.load %arg6[%c2_205, %c1_206, %c0_207] : memref<3x2x128xf32, #tpu.memory_space<vmem>>, vector<1x1x128xf32>
    %194 = vector.shape_cast %193 : vector<1x1x128xf32> to vector<1x128xf32>
    %195 = vector.extract_strided_slice %190 {offsets = [0, 0], sizes = [16, 128], strides = [1, 1]} : vector<40x128xf32> to vector<16x128xf32>
    %196 = vector.broadcast %192 : vector<1x128xf32> to vector<16x128xf32>
    %197 = arith.mulf %195, %196 : vector<16x128xf32>
    %198 = vector.broadcast %194 : vector<1x128xf32> to vector<16x128xf32>
    %199 = arith.addf %197, %198 : vector<16x128xf32>
    %c0_208 = arith.constant 0 : index
    %c0_209 = arith.constant 0 : index
    %c0_210 = arith.constant 0 : index
    %200 = vector.load %arg2[%c0_208, %c0_209, %c0_210] : memref<2x16x128xf32, #tpu.memory_space<vmem>>, vector<1x16x128xf32>
    %201 = vector.shape_cast %200 : vector<1x16x128xf32> to vector<16x128xf32>
    %202 = arith.addf %199, %201 : vector<16x128xf32>
    %cst_211 = arith.constant 5.000000e-01 : f32
    %203 = vector.broadcast %cst_211 : f32 to vector<16x128xf32>
    %204 = arith.mulf %203, %202 : vector<16x128xf32>
    %c0_212 = arith.constant 0 : index
    %c0_213 = arith.constant 0 : index
    %c0_214 = arith.constant 0 : index
    %205 = vector.load %arg7[%c0_212, %c0_213, %c0_214] : memref<2x16x128xf32, #tpu.memory_space<vmem>>, vector<1x16x128xf32>
    %206 = vector.shape_cast %205 : vector<1x16x128xf32> to vector<16x128xf32>
    %207 = vector.shape_cast %204 : vector<16x128xf32> to vector<1x16x128xf32>
    tpu.vector_store %arg7[%c0_212, %c0_213, %c0_214], %207 {strides = array<i32>} : memref<2x16x128xf32, #tpu.memory_space<vmem>>, vector<1x16x128xf32>,
    %208 = vector.extract_strided_slice %190 {offsets = [24, 0], sizes = [16, 128], strides = [1, 1]} : vector<40x128xf32> to vector<16x128xf32>
    %209 = vector.broadcast %192 : vector<1x128xf32> to vector<16x128xf32>
    %210 = arith.mulf %208, %209 : vector<16x128xf32>
    %211 = vector.broadcast %194 : vector<1x128xf32> to vector<16x128xf32>
    %212 = arith.addf %210, %211 : vector<16x128xf32>
    %c1_215 = arith.constant 1 : index
    %c0_216 = arith.constant 0 : index
    %c0_217 = arith.constant 0 : index
    %213 = vector.load %arg2[%c1_215, %c0_216, %c0_217] : memref<2x16x128xf32, #tpu.memory_space<vmem>>, vector<1x16x128xf32>
    %214 = vector.shape_cast %213 : vector<1x16x128xf32> to vector<16x128xf32>
    %215 = arith.addf %212, %214 : vector<16x128xf32>
    %cst_218 = arith.constant 5.000000e-01 : f32
    %216 = vector.broadcast %cst_218 : f32 to vector<16x128xf32>
    %217 = arith.mulf %216, %215 : vector<16x128xf32>
    %c1_219 = arith.constant 1 : index
    %c0_220 = arith.constant 0 : index
    %c0_221 = arith.constant 0 : index
    %218 = vector.load %arg7[%c1_219, %c0_220, %c0_221] : memref<2x16x128xf32, #tpu.memory_space<vmem>>, vector<1x16x128xf32>
    %219 = vector.shape_cast %218 : vector<1x16x128xf32> to vector<16x128xf32>
    %220 = vector.shape_cast %217 : vector<16x128xf32> to vector<1x16x128xf32>
    tpu.vector_store %arg7[%c1_219, %c0_220, %c0_221], %220 {strides = array<i32>} : memref<2x16x128xf32, #tpu.memory_space<vmem>>, vector<1x16x128xf32>,
    return
  }
  func.func @transform_0(%arg0: i32) -> (i32, i32, i32) {
    %c0_i32 = arith.constant 0 : i32
    %c0_i32_0 = arith.constant 0 : i32
    %c0_i32_1 = arith.constant 0 : i32
    return %arg0, %c0_i32, %c0_i32_0 : i32, i32, i32
  }
  func.func @transform_1(%arg0: i32) -> (i32, i32, i32) {
    %c0_i32 = arith.constant 0 : i32
    %c0_i32_0 = arith.constant 0 : i32
    %c0_i32_1 = arith.constant 0 : i32
    return %arg0, %c0_i32, %c0_i32_0 : i32, i32, i32
  }
  func.func @transform_2(%arg0: i32) -> (i32, i32, i32, i32) {
    %c0_i32 = arith.constant 0 : i32
    %c0_i32_0 = arith.constant 0 : i32
    %c0_i32_1 = arith.constant 0 : i32
    %c0_i32_2 = arith.constant 0 : i32
    %c0_i32_3 = arith.constant 0 : i32
    return %c0_i32, %c0_i32_0, %c0_i32_1, %c0_i32_2 : i32, i32, i32, i32
  }
  func.func @transform_3(%arg0: i32) -> (i32, i32, i32, i32) {
    %c0_i32 = arith.constant 0 : i32
    %c0_i32_0 = arith.constant 0 : i32
    %c0_i32_1 = arith.constant 0 : i32
    %c0_i32_2 = arith.constant 0 : i32
    %c0_i32_3 = arith.constant 0 : i32
    return %c0_i32, %c0_i32_0, %c0_i32_1, %c0_i32_2 : i32, i32, i32, i32
  }
  func.func @transform_4(%arg0: i32) -> (i32, i32, i32) {
    %c0_i32 = arith.constant 0 : i32
    %c0_i32_0 = arith.constant 0 : i32
    %c0_i32_1 = arith.constant 0 : i32
    %c0_i32_2 = arith.constant 0 : i32
    return %c0_i32, %c0_i32_0, %c0_i32_1 : i32, i32, i32
  }
  func.func @transform_5(%arg0: i32) -> (i32, i32, i32) {
    %c0_i32 = arith.constant 0 : i32
    %c0_i32_0 = arith.constant 0 : i32
    %c0_i32_1 = arith.constant 0 : i32
    %c0_i32_2 = arith.constant 0 : i32
    return %c0_i32, %c0_i32_0, %c0_i32_1 : i32, i32, i32
  }
  func.func @transform_6(%arg0: i32) -> (i32, i32, i32) {
    %c0_i32 = arith.constant 0 : i32
    %c0_i32_0 = arith.constant 0 : i32
    %c0_i32_1 = arith.constant 0 : i32
    return %arg0, %c0_i32, %c0_i32_0 : i32, i32, i32
  }
}

</mosaic_0001>

<llo_original>
// kernel: tpu_custom_call.1
$region0: #{tpu_custom_call.1}
  #allocation0 [shape = 'u32[]', space=smem, size = 0x4, offset = 0x4, fixed_abs, tag = 'smem constant byte address 0x4 - core index']
  #allocation1 [shape = 'u32[72,128]{1,0:T(1,128)}', space=vmem, size = 0x9000, scoped, tag = 'internal scratch']
  #allocation2 [shape = 'f32[56,128]{1,0:T(8,128)}', space=vmem, size = 0x7000, scoped, tag = 'scratch operand']
  #allocation3 [shape = 'f32[42,144]{1,0:T(8,128)}', space=vmem, size = 0xc000, scoped, tag = 'scratch operand']
  %s0 = inlined_call_operand.vmem [shape: f32[2,16,128], index: 0, kind: input, shape index: {}]
  %s1 = inlined_call_operand.vmem [shape: f32[2,16,128], index: 1, kind: input, shape index: {}]
  %s2 = inlined_call_operand.vmem [shape: f32[3,3,128,144], index: 2, kind: input, shape index: {}]
  %s3 = inlined_call_operand.vmem [shape: f32[3,3,144,128], index: 3, kind: input, shape index: {}]
  %s4 = inlined_call_operand.vmem [shape: f32[3,2,144], index: 4, kind: input, shape index: {}]
  %s5 = inlined_call_operand.vmem [shape: f32[3,2,128], index: 5, kind: input, shape index: {}]
  %s6 = inlined_call_operand.hbm [shape: f32[2,16,128], index: 6, kind: output, shape index: {}]
  %s7 = sld [smem:[#allocation0]]
  $region34: #{tpu_custom_call.1} parent=0
    _
  %s9 = ssub.s32 1, %s7
  %s10 = scalar_select 0, %s9, %s7
  $region1: #{tpu_custom_call.1} parent=0
    #allocation4 [shape = 'u8[16384]{0}', space=vmem, size = 0x4000, scoped, tag = 'output window, operand 0, single buffered']
    #allocation5 [shape = 's32[1]{0}', space=sflag, size = 0x4, scoped, tag = 'scoped memory for tpu_custom_call.1']
    %11 = vsyncpa [#allocation5], 0
    // Predicated region
    $region2: #{tpu_custom_call.1} parent=1 // pred_check
      _
    $region3: #{tpu_custom_call.1} parent=1 // pred_check_branch
      %13 = sbr.rel (0) target = $region5
    $region4: #{tpu_custom_call.1} parent=1 // pred_region
      _
    $region5: #{tpu_custom_call.1} parent=1 // pred_fallthru
      _
    // Predicated region
    $region6: #{tpu_custom_call.1} parent=1 // pred_check
      _
    $region7: #{tpu_custom_call.1} parent=1 // pred_check_branch
      %15 = sbr.rel (0) target = $region9
    $region8: #{tpu_custom_call.1} parent=1 // pred_region
      _
    $region9: #{tpu_custom_call.1} parent=1 // pred_fallthru
      _
    // Predicated region
    $region10: #{tpu_custom_call.1} parent=1 // pred_check
      _
    $region11: #{tpu_custom_call.1} parent=1 // pred_check_branch
      %17 = sbr.rel (0) target = $region13
    $region12: #{tpu_custom_call.1} parent=1 // pred_region
      _
    $region13: #{tpu_custom_call.1} parent=1 // pred_fallthru
      _
    // Predicated region
    $region14: #{tpu_custom_call.1} parent=1 // pred_check
      _
    $region15: #{tpu_custom_call.1} parent=1 // pred_check_branch
      %19 = sbr.rel (0) target = $region17
    $region16: #{tpu_custom_call.1} parent=1 // pred_region
      _
    $region17: #{tpu_custom_call.1} parent=1 // pred_fallthru
      _
    // Predicated region
    $region18: #{tpu_custom_call.1} parent=1 // pred_check
      _
    $region19: #{tpu_custom_call.1} parent=1 // pred_check_branch
      %21 = sbr.rel (0) target = $region21
    $region20: #{tpu_custom_call.1} parent=1 // pred_region
      _
    $region21: #{tpu_custom_call.1} parent=1 // pred_fallthru
      _
    // Predicated region
    $region22: #{tpu_custom_call.1} parent=1 // pred_check
      _
    $region23: #{tpu_custom_call.1} parent=1 // pred_check_branch
      %23 = sbr.rel (0) target = $region25
    $region24: #{tpu_custom_call.1} parent=1 // pred_region
      _
    $region25: #{tpu_custom_call.1} parent=1 // pred_fallthru
      _
    %24 = vst [vmem:[#allocation2] sm:$0xff] 0.0
    %25 = vst [vmem:[#allocation2 + $0x18] sm:$0xff] 0.0
    %v26 = vld [vmem:[%s0] sm:$0xff]
    %v27 = vld [vmem:[%s0 + $0x8] sm:$0xff]
    %v28 = vmax.f32 %v26, 0.0
    %v29 = vmax.f32 %v27, 0.0
    %30 = vst [vmem:[#allocation2 + $0x8] sm:$0xff] %v28
    %31 = vst [vmem:[#allocation2 + $0x10] sm:$0xff] %v29
    %32 = vst [vmem:[#allocation2 + $0x30] sm:$0xff] 0.0
    %s33 = scalar_lea.vmem %s0, 16
    %v34 = vld [vmem:[%s33] sm:$0xff]
    %v35 = vld [vmem:[%s33 + $0x8] sm:$0xff]
    %v36 = vmax.f32 %v34, 0.0
    %v37 = vmax.f32 %v35, 0.0
    %38 = vst [vmem:[#allocation2 + $0x20] sm:$0xff] %v36
    %39 = vst [vmem:[#allocation2 + $0x28] sm:$0xff] %v37
    %v40 = vld [vmem:[#allocation2 + $0x6] sm:$0xff]
    %v41 = vld [vmem:[#allocation2 + $0xe] sm:$0xff]
    %v42 = vld [vmem:[#allocation2 + $0x16] sm:$0xff]
    %v43 = vld [vmem:[#allocation2 + $0x1e] sm:$0xff]
    %v44 = vld [vmem:[#allocation2 + $0x26] sm:$0xff]
    %v45 = vld [vmem:[#allocation2 + $0x2e] sm:$0x3]
    %v46 = vld [vmem:[%s2] sm:$0xff]
    %v47 = vld [vmem:[%s2 + $0x8] sm:$0xff]
    %v48 = vld [vmem:[%s2 + $0x10] sm:$0xff]
    %v49 = vld [vmem:[%s2 + $0x18] sm:$0xff]
    %v50 = vld [vmem:[%s2 + $0x20] sm:$0xff]
    %v51 = vld [vmem:[%s2 + $0x28] sm:$0xff]
    %v52 = vld [vmem:[%s2 + $0x30] sm:$0xff]
    %v53 = vld [vmem:[%s2 + $0x38] sm:$0xff]
    %v54 = vld [vmem:[%s2 + $0x40] sm:$0xff]
    %v55 = vld [vmem:[%s2 + $0x48] sm:$0xff]
    %v56 = vld [vmem:[%s2 + $0x50] sm:$0xff]
    %v57 = vld [vmem:[%s2 + $0x58] sm:$0xff]
    %v58 = vld [vmem:[%s2 + $0x60] sm:$0xff]
    %v59 = vld [vmem:[%s2 + $0x68] sm:$0xff]
    %v60 = vld [vmem:[%s2 + $0x70] sm:$0xff]
    %v61 = vld [vmem:[%s2 + $0x78] sm:$0xff]
    %v62 = vld [vmem:[%s2 + $0x80] sm:$0xff]
    %v63 = vld [vmem:[%s2 + $0x88] sm:$0xff]
    %v64 = vld [vmem:[%s2 + $0x90] sm:$0xff]
    %v65 = vld [vmem:[%s2 + $0x98] sm:$0xff]
    %v66 = vld [vmem:[%s2 + $0xa0] sm:$0xff]
    %v67 = vld [vmem:[%s2 + $0xa8] sm:$0xff]
    %v68 = vld [vmem:[%s2 + $0xb0] sm:$0xff]
    %v69 = vld [vmem:[%s2 + $0xb8] sm:$0xff]
    %v70 = vld [vmem:[%s2 + $0xc0] sm:$0xff]
    %v71 = vld [vmem:[%s2 + $0xc8] sm:$0xff]
    %v72 = vld [vmem:[%s2 + $0xd0] sm:$0xff]
    %v73 = vld [vmem:[%s2 + $0xd8] sm:$0xff]
    %v74 = vld [vmem:[%s2 + $0xe0] sm:$0xff]
    %v75 = vld [vmem:[%s2 + $0xe8] sm:$0xff]
    %v76 = vld [vmem:[%s2 + $0xf0] sm:$0xff]
    %v77 = vld [vmem:[%s2 + $0xf8] sm:$0xff]
    %v78 = vld [vmem:[#allocation2 + $0x7] sm:$0xff]
    %v79 = vld [vmem:[#allocation2 + $0xf] sm:$0xff]
    %v80 = vld [vmem:[#allocation2 + $0x17] sm:$0xff]
    %v81 = vld [vmem:[#allocation2 + $0x1f] sm:$0xff]
    %v82 = vld [vmem:[#allocation2 + $0x27] sm:$0xff]
    %v83 = vld [vmem:[#allocation2 + $0x2f] sm:$0x3]
    %s84 = scalar_lea.vmem %s2, 256
    %v85 = vld [vmem:[%s84] sm:$0xff]
    %v86 = vld [vmem:[%s84 + $0x8] sm:$0xff]
    %v87 = vld [vmem:[%s84 + $0x10] sm:$0xff]
    %v88 = vld [vmem:[%s84 + $0x18] sm:$0xff]
    %v89 = vld [vmem:[%s84 + $0x20] sm:$0xff]
    %v90 = vld [vmem:[%s84 + $0x28] sm:$0xff]
    %v91 = vld [vmem:[%s84 + $0x30] sm:$0xff]
    %v92 = vld [vmem:[%s84 + $0x38] sm:$0xff]
    %v93 = vld [vmem:[%s84 + $0x40] sm:$0xff]
    %v94 = vld [vmem:[%s84 + $0x48] sm:$0xff]
    %v95 = vld [vmem:[%s84 + $0x50] sm:$0xff]
    %v96 = vld [vmem:[%s84 + $0x58] sm:$0xff]
    %v97 = vld [vmem:[%s84 + $0x60] sm:$0xff]
    %v98 = vld [vmem:[%s84 + $0x68] sm:$0xff]
    %v99 = vld [vmem:[%s84 + $0x70] sm:$0xff]
    %v100 = vld [vmem:[%s84 + $0x78] sm:$0xff]
    %v101 = vld [vmem:[%s84 + $0x80] sm:$0xff]
    %v102 = vld [vmem:[%s84 + $0x88] sm:$0xff]
    %v103 = vld [vmem:[%s84 + $0x90] sm:$0xff]
    %v104 = vld [vmem:[%s84 + $0x98] sm:$0xff]
    %v105 = vld [vmem:[%s84 + $0xa0] sm:$0xff]
    %v106 = vld [vmem:[%s84 + $0xa8] sm:$0xff]
    %v107 = vld [vmem:[%s84 + $0xb0] sm:$0xff]
    %v108 = vld [vmem:[%s84 + $0xb8] sm:$0xff]
    %v109 = vld [vmem:[%s84 + $0xc0] sm:$0xff]
    %v110 = vld [vmem:[%s84 + $0xc8] sm:$0xff]
    %v111 = vld [vmem:[%s84 + $0xd0] sm:$0xff]
    %v112 = vld [vmem:[%s84 + $0xd8] sm:$0xff]
    %v113 = vld [vmem:[%s84 + $0xe0] sm:$0xff]
    %v114 = vld [vmem:[%s84 + $0xe8] sm:$0xff]
    %v115 = vld [vmem:[%s84 + $0xf0] sm:$0xff]
    %v116 = vld [vmem:[%s84 + $0xf8] sm:$0xff]
    %117 = vmatpush.msra.mxu0 %v115
    %118 = vmatpush.msra.mxu0 %v113
    %119 = vmatpush.msra.mxu0 %v111
    %120 = vmatpush.msra.mxu0 %v109
    %121 = vmatpush.msra.mxu0 %v107
    %122 = vmatpush.msra.mxu0 %v105
    %123 = vmatpush.msra.mxu0 %v103
    %124 = vmatpush.msra.mxu0 %v101
    %125 = vmatpush.msra.mxu0 %v99
    %126 = vmatpush.msra.mxu0 %v97
    %127 = vmatpush.msra.mxu0 %v95
    %128 = vmatpush.msra.mxu0 %v93
    %129 = vmatpush.msra.mxu0 %v91
    %130 = vmatpush.msra.mxu0 %v89
    %131 = vmatpush.msra.mxu0 %v87
    %132 = vmatpush.msra.mxu0 %v85
    %133 = vmatmul.f32.gmra.mxu0 %v78
    %v134 = vpop.f32.mrf.mxu0
    %v135 = vadd.f32 0.0, %v134
    %136 = vmatmul.f32.gmra.mxu0 %v79
    %v137 = vpop.f32.mrf.mxu0
    %v138 = vadd.f32 0.0, %v137
    %139 = vmatmul.f32.gmra.mxu0 %v80
    %v140 = vpop.f32.mrf.mxu0
    %v141 = vadd.f32 0.0, %v140
    %142 = vmatmul.f32.gmra.mxu0 %v81
    %v143 = vpop.f32.mrf.mxu0
    %v144 = vadd.f32 0.0, %v143
    %145 = vmatmul.f32.gmra.mxu0 %v82
    %v146 = vpop.f32.mrf.mxu0
    %v147 = vadd.f32 0.0, %v146
    %148 = vmatmul.f32.gmra.mxu0 %v83
    %v149 = vpop.f32.mrf.mxu0
    %v150 = vadd.f32 0.0, %v149
    %151 = vdwg.mxu0
    %152 = vmatpush.msra.mxu0 %v116
    %153 = vmatpush.msra.mxu0 %v114
    %154 = vmatpush.msra.mxu0 %v112
    %155 = vmatpush.msra.mxu0 %v110
    %156 = vmatpush.msra.mxu0 %v108
    %157 = vmatpush.msra.mxu0 %v106
    %158 = vmatpush.msra.mxu0 %v104
    %159 = vmatpush.msra.mxu0 %v102
    %160 = vmatpush.msra.mxu0 %v100
    %161 = vmatpush.msra.mxu0 %v98
    %162 = vmatpush.msra.mxu0 %v96
    %163 = vmatpush.msra.mxu0 %v94
    %164 = vmatpush.msra.mxu0 %v92
    %165 = vmatpush.msra.mxu0 %v90
    %166 = vmatpush.msra.mxu0 %v88
    %167 = vmatpush.msra.mxu0 %v86
    %168 = vmatmul.f32.gmra.mxu0 %v78
    %v169 = vpop.f32.mrf.mxu0
    %v170 = vadd.f32 0.0, %v169
    %171 = vmatmul.f32.gmra.mxu0 %v79
    %v172 = vpop.f32.mrf.mxu0
    %v173 = vadd.f32 0.0, %v172
    %174 = vmatmul.f32.gmra.mxu0 %v80
    %v175 = vpop.f32.mrf.mxu0
    %v176 = vadd.f32 0.0, %v175
    %177 = vmatmul.f32.gmra.mxu0 %v81
    %v178 = vpop.f32.mrf.mxu0
    %v179 = vadd.f32 0.0, %v178
    %180 = vmatmul.f32.gmra.mxu0 %v82
    %v181 = vpop.f32.mrf.mxu0
    %v182 = vadd.f32 0.0, %v181
    %183 = vmatmul.f32.gmra.mxu0 %v83
    %v184 = vpop.f32.mrf.mxu0
    %v185 = vadd.f32 0.0, %v184
    %186 = vdwg.mxu0
    %187 = vmatpush.msra.mxu0 %v76
    %188 = vmatpush.msra.mxu0 %v74
    %189 = vmatpush.msra.mxu0 %v72
    %190 = vmatpush.msra.mxu0 %v70
    %191 = vmatpush.msra.mxu0 %v68
    %192 = vmatpush.msra.mxu0 %v66
    %193 = vmatpush.msra.mxu0 %v64
    %194 = vmatpush.msra.mxu0 %v62
    %195 = vmatpush.msra.mxu0 %v60
    %196 = vmatpush.msra.mxu0 %v58
    %197 = vmatpush.msra.mxu0 %v56
    %198 = vmatpush.msra.mxu0 %v54
    %199 = vmatpush.msra.mxu0 %v52
    %200 = vmatpush.msra.mxu0 %v50
    %201 = vmatpush.msra.mxu0 %v48
    %202 = vmatpush.msra.mxu0 %v46
    %203 = vmatmul.f32.gmra.mxu0 %v40
    %v204 = vpop.f32.mrf.mxu0
    %v205 = vadd.f32 %v135, %v204
    %206 = vmatmul.f32.gmra.mxu0 %v41
    %v207 = vpop.f32.mrf.mxu0
    %v208 = vadd.f32 %v138, %v207
    %209 = vmatmul.f32.gmra.mxu0 %v42
    %v210 = vpop.f32.mrf.mxu0
    %v211 = vadd.f32 %v141, %v210
    %212 = vmatmul.f32.gmra.mxu0 %v43
    %v213 = vpop.f32.mrf.mxu0
    %v214 = vadd.f32 %v144, %v213
    %215 = vmatmul.f32.gmra.mxu0 %v44
    %v216 = vpop.f32.mrf.mxu0
    %v217 = vadd.f32 %v147, %v216
    %218 = vmatmul.f32.gmra.mxu0 %v45
    %v219 = vpop.f32.mrf.mxu0
    %v220 = vadd.f32 %v150, %v219
    %221 = vdwg.mxu0
    %222 = vmatpush.msra.mxu0 %v77
    %223 = vmatpush.msra.mxu0 %v75
    %224 = vmatpush.msra.mxu0 %v73
    %225 = vmatpush.msra.mxu0 %v71
    %226 = vmatpush.msra.mxu0 %v69
    %227 = vmatpush.msra.mxu0 %v67
    %228 = vmatpush.msra.mxu0 %v65
    %229 = vmatpush.msra.mxu0 %v63
    %230 = vmatpush.msra.mxu0 %v61
    %231 = vmatpush.msra.mxu0 %v59
    %232 = vmatpush.msra.mxu0 %v57
    %233 = vmatpush.msra.mxu0 %v55
    %234 = vmatpush.msra.mxu0 %v53
    %235 = vmatpush.msra.mxu0 %v51
    %236 = vmatpush.msra.mxu0 %v49
    %237 = vmatpush.msra.mxu0 %v47
    %238 = vmatmul.f32.gmra.mxu0 %v40
    %v239 = vpop.f32.mrf.mxu0
    %v240 = vadd.f32 %v170, %v239
    %241 = vmatmul.f32.gmra.mxu0 %v41
    %v242 = vpop.f32.mrf.mxu0
    %v243 = vadd.f32 %v173, %v242
    %244 = vmatmul.f32.gmra.mxu0 %v42
    %v245 = vpop.f32.mrf.mxu0
    %v246 = vadd.f32 %v176, %v245
    %247 = vmatmul.f32.gmra.mxu0 %v43
    %v248 = vpop.f32.mrf.mxu0
    %v249 = vadd.f32 %v179, %v248
    %250 = vmatmul.f32.gmra.mxu0 %v44
    %v251 = vpop.f32.mrf.mxu0
    %v252 = vadd.f32 %v182, %v251
    %253 = vmatmul.f32.gmra.mxu0 %v45
    %v254 = vpop.f32.mrf.mxu0
    %v255 = vadd.f32 %v185, %v254
    %256 = vdwg.mxu0
    %v257 = vld [vmem:[#allocation2 + $0x8] sm:$0xff]
    %v258 = vld [vmem:[#allocation2 + $0x10] sm:$0xff]
    %v259 = vld [vmem:[#allocation2 + $0x18] sm:$0xff]
    %v260 = vld [vmem:[#allocation2 + $0x20] sm:$0xff]
    %v261 = vld [vmem:[#allocation2 + $0x28] sm:$0xff]
    %v262 = vld [vmem:[#allocation2 + $0x30] sm:$0x3]
    %s263 = scalar_lea.vmem %s2, 512
    %v264 = vld [vmem:[%s263] sm:$0xff]
    %v265 = vld [vmem:[%s263 + $0x8] sm:$0xff]
    %v266 = vld [vmem:[%s263 + $0x10] sm:$0xff]
    %v267 = vld [vmem:[%s263 + $0x18] sm:$0xff]
    %v268 = vld [vmem:[%s263 + $0x20] sm:$0xff]
    %v269 = vld [vmem:[%s263 + $0x28] sm:$0xff]
    %v270 = vld [vmem:[%s263 + $0x30] sm:$0xff]
    %v271 = vld [vmem:[%s263 + $0x38] sm:$0xff]
    %v272 = vld [vmem:[%s263 + $0x40] sm:$0xff]
    %v273 = vld [vmem:[%s263 + $0x48] sm:$0xff]
    %v274 = vld [vmem:[%s263 + $0x50] sm:$0xff]
    %v275 = vld [vmem:[%s263 + $0x58] sm:$0xff]
    %v276 = vld [vmem:[%s263 + $0x60] sm:$0xff]
    %v277 = vld [vmem:[%s263 + $0x68] sm:$0xff]
    %v278 = vld [vmem:[%s263 + $0x70] sm:$0xff]
    %v279 = vld [vmem:[%s263 + $0x78] sm:$0xff]
    %v280 = vld [vmem:[%s263 + $0x80] sm:$0xff]
    %v281 = vld [vmem:[%s263 + $0x88] sm:$0xff]
    %v282 = vld [vmem:[%s263 + $0x90] sm:$0xff]
    %v283 = vld [vmem:[%s263 + $0x98] sm:$0xff]
    %v284 = vld [vmem:[%s263 + $0xa0] sm:$0xff]
    %v285 = vld [vmem:[%s263 + $0xa8] sm:$0xff]
    %v286 = vld [vmem:[%s263 + $0xb0] sm:$0xff]
    %v287 = vld [vmem:[%s263 + $0xb8] sm:$0xff]
    %v288 = vld [vmem:[%s263 + $0xc0] sm:$0xff]
    %v289 = vld [vmem:[%s263 + $0xc8] sm:$0xff]
    %v290 = vld [vmem:[%s263 + $0xd0] sm:$0xff]
    %v291 = vld [vmem:[%s263 + $0xd8] sm:$0xff]
    %v292 = vld [vmem:[%s263 + $0xe0] sm:$0xff]
    %v293 = vld [vmem:[%s263 + $0xe8] sm:$0xff]
    %v294 = vld [vmem:[%s263 + $0xf0] sm:$0xff]
    %v295 = vld [vmem:[%s263 + $0xf8] sm:$0xff]
    %296 = vmatpush.msra.mxu0 %v294
    %297 = vmatpush.msra.mxu0 %v292
    %298 = vmatpush.msra.mxu0 %v290
    %299 = vmatpush.msra.mxu0 %v288
    %300 = vmatpush.msra.mxu0 %v286
    %301 = vmatpush.msra.mxu0 %v284
    %302 = vmatpush.msra.mxu0 %v282
    %303 = vmatpush.msra.mxu0 %v280
    %304 = vmatpush.msra.mxu0 %v278
    %305 = vmatpush.msra.mxu0 %v276
    %306 = vmatpush.msra.mxu0 %v274
    %307 = vmatpush.msra.mxu0 %v272
    %308 = vmatpush.msra.mxu0 %v270
    %309 = vmatpush.msra.mxu0 %v268
    %310 = vmatpush.msra.mxu0 %v266
    %311 = vmatpush.msra.mxu0 %v264
    %312 = vmatmul.f32.gmra.mxu0 %v257
    %v313 = vpop.f32.mrf.mxu0
    %v314 = vadd.f32 0.0, %v313
    %315 = vmatmul.f32.gmra.mxu0 %v258
    %v316 = vpop.f32.mrf.mxu0
    %v317 = vadd.f32 0.0, %v316
    %318 = vmatmul.f32.gmra.mxu0 %v259
    %v319 = vpop.f32.mrf.mxu0
    %v320 = vadd.f32 0.0, %v319
    %321 = vmatmul.f32.gmra.mxu0 %v260
    %v322 = vpop.f32.mrf.mxu0
    %v323 = vadd.f32 0.0, %v322
    %324 = vmatmul.f32.gmra.mxu0 %v261
    %v325 = vpop.f32.mrf.mxu0
    %v326 = vadd.f32 0.0, %v325
    %327 = vmatmul.f32.gmra.mxu0 %v262
    %v328 = vpop.f32.mrf.mxu0
    %v329 = vadd.f32 0.0, %v328
    %330 = vdwg.mxu0
    %331 = vmatpush.msra.mxu0 %v295
    %332 = vmatpush.msra.mxu0 %v293
    %333 = vmatpush.msra.mxu0 %v291
    %334 = vmatpush.msra.mxu0 %v289
    %335 = vmatpush.msra.mxu0 %v287
    %336 = vmatpush.msra.mxu0 %v285
    %337 = vmatpush.msra.mxu0 %v283
    %338 = vmatpush.msra.mxu0 %v281
    %339 = vmatpush.msra.mxu0 %v279
    %340 = vmatpush.msra.mxu0 %v277
    %341 = vmatpush.msra.mxu0 %v275
    %342 = vmatpush.msra.mxu0 %v273
    %343 = vmatpush.msra.mxu0 %v271
    %344 = vmatpush.msra.mxu0 %v269
    %345 = vmatpush.msra.mxu0 %v267
    %346 = vmatpush.msra.mxu0 %v265
    %347 = vmatmul.f32.gmra.mxu0 %v257
    %v348 = vpop.f32.mrf.mxu0
    %v349 = vadd.f32 0.0, %v348
    %350 = vmatmul.f32.gmra.mxu0 %v258
    %v351 = vpop.f32.mrf.mxu0
    %v352 = vadd.f32 0.0, %v351
    %353 = vmatmul.f32.gmra.mxu0 %v259
    %v354 = vpop.f32.mrf.mxu0
    %v355 = vadd.f32 0.0, %v354
    %356 = vmatmul.f32.gmra.mxu0 %v260
    %v357 = vpop.f32.mrf.mxu0
    %v358 = vadd.f32 0.0, %v357
    %359 = vmatmul.f32.gmra.mxu0 %v261
    %v360 = vpop.f32.mrf.mxu0
    %v361 = vadd.f32 0.0, %v360
    %362 = vmatmul.f32.gmra.mxu0 %v262
    %v363 = vpop.f32.mrf.mxu0
    %v364 = vadd.f32 0.0, %v363
    %365 = vdwg.mxu0
    %v366 = vadd.f32 %v205, %v314
    %v367 = vadd.f32 %v240, %v349
    %v368 = vadd.f32 %v208, %v317
    %v369 = vadd.f32 %v243, %v352
    %v370 = vadd.f32 %v211, %v320
    %v371 = vadd.f32 %v246, %v355
    %v372 = vadd.f32 %v214, %v323
    %v373 = vadd.f32 %v249, %v358
    %v374 = vadd.f32 %v217, %v326
    %v375 = vadd.f32 %v252, %v361
    %v376 = vadd.f32 %v220, %v329
    %v377 = vadd.f32 %v255, %v364
    %v378 = vld [vmem:[%s4] ss:$2 sm:$0x3]
    %v380 = vperm.slane %v378, 0
    %v381 = vperm.slane %v378, 1
    %v384 = vmul.f32 %v366, %v380
    %v385 = vmul.f32 %v367, %v381
    %v386 = vmul.f32 %v368, %v380
    %v387 = vmul.f32 %v369, %v381
    %v388 = vmul.f32 %v370, %v380
    %v389 = vmul.f32 %v371, %v381
    %v390 = vmul.f32 %v372, %v380
    %v391 = vmul.f32 %v373, %v381
    %v392 = vmul.f32 %v374, %v380
    %v393 = vmul.f32 %v375, %v381
    %v394 = vmul.f32 %v376, %v380
    %v395 = vmul.f32 %v377, %v381
    %s396 = scalar_lea.vmem %s4, 1
    %v397 = vld [vmem:[%s396] ss:$2 sm:$0x3]
    %v399 = vperm.slane %v397, 0
    %v400 = vperm.slane %v397, 1
    %v403 = vadd.f32 %v384, %v399
    %v404 = vadd.f32 %v385, %v400
    %v405 = vadd.f32 %v386, %v399
    %v406 = vadd.f32 %v387, %v400
    %v407 = vadd.f32 %v388, %v399
    %v408 = vadd.f32 %v389, %v400
    %v409 = vadd.f32 %v390, %v399
    %v410 = vadd.f32 %v391, %v400
    %v411 = vadd.f32 %v392, %v399
    %v412 = vadd.f32 %v393, %v400
    %v413 = vadd.f32 %v394, %v399
    %v414 = vadd.f32 %v395, %v400
    %v415 = vmax.f32 %v403, 0.0
    %v416 = vmax.f32 %v404, 0.0
    %v417 = vmax.f32 %v405, 0.0
    %v418 = vmax.f32 %v406, 0.0
    %v419 = vmax.f32 %v407, 0.0
    %v420 = vmax.f32 %v408, 0.0
    %v421 = vmax.f32 %v409, 0.0
    %v422 = vmax.f32 %v410, 0.0
    %v423 = vmax.f32 %v411, 0.0
    %v424 = vmax.f32 %v412, 0.0
    %v425 = vmax.f32 %v413, 0.0
    %v426 = vmax.f32 %v414, 0.0
    %427 = vst [vmem:[#allocation3] sm:$0xff] %v415
    %vm428 = vcmask 130048
    %429 = vst.msk [vmem:[#allocation3 + $0x8] sm:$0xff] %vm428, %v416
    %430 = vst [vmem:[#allocation3 + $0x10] sm:$0xff] %v417
    %431 = vst.msk [vmem:[#allocation3 + $0x18] sm:$0xff] %vm428, %v418
    %432 = vst [vmem:[#allocation3 + $0x20] sm:$0xff] %v419
    %433 = vst.msk [vmem:[#allocation3 + $0x28] sm:$0xff] %vm428, %v420
    %434 = vst [vmem:[#allocation3 + $0x30] sm:$0xff] %v421
    %435 = vst.msk [vmem:[#allocation3 + $0x38] sm:$0xff] %vm428, %v422
    %436 = vst [vmem:[#allocation3 + $0x40] sm:$0xff] %v423
    %437 = vst.msk [vmem:[#allocation3 + $0x48] sm:$0xff] %vm428, %v424
    %438 = vst [vmem:[#allocation3 + $0x50] sm:$0x3] %v425
    %vm439 = vcmask 123904
    %440 = vst.msk [vmem:[#allocation3 + $0x58] sm:$0x3] %vm439, %v426
    %v441 = vld [vmem:[#allocation3] sm:$0xff]
    %v442 = vld [vmem:[#allocation3 + $0x8] sm:$0xff]
    %v443 = vld [vmem:[#allocation3 + $0x10] sm:$0xff]
    %v444 = vld [vmem:[#allocation3 + $0x18] sm:$0xff]
    %v445 = vld [vmem:[#allocation3 + $0x20] sm:$0xff]
    %v446 = vld [vmem:[#allocation3 + $0x28] sm:$0xff]
    %v447 = vld [vmem:[#allocation3 + $0x30] sm:$0xff]
    %v448 = vld [vmem:[#allocation3 + $0x38] sm:$0xff]
    %v449 = vld [vmem:[#allocation3 + $0x40] sm:$0xff]
    %v450 = vld [vmem:[#allocation3 + $0x48] sm:$0xff]
    %v451 = vld [vmem:[%s3] sm:$0xff]
    %v452 = vld [vmem:[%s3 + $0x8] sm:$0xff]
    %v453 = vld [vmem:[%s3 + $0x10] sm:$0xff]
    %v454 = vld [vmem:[%s3 + $0x18] sm:$0xff]
    %v455 = vld [vmem:[%s3 + $0x20] sm:$0xff]
    %v456 = vld [vmem:[%s3 + $0x28] sm:$0xff]
    %v457 = vld [vmem:[%s3 + $0x30] sm:$0xff]
    %v458 = vld [vmem:[%s3 + $0x38] sm:$0xff]
    %v459 = vld [vmem:[%s3 + $0x40] sm:$0xff]
    %v460 = vld [vmem:[%s3 + $0x48] sm:$0xff]
    %v461 = vld [vmem:[%s3 + $0x50] sm:$0xff]
    %v462 = vld [vmem:[%s3 + $0x58] sm:$0xff]
    %v463 = vld [vmem:[%s3 + $0x60] sm:$0xff]
    %v464 = vld [vmem:[%s3 + $0x68] sm:$0xff]
    %v465 = vld [vmem:[%s3 + $0x70] sm:$0xff]
    %v466 = vld [vmem:[%s3 + $0x78] sm:$0xff]
    %v467 = vld [vmem:[%s3 + $0x80] sm:$0xff]
    %v468 = vld [vmem:[%s3 + $0x88] sm:$0xff]
    %v469 = vld [vmem:[#allocation3] sm:$0xfe]
    %v470 = vld [vmem:[#allocation3 + $0x8] sm:$0xfe]
    %v471 = vld [vmem:[#allocation3 + $0x50] sm:$0x1]
    %v472 = vld [vmem:[#allocation3 + $0x58] sm:$0x1]
    %s473 = scalar_lea.vmem %s3, 144
    %v474 = vld [vmem:[%s473] sm:$0xff]
    %v475 = vld [vmem:[%s473 + $0x8] sm:$0xff]
    %v476 = vld [vmem:[%s473 + $0x10] sm:$0xff]
    %v477 = vld [vmem:[%s473 + $0x18] sm:$0xff]
    %v478 = vld [vmem:[%s473 + $0x20] sm:$0xff]
    %v479 = vld [vmem:[%s473 + $0x28] sm:$0xff]
    %v480 = vld [vmem:[%s473 + $0x30] sm:$0xff]
    %v481 = vld [vmem:[%s473 + $0x38] sm:$0xff]
    %v482 = vld [vmem:[%s473 + $0x40] sm:$0xff]
    %v483 = vld [vmem:[%s473 + $0x48] sm:$0xff]
    %v484 = vld [vmem:[%s473 + $0x50] sm:$0xff]
    %v485 = vld [vmem:[%s473 + $0x58] sm:$0xff]
    %v486 = vld [vmem:[%s473 + $0x60] sm:$0xff]
    %v487 = vld [vmem:[%s473 + $0x68] sm:$0xff]
    %v488 = vld [vmem:[%s473 + $0x70] sm:$0xff]
    %v489 = vld [vmem:[%s473 + $0x78] sm:$0xff]
    %v490 = vld [vmem:[%s473 + $0x80] sm:$0xff]
    %v491 = vld [vmem:[%s473 + $0x88] sm:$0xff]
    %vm504 = vcmask 1046528
    %v505 = vrot.slane %v469, 1
    %v506 = vrot.slane %v443, 1
    %v507 = vsel %vm504, %v505, %v506
    %v508 = vrot.slane %v470, 1
    %v509 = vrot.slane %v444, 1
    %v510 = vsel %vm504, %v508, %v509
    %v511 = vrot.slane %v445, 1
    %v512 = vsel %vm504, %v506, %v511
    %v513 = vrot.slane %v446, 1
    %v514 = vsel %vm504, %v509, %v513
    %v515 = vrot.slane %v447, 1
    %v516 = vsel %vm504, %v511, %v515
    %v517 = vrot.slane %v448, 1
    %v518 = vsel %vm504, %v513, %v517
    %v519 = vrot.slane %v449, 1
    %v520 = vsel %vm504, %v515, %v519
    %v521 = vrot.slane %v450, 1
    %v522 = vsel %vm504, %v517, %v521
    %v523 = vrot.slane %v471, 1
    %v524 = vsel %vm504, %v519, %v523
    %v525 = vrot.slane %v472, 1
    %v526 = vsel %vm504, %v521, %v525
    %v532 = vsel %vm428, %v510, 0
    %v534 = vsel %vm428, %v514, 0
    %v536 = vsel %vm428, %v518, 0
    %v538 = vsel %vm428, %v522, 0
    %v540 = vsel %vm428, %v526, 0
    %542 = vmatpush.msra.mxu0 %v489
    %543 = vmatpush.msra.mxu0 %v488
    %544 = vmatpush.msra.mxu0 %v487
    %545 = vmatpush.msra.mxu0 %v486
    %546 = vmatpush.msra.mxu0 %v485
    %547 = vmatpush.msra.mxu0 %v484
    %548 = vmatpush.msra.mxu0 %v483
    %549 = vmatpush.msra.mxu0 %v482
    %550 = vmatpush.msra.mxu0 %v481
    %551 = vmatpush.msra.mxu0 %v480
    %552 = vmatpush.msra.mxu0 %v479
    %553 = vmatpush.msra.mxu0 %v478
    %554 = vmatpush.msra.mxu0 %v477
    %555 = vmatpush.msra.mxu0 %v476
    %556 = vmatpush.msra.mxu0 %v475
    %557 = vmatpush.msra.mxu0 %v474
    %558 = vmatmul.f32.gmra.mxu0 %v507
    %v559 = vpop.f32.mrf.mxu0
    %v560 = vadd.f32 0.0, %v559
    %561 = vmatmul.f32.gmra.mxu0 %v512
    %v562 = vpop.f32.mrf.mxu0
    %v563 = vadd.f32 0.0, %v562
    %564 = vmatmul.f32.gmra.mxu0 %v516
    %v565 = vpop.f32.mrf.mxu0
    %566 = vmatmul.f32.gmra.mxu0 %v520
    %v567 = vpop.f32.mrf.mxu0
    %v568 = vadd.f32 0.0, %v567
    %569 = vmatmul.f32.gmra.mxu0 %v524
    %v570 = vpop.f32.mrf.mxu0
    %v571 = vadd.f32 0.0, %v570
    %572 = vdwg.mxu0
    %573 = vmatpush.msra.mxu0 0.0
    %574 = vmatpush.msra.mxu0 0.0
    %575 = vmatpush.msra.mxu0 0.0
    %576 = vmatpush.msra.mxu0 0.0
    %577 = vmatpush.msra.mxu0 0.0
    %578 = vmatpush.msra.mxu0 0.0
    %579 = vmatpush.msra.mxu0 0.0
    %580 = vmatpush.msra.mxu0 0.0
    %581 = vmatpush.msra.mxu0 0.0
    %582 = vmatpush.msra.mxu0 0.0
    %583 = vmatpush.msra.mxu0 0.0
    %584 = vmatpush.msra.mxu0 0.0
    %585 = vmatpush.msra.mxu0 0.0
    %586 = vmatpush.msra.mxu0 0.0
    %587 = vmatpush.msra.mxu0 %v491
    %588 = vmatpush.msra.mxu0 %v490
    %589 = vmatmul.f32.gmra.mxu0 %v532
    %v590 = vpop.f32.mrf.mxu0
    %v591 = vadd.f32 %v560, %v590
    %592 = vmatmul.f32.gmra.mxu0 %v534
    %v593 = vpop.f32.mrf.mxu0
    %v594 = vadd.f32 %v563, %v593
    %595 = vmatmul.f32.gmra.mxu0 %v536
    %v596 = vpop.f32.mrf.mxu0
    %597 = vmatmul.f32.gmra.mxu0 %v538
    %v598 = vpop.f32.mrf.mxu0
    %v599 = vadd.f32 %v568, %v598
    %600 = vmatmul.f32.gmra.mxu0 %v540
    %v601 = vpop.f32.mrf.mxu0
    %v602 = vadd.f32 %v571, %v601
    %603 = vdwg.mxu0
    %v605 = vsel %vm428, %v442, 0
    %v607 = vsel %vm428, %v444, 0
    %v609 = vsel %vm428, %v446, 0
    %v611 = vsel %vm428, %v448, 0
    %v613 = vsel %vm428, %v450, 0
    %615 = vmatpush.msra.mxu0 %v466
    %616 = vmatpush.msra.mxu0 %v465
    %617 = vmatpush.msra.mxu0 %v464
    %618 = vmatpush.msra.mxu0 %v463
    %619 = vmatpush.msra.mxu0 %v462
    %620 = vmatpush.msra.mxu0 %v461
    %621 = vmatpush.msra.mxu0 %v460
    %622 = vmatpush.msra.mxu0 %v459
    %623 = vmatpush.msra.mxu0 %v458
    %624 = vmatpush.msra.mxu0 %v457
    %625 = vmatpush.msra.mxu0 %v456
    %626 = vmatpush.msra.mxu0 %v455
    %627 = vmatpush.msra.mxu0 %v454
    %628 = vmatpush.msra.mxu0 %v453
    %629 = vmatpush.msra.mxu0 %v452
    %630 = vmatpush.msra.mxu0 %v451
    %631 = vmatmul.f32.gmra.mxu0 %v441
    %v632 = vpop.f32.mrf.mxu0
    %v633 = vadd.f32 %v591, %v632
    %634 = vmatmul.f32.gmra.mxu0 %v443
    %v635 = vpop.f32.mrf.mxu0
    %v636 = vadd.f32 %v594, %v635
    %637 = vmatmul.f32.gmra.mxu0 %v445
    %v638 = vpop.f32.mrf.mxu0
    %639 = vmatmul.f32.gmra.mxu0 %v447
    %v640 = vpop.f32.mrf.mxu0
    %v641 = vadd.f32 %v599, %v640
    %642 = vmatmul.f32.gmra.mxu0 %v449
    %v643 = vpop.f32.mrf.mxu0
    %v644 = vadd.f32 %v602, %v643
    %645 = vdwg.mxu0
    %646 = vmatpush.msra.mxu0 0.0
    %647 = vmatpush.msra.mxu0 0.0
    %648 = vmatpush.msra.mxu0 0.0
    %649 = vmatpush.msra.mxu0 0.0
    %650 = vmatpush.msra.mxu0 0.0
    %651 = vmatpush.msra.mxu0 0.0
    %652 = vmatpush.msra.mxu0 0.0
    %653 = vmatpush.msra.mxu0 0.0
    %654 = vmatpush.msra.mxu0 0.0
    %655 = vmatpush.msra.mxu0 0.0
    %656 = vmatpush.msra.mxu0 0.0
    %657 = vmatpush.msra.mxu0 0.0
    %658 = vmatpush.msra.mxu0 0.0
    %659 = vmatpush.msra.mxu0 0.0
    %660 = vmatpush.msra.mxu0 %v468
    %661 = vmatpush.msra.mxu0 %v467
    %662 = vmatmul.f32.gmra.mxu0 %v605
    %v663 = vpop.f32.mrf.mxu0
    %v664 = vadd.f32 %v633, %v663
    %665 = vmatmul.f32.gmra.mxu0 %v607
    %v666 = vpop.f32.mrf.mxu0
    %v667 = vadd.f32 %v636, %v666
    %668 = vmatmul.f32.gmra.mxu0 %v609
    %v669 = vpop.f32.mrf.mxu0
    %670 = vmatmul.f32.gmra.mxu0 %v611
    %v671 = vpop.f32.mrf.mxu0
    %v672 = vadd.f32 %v641, %v671
    %673 = vmatmul.f32.gmra.mxu0 %v613
    %v674 = vpop.f32.mrf.mxu0
    %v675 = vadd.f32 %v644, %v674
    %676 = vdwg.mxu0
    %v677 = vld [vmem:[#allocation3] sm:$0xfc]
    %v678 = vld [vmem:[#allocation3 + $0x8] sm:$0xfc]
    %v679 = vld [vmem:[#allocation3 + $0x50] sm:$0x3]
    %v680 = vld [vmem:[#allocation3 + $0x58] sm:$0x3]
    %s681 = scalar_lea.vmem %s3, 288
    %v682 = vld [vmem:[%s681] sm:$0xff]
    %v683 = vld [vmem:[%s681 + $0x8] sm:$0xff]
    %v684 = vld [vmem:[%s681 + $0x10] sm:$0xff]
    %v685 = vld [vmem:[%s681 + $0x18] sm:$0xff]
    %v686 = vld [vmem:[%s681 + $0x20] sm:$0xff]
    %v687 = vld [vmem:[%s681 + $0x28] sm:$0xff]
    %v688 = vld [vmem:[%s681 + $0x30] sm:$0xff]
    %v689 = vld [vmem:[%s681 + $0x38] sm:$0xff]
    %v690 = vld [vmem:[%s681 + $0x40] sm:$0xff]
    %v691 = vld [vmem:[%s681 + $0x48] sm:$0xff]
    %v692 = vld [vmem:[%s681 + $0x50] sm:$0xff]
    %v693 = vld [vmem:[%s681 + $0x58] sm:$0xff]
    %v694 = vld [vmem:[%s681 + $0x60] sm:$0xff]
    %v695 = vld [vmem:[%s681 + $0x68] sm:$0xff]
    %v696 = vld [vmem:[%s681 + $0x70] sm:$0xff]
    %v697 = vld [vmem:[%s681 + $0x78] sm:$0xff]
    %v698 = vld [vmem:[%s681 + $0x80] sm:$0xff]
    %v699 = vld [vmem:[%s681 + $0x88] sm:$0xff]
    %vm704 = vcmask 1045504
    %v705 = vrot.slane %v677, 2
    %v706 = vrot.slane %v443, 2
    %v707 = vsel %vm704, %v705, %v706
    %v708 = vrot.slane %v678, 2
    %v709 = vrot.slane %v444, 2
    %v710 = vsel %vm704, %v708, %v709
    %v711 = vrot.slane %v445, 2
    %v712 = vsel %vm704, %v706, %v711
    %v713 = vrot.slane %v446, 2
    %v714 = vsel %vm704, %v709, %v713
    %v715 = vrot.slane %v447, 2
    %v716 = vsel %vm704, %v711, %v715
    %v717 = vrot.slane %v448, 2
    %v718 = vsel %vm704, %v713, %v717
    %v719 = vrot.slane %v449, 2
    %v720 = vsel %vm704, %v715, %v719
    %v721 = vrot.slane %v450, 2
    %v722 = vsel %vm704, %v717, %v721
    %v723 = vrot.slane %v679, 2
    %v724 = vsel %vm704, %v719, %v723
    %v725 = vrot.slane %v680, 2
    %v726 = vsel %vm704, %v721, %v725
    %v732 = vsel %vm428, %v710, 0
    %v734 = vsel %vm428, %v714, 0
    %v736 = vsel %vm428, %v718, 0
    %v738 = vsel %vm428, %v722, 0
    %v740 = vsel %vm428, %v726, 0
    %742 = vmatpush.msra.mxu0 %v697
    %743 = vmatpush.msra.mxu0 %v696
    %744 = vmatpush.msra.mxu0 %v695
    %745 = vmatpush.msra.mxu0 %v694
    %746 = vmatpush.msra.mxu0 %v693
    %747 = vmatpush.msra.mxu0 %v692
    %748 = vmatpush.msra.mxu0 %v691
    %749 = vmatpush.msra.mxu0 %v690
    %750 = vmatpush.msra.mxu0 %v689
    %751 = vmatpush.msra.mxu0 %v688
    %752 = vmatpush.msra.mxu0 %v687
    %753 = vmatpush.msra.mxu0 %v686
    %754 = vmatpush.msra.mxu0 %v685
    %755 = vmatpush.msra.mxu0 %v684
    %756 = vmatpush.msra.mxu0 %v683
    %757 = vmatpush.msra.mxu0 %v682
    %758 = vmatmul.f32.gmra.mxu0 %v707
    %v759 = vpop.f32.mrf.mxu0
    %v760 = vadd.f32 0.0, %v759
    %761 = vmatmul.f32.gmra.mxu0 %v712
    %v762 = vpop.f32.mrf.mxu0
    %v763 = vadd.f32 0.0, %v762
    %764 = vmatmul.f32.gmra.mxu0 %v716
    %v765 = vpop.f32.mrf.mxu0
    %766 = vmatmul.f32.gmra.mxu0 %v720
    %v767 = vpop.f32.mrf.mxu0
    %v768 = vadd.f32 0.0, %v767
    %769 = vmatmul.f32.gmra.mxu0 %v724
    %v770 = vpop.f32.mrf.mxu0
    %v771 = vadd.f32 0.0, %v770
    %772 = vdwg.mxu0
    %773 = vmatpush.msra.mxu0 0.0
    %774 = vmatpush.msra.mxu0 0.0
    %775 = vmatpush.msra.mxu0 0.0
    %776 = vmatpush.msra.mxu0 0.0
    %777 = vmatpush.msra.mxu0 0.0
    %778 = vmatpush.msra.mxu0 0.0
    %779 = vmatpush.msra.mxu0 0.0
    %780 = vmatpush.msra.mxu0 0.0
    %781 = vmatpush.msra.mxu0 0.0
    %782 = vmatpush.msra.mxu0 0.0
    %783 = vmatpush.msra.mxu0 0.0
    %784 = vmatpush.msra.mxu0 0.0
    %785 = vmatpush.msra.mxu0 0.0
    %786 = vmatpush.msra.mxu0 0.0
    %787 = vmatpush.msra.mxu0 %v699
    %788 = vmatpush.msra.mxu0 %v698
    %789 = vmatmul.f32.gmra.mxu0 %v732
    %v790 = vpop.f32.mrf.mxu0
    %v791 = vadd.f32 %v760, %v790
    %792 = vmatmul.f32.gmra.mxu0 %v734
    %v793 = vpop.f32.mrf.mxu0
    %v794 = vadd.f32 %v763, %v793
    %795 = vmatmul.f32.gmra.mxu0 %v736
    %v796 = vpop.f32.mrf.mxu0
    %797 = vmatmul.f32.gmra.mxu0 %v738
    %v798 = vpop.f32.mrf.mxu0
    %v799 = vadd.f32 %v768, %v798
    %800 = vmatmul.f32.gmra.mxu0 %v740
    %v801 = vpop.f32.mrf.mxu0
    %v802 = vadd.f32 %v771, %v801
    %803 = vdwg.mxu0
    %v804 = vadd.f32 %v664, %v791
    %v805 = vadd.f32 %v667, %v794
    %v806 = vadd.f32 %v672, %v799
    %v807 = vadd.f32 %v675, %v802
    %v808 = vld [vmem:[%s5] sm:$0x1]
    %v809 = vld [vmem:[%s5 + $0x1] sm:$0x1]
    %v810 = vperm.slane %v808, 0
    %v811 = vmul.f32 %v804, %v810
    %v812 = vmul.f32 %v805, %v810
    %v813 = vperm.slane %v809, 0
    %v814 = vadd.f32 %v811, %v813
    %v815 = vadd.f32 %v812, %v813
    %v816 = vld [vmem:[%s1] sm:$0xff]
    %v817 = vld [vmem:[%s1 + $0x8] sm:$0xff]
    %v818 = vadd.f32 %v814, %v816
    %v819 = vadd.f32 %v815, %v817
    %v820 = vmul.f32 %v818, 0.5
    %v821 = vmul.f32 %v819, 0.5
    %v822 = vmax.f32 %v820, 0.0
    %v823 = vmax.f32 %v821, 0.0
    %824 = vst [vmem:[#allocation2 + $0x8] sm:$0xff] %v822
    %825 = vst [vmem:[#allocation2 + $0x10] sm:$0xff] %v823
    %v826 = vmul.f32 %v806, %v810
    %v827 = vmul.f32 %v807, %v810
    %v828 = vadd.f32 %v826, %v813
    %v829 = vadd.f32 %v827, %v813
    %s830 = scalar_lea.vmem %s1, 16
    %v831 = vld [vmem:[%s830] sm:$0xff]
    %v832 = vld [vmem:[%s830 + $0x8] sm:$0xff]
    %v833 = vadd.f32 %v828, %v831
    %v834 = vadd.f32 %v829, %v832
    %v835 = vmul.f32 %v833, 0.5
    %v836 = vmul.f32 %v834, 0.5
    %v837 = vmax.f32 %v835, 0.0
    %v838 = vmax.f32 %v836, 0.0
    %839 = vst [vmem:[#allocation2 + $0x20] sm:$0xff] %v837
    %840 = vst [vmem:[#allocation2 + $0x28] sm:$0xff] %v838
    %v841 = vld [vmem:[#allocation2 + $0x6] sm:$0xff]
    %v842 = vld [vmem:[#allocation2 + $0xe] sm:$0xff]
    %v843 = vld [vmem:[#allocation2 + $0x16] sm:$0xff]
    %v844 = vld [vmem:[#allocation2 + $0x1e] sm:$0xff]
    %v845 = vld [vmem:[#allocation2 + $0x26] sm:$0xff]
    %v846 = vld [vmem:[#allocation2 + $0x2e] sm:$0x3]
    %s847 = scalar_lea.vmem %s2, 768
    %v848 = vld [vmem:[%s847] sm:$0xff]
    %v849 = vld [vmem:[%s847 + $0x8] sm:$0xff]
    %v850 = vld [vmem:[%s847 + $0x10] sm:$0xff]
    %v851 = vld [vmem:[%s847 + $0x18] sm:$0xff]
    %v852 = vld [vmem:[%s847 + $0x20] sm:$0xff]
    %v853 = vld [vmem:[%s847 + $0x28] sm:$0xff]
    %v854 = vld [vmem:[%s847 + $0x30] sm:$0xff]
    %v855 = vld [vmem:[%s847 + $0x38] sm:$0xff]
    %v856 = vld [vmem:[%s847 + $0x40] sm:$0xff]
    %v857 = vld [vmem:[%s847 + $0x48] sm:$0xff]
    %v858 = vld [vmem:[%s847 + $0x50] sm:$0xff]
    %v859 = vld [vmem:[%s847 + $0x58] sm:$0xff]
    %v860 = vld [vmem:[%s847 + $0x60] sm:$0xff]
    %v861 = vld [vmem:[%s847 + $0x68] sm:$0xff]
    %v862 = vld [vmem:[%s847 + $0x70] sm:$0xff]
    %v863 = vld [vmem:[%s847 + $0x78] sm:$0xff]
    %v864 = vld [vmem:[%s847 + $0x80] sm:$0xff]
    %v865 = vld [vmem:[%s847 + $0x88] sm:$0xff]
    %v866 = vld [vmem:[%s847 + $0x90] sm:$0xff]
    %v867 = vld [vmem:[%s847 + $0x98] sm:$0xff]
    %v868 = vld [vmem:[%s847 + $0xa0] sm:$0xff]
    %v869 = vld [vmem:[%s847 + $0xa8] sm:$0xff]
    %v870 = vld [vmem:[%s847 + $0xb0] sm:$0xff]
    %v871 = vld [vmem:[%s847 + $0xb8] sm:$0xff]
    %v872 = vld [vmem:[%s847 + $0xc0] sm:$0xff]
    %v873 = vld [vmem:[%s847 + $0xc8] sm:$0xff]
    %v874 = vld [vmem:[%s847 + $0xd0] sm:$0xff]
    %v875 = vld [vmem:[%s847 + $0xd8] sm:$0xff]
    %v876 = vld [vmem:[%s847 + $0xe0] sm:$0xff]
    %v877 = vld [vmem:[%s847 + $0xe8] sm:$0xff]
    %v878 = vld [vmem:[%s847 + $0xf0] sm:$0xff]
    %v879 = vld [vmem:[%s847 + $0xf8] sm:$0xff]
    %v880 = vld [vmem:[#allocation2 + $0x7] sm:$0xff]
    %v881 = vld [vmem:[#allocation2 + $0xf] sm:$0xff]
    %v882 = vld [vmem:[#allocation2 + $0x17] sm:$0xff]
    %v883 = vld [vmem:[#allocation2 + $0x1f] sm:$0xff]
    %v884 = vld [vmem:[#allocation2 + $0x27] sm:$0xff]
    %v885 = vld [vmem:[#allocation2 + $0x2f] sm:$0x3]
    %s886 = scalar_lea.vmem %s2, 1024
    %v887 = vld [vmem:[%s886] sm:$0xff]
    %v888 = vld [vmem:[%s886 + $0x8] sm:$0xff]
    %v889 = vld [vmem:[%s886 + $0x10] sm:$0xff]
    %v890 = vld [vmem:[%s886 + $0x18] sm:$0xff]
    %v891 = vld [vmem:[%s886 + $0x20] sm:$0xff]
    %v892 = vld [vmem:[%s886 + $0x28] sm:$0xff]
    %v893 = vld [vmem:[%s886 + $0x30] sm:$0xff]
    %v894 = vld [vmem:[%s886 + $0x38] sm:$0xff]
    %v895 = vld [vmem:[%s886 + $0x40] sm:$0xff]
    %v896 = vld [vmem:[%s886 + $0x48] sm:$0xff]
    %v897 = vld [vmem:[%s886 + $0x50] sm:$0xff]
    %v898 = vld [vmem:[%s886 + $0x58] sm:$0xff]
    %v899 = vld [vmem:[%s886 + $0x60] sm:$0xff]
    %v900 = vld [vmem:[%s886 + $0x68] sm:$0xff]
    %v901 = vld [vmem:[%s886 + $0x70] sm:$0xff]
    %v902 = vld [vmem:[%s886 + $0x78] sm:$0xff]
    %v903 = vld [vmem:[%s886 + $0x80] sm:$0xff]
    %v904 = vld [vmem:[%s886 + $0x88] sm:$0xff]
    %v905 = vld [vmem:[%s886 + $0x90] sm:$0xff]
    %v906 = vld [vmem:[%s886 + $0x98] sm:$0xff]
    %v907 = vld [vmem:[%s886 + $0xa0] sm:$0xff]
    %v908 = vld [vmem:[%s886 + $0xa8] sm:$0xff]
    %v909 = vld [vmem:[%s886 + $0xb0] sm:$0xff]
    %v910 = vld [vmem:[%s886 + $0xb8] sm:$0xff]
    %v911 = vld [vmem:[%s886 + $0xc0] sm:$0xff]
    %v912 = vld [vmem:[%s886 + $0xc8] sm:$0xff]
    %v913 = vld [vmem:[%s886 + $0xd0] sm:$0xff]
    %v914 = vld [vmem:[%s886 + $0xd8] sm:$0xff]
    %v915 = vld [vmem:[%s886 + $0xe0] sm:$0xff]
    %v916 = vld [vmem:[%s886 + $0xe8] sm:$0xff]
    %v917 = vld [vmem:[%s886 + $0xf0] sm:$0xff]
    %v918 = vld [vmem:[%s886 + $0xf8] sm:$0xff]
    %919 = vmatpush.msra.mxu0 %v917
    %920 = vmatpush.msra.mxu0 %v915
    %921 = vmatpush.msra.mxu0 %v913
    %922 = vmatpush.msra.mxu0 %v911
    %923 = vmatpush.msra.mxu0 %v909
    %924 = vmatpush.msra.mxu0 %v907
    %925 = vmatpush.msra.mxu0 %v905
    %926 = vmatpush.msra.mxu0 %v903
    %927 = vmatpush.msra.mxu0 %v901
    %928 = vmatpush.msra.mxu0 %v899
    %929 = vmatpush.msra.mxu0 %v897
    %930 = vmatpush.msra.mxu0 %v895
    %931 = vmatpush.msra.mxu0 %v893
    %932 = vmatpush.msra.mxu0 %v891
    %933 = vmatpush.msra.mxu0 %v889
    %934 = vmatpush.msra.mxu0 %v887
    %935 = vmatmul.f32.gmra.mxu0 %v880
    %v936 = vpop.f32.mrf.mxu0
    %v937 = vadd.f32 0.0, %v936
    %938 = vmatmul.f32.gmra.mxu0 %v881
    %v939 = vpop.f32.mrf.mxu0
    %v940 = vadd.f32 0.0, %v939
    %941 = vmatmul.f32.gmra.mxu0 %v882
    %v942 = vpop.f32.mrf.mxu0
    %v943 = vadd.f32 0.0, %v942
    %944 = vmatmul.f32.gmra.mxu0 %v883
    %v945 = vpop.f32.mrf.mxu0
    %v946 = vadd.f32 0.0, %v945
    %947 = vmatmul.f32.gmra.mxu0 %v884
    %v948 = vpop.f32.mrf.mxu0
    %v949 = vadd.f32 0.0, %v948
    %950 = vmatmul.f32.gmra.mxu0 %v885
    %v951 = vpop.f32.mrf.mxu0
    %v952 = vadd.f32 0.0, %v951
    %953 = vdwg.mxu0
    %954 = vmatpush.msra.mxu0 %v918
    %955 = vmatpush.msra.mxu0 %v916
    %956 = vmatpush.msra.mxu0 %v914
    %957 = vmatpush.msra.mxu0 %v912
    %958 = vmatpush.msra.mxu0 %v910
    %959 = vmatpush.msra.mxu0 %v908
    %960 = vmatpush.msra.mxu0 %v906
    %961 = vmatpush.msra.mxu0 %v904
    %962 = vmatpush.msra.mxu0 %v902
    %963 = vmatpush.msra.mxu0 %v900
    %964 = vmatpush.msra.mxu0 %v898
    %965 = vmatpush.msra.mxu0 %v896
    %966 = vmatpush.msra.mxu0 %v894
    %967 = vmatpush.msra.mxu0 %v892
    %968 = vmatpush.msra.mxu0 %v890
    %969 = vmatpush.msra.mxu0 %v888
    %970 = vmatmul.f32.gmra.mxu0 %v880
    %v971 = vpop.f32.mrf.mxu0
    %v972 = vadd.f32 0.0, %v971
    %973 = vmatmul.f32.gmra.mxu0 %v881
    %v974 = vpop.f32.mrf.mxu0
    %v975 = vadd.f32 0.0, %v974
    %976 = vmatmul.f32.gmra.mxu0 %v882
    %v977 = vpop.f32.mrf.mxu0
    %v978 = vadd.f32 0.0, %v977
    %979 = vmatmul.f32.gmra.mxu0 %v883
    %v980 = vpop.f32.mrf.mxu0
    %v981 = vadd.f32 0.0, %v980
    %982 = vmatmul.f32.gmra.mxu0 %v884
    %v983 = vpop.f32.mrf.mxu0
    %v984 = vadd.f32 0.0, %v983
    %985 = vmatmul.f32.gmra.mxu0 %v885
    %v986 = vpop.f32.mrf.mxu0
    %v987 = vadd.f32 0.0, %v986
    %988 = vdwg.mxu0
    %989 = vmatpush.msra.mxu0 %v878
    %990 = vmatpush.msra.mxu0 %v876
    %991 = vmatpush.msra.mxu0 %v874
    %992 = vmatpush.msra.mxu0 %v872
    %993 = vmatpush.msra.mxu0 %v870
    %994 = vmatpush.msra.mxu0 %v868
    %995 = vmatpush.msra.mxu0 %v866
    %996 = vmatpush.msra.mxu0 %v864
    %997 = vmatpush.msra.mxu0 %v862
    %998 = vmatpush.msra.mxu0 %v860
    %999 = vmatpush.msra.mxu0 %v858
    %1000 = vmatpush.msra.mxu0 %v856
    %1001 = vmatpush.msra.mxu0 %v854
    %1002 = vmatpush.msra.mxu0 %v852
    %1003 = vmatpush.msra.mxu0 %v850
    %1004 = vmatpush.msra.mxu0 %v848
    %1005 = vmatmul.f32.gmra.mxu0 %v841
    %v1006 = vpop.f32.mrf.mxu0
    %v1007 = vadd.f32 %v937, %v1006
    %1008 = vmatmul.f32.gmra.mxu0 %v842
    %v1009 = vpop.f32.mrf.mxu0
    %v1010 = vadd.f32 %v940, %v1009
    %1011 = vmatmul.f32.gmra.mxu0 %v843
    %v1012 = vpop.f32.mrf.mxu0
    %v1013 = vadd.f32 %v943, %v1012
    %1014 = vmatmul.f32.gmra.mxu0 %v844
    %v1015 = vpop.f32.mrf.mxu0
    %v1016 = vadd.f32 %v946, %v1015
    %1017 = vmatmul.f32.gmra.mxu0 %v845
    %v1018 = vpop.f32.mrf.mxu0
    %v1019 = vadd.f32 %v949, %v1018
    %1020 = vmatmul.f32.gmra.mxu0 %v846
    %v1021 = vpop.f32.mrf.mxu0
    %v1022 = vadd.f32 %v952, %v1021
    %1023 = vdwg.mxu0
    %1024 = vmatpush.msra.mxu0 %v879
    %1025 = vmatpush.msra.mxu0 %v877
    %1026 = vmatpush.msra.mxu0 %v875
    %1027 = vmatpush.msra.mxu0 %v873
    %1028 = vmatpush.msra.mxu0 %v871
    %1029 = vmatpush.msra.mxu0 %v869
    %1030 = vmatpush.msra.mxu0 %v867
    %1031 = vmatpush.msra.mxu0 %v865
    %1032 = vmatpush.msra.mxu0 %v863
    %1033 = vmatpush.msra.mxu0 %v861
    %1034 = vmatpush.msra.mxu0 %v859
    %1035 = vmatpush.msra.mxu0 %v857
    %1036 = vmatpush.msra.mxu0 %v855
    %1037 = vmatpush.msra.mxu0 %v853
    %1038 = vmatpush.msra.mxu0 %v851
    %1039 = vmatpush.msra.mxu0 %v849
    %1040 = vmatmul.f32.gmra.mxu0 %v841
    %v1041 = vpop.f32.mrf.mxu0
    %v1042 = vadd.f32 %v972, %v1041
    %1043 = vmatmul.f32.gmra.mxu0 %v842
    %v1044 = vpop.f32.mrf.mxu0
    %v1045 = vadd.f32 %v975, %v1044
    %1046 = vmatmul.f32.gmra.mxu0 %v843
    %v1047 = vpop.f32.mrf.mxu0
    %v1048 = vadd.f32 %v978, %v1047
    %1049 = vmatmul.f32.gmra.mxu0 %v844
    %v1050 = vpop.f32.mrf.mxu0
    %v1051 = vadd.f32 %v981, %v1050
    %1052 = vmatmul.f32.gmra.mxu0 %v845
    %v1053 = vpop.f32.mrf.mxu0
    %v1054 = vadd.f32 %v984, %v1053
    %1055 = vmatmul.f32.gmra.mxu0 %v846
    %v1056 = vpop.f32.mrf.mxu0
    %v1057 = vadd.f32 %v987, %v1056
    %1058 = vdwg.mxu0
    %v1059 = vld [vmem:[#allocation2 + $0x8] sm:$0xff]
    %v1060 = vld [vmem:[#allocation2 + $0x10] sm:$0xff]
    %v1061 = vld [vmem:[#allocation2 + $0x18] sm:$0xff]
    %v1062 = vld [vmem:[#allocation2 + $0x20] sm:$0xff]
    %v1063 = vld [vmem:[#allocation2 + $0x28] sm:$0xff]
    %v1064 = vld [vmem:[#allocation2 + $0x30] sm:$0x3]
    %s1065 = scalar_lea.vmem %s2, 1280
    %v1066 = vld [vmem:[%s1065] sm:$0xff]
    %v1067 = vld [vmem:[%s1065 + $0x8] sm:$0xff]
    %v1068 = vld [vmem:[%s1065 + $0x10] sm:$0xff]
    %v1069 = vld [vmem:[%s1065 + $0x18] sm:$0xff]
    %v1070 = vld [vmem:[%s1065 + $0x20] sm:$0xff]
    %v1071 = vld [vmem:[%s1065 + $0x28] sm:$0xff]
    %v1072 = vld [vmem:[%s1065 + $0x30] sm:$0xff]
    %v1073 = vld [vmem:[%s1065 + $0x38] sm:$0xff]
    %v1074 = vld [vmem:[%s1065 + $0x40] sm:$0xff]
    %v1075 = vld [vmem:[%s1065 + $0x48] sm:$0xff]
    %v1076 = vld [vmem:[%s1065 + $0x50] sm:$0xff]
    %v1077 = vld [vmem:[%s1065 + $0x58] sm:$0xff]
    %v1078 = vld [vmem:[%s1065 + $0x60] sm:$0xff]
    %v1079 = vld [vmem:[%s1065 + $0x68] sm:$0xff]
    %v1080 = vld [vmem:[%s1065 + $0x70] sm:$0xff]
    %v1081 = vld [vmem:[%s1065 + $0x78] sm:$0xff]
    %v1082 = vld [vmem:[%s1065 + $0x80] sm:$0xff]
    %v1083 = vld [vmem:[%s1065 + $0x88] sm:$0xff]
    %v1084 = vld [vmem:[%s1065 + $0x90] sm:$0xff]
    %v1085 = vld [vmem:[%s1065 + $0x98] sm:$0xff]
    %v1086 = vld [vmem:[%s1065 + $0xa0] sm:$0xff]
    %v1087 = vld [vmem:[%s1065 + $0xa8] sm:$0xff]
    %v1088 = vld [vmem:[%s1065 + $0xb0] sm:$0xff]
    %v1089 = vld [vmem:[%s1065 + $0xb8] sm:$0xff]
    %v1090 = vld [vmem:[%s1065 + $0xc0] sm:$0xff]
    %v1091 = vld [vmem:[%s1065 + $0xc8] sm:$0xff]
    %v1092 = vld [vmem:[%s1065 + $0xd0] sm:$0xff]
    %v1093 = vld [vmem:[%s1065 + $0xd8] sm:$0xff]
    %v1094 = vld [vmem:[%s1065 + $0xe0] sm:$0xff]
    %v1095 = vld [vmem:[%s1065 + $0xe8] sm:$0xff]
    %v1096 = vld [vmem:[%s1065 + $0xf0] sm:$0xff]
    %v1097 = vld [vmem:[%s1065 + $0xf8] sm:$0xff]
    %1098 = vmatpush.msra.mxu0 %v1096
    %1099 = vmatpush.msra.mxu0 %v1094
    %1100 = vmatpush.msra.mxu0 %v1092
    %1101 = vmatpush.msra.mxu0 %v1090
    %1102 = vmatpush.msra.mxu0 %v1088
    %1103 = vmatpush.msra.mxu0 %v1086
    %1104 = vmatpush.msra.mxu0 %v1084
    %1105 = vmatpush.msra.mxu0 %v1082
    %1106 = vmatpush.msra.mxu0 %v1080
    %1107 = vmatpush.msra.mxu0 %v1078
    %1108 = vmatpush.msra.mxu0 %v1076
    %1109 = vmatpush.msra.mxu0 %v1074
    %1110 = vmatpush.msra.mxu0 %v1072
    %1111 = vmatpush.msra.mxu0 %v1070
    %1112 = vmatpush.msra.mxu0 %v1068
    %1113 = vmatpush.msra.mxu0 %v1066
    %1114 = vmatmul.f32.gmra.mxu0 %v1059
    %v1115 = vpop.f32.mrf.mxu0
    %v1116 = vadd.f32 0.0, %v1115
    %1117 = vmatmul.f32.gmra.mxu0 %v1060
    %v1118 = vpop.f32.mrf.mxu0
    %v1119 = vadd.f32 0.0, %v1118
    %1120 = vmatmul.f32.gmra.mxu0 %v1061
    %v1121 = vpop.f32.mrf.mxu0
    %v1122 = vadd.f32 0.0, %v1121
    %1123 = vmatmul.f32.gmra.mxu0 %v1062
    %v1124 = vpop.f32.mrf.mxu0
    %v1125 = vadd.f32 0.0, %v1124
    %1126 = vmatmul.f32.gmra.mxu0 %v1063
    %v1127 = vpop.f32.mrf.mxu0
    %v1128 = vadd.f32 0.0, %v1127
    %1129 = vmatmul.f32.gmra.mxu0 %v1064
    %v1130 = vpop.f32.mrf.mxu0
    %v1131 = vadd.f32 0.0, %v1130
    %1132 = vdwg.mxu0
    %1133 = vmatpush.msra.mxu0 %v1097
    %1134 = vmatpush.msra.mxu0 %v1095
    %1135 = vmatpush.msra.mxu0 %v1093
    %1136 = vmatpush.msra.mxu0 %v1091
    %1137 = vmatpush.msra.mxu0 %v1089
    %1138 = vmatpush.msra.mxu0 %v1087
    %1139 = vmatpush.msra.mxu0 %v1085
    %1140 = vmatpush.msra.mxu0 %v1083
    %1141 = vmatpush.msra.mxu0 %v1081
    %1142 = vmatpush.msra.mxu0 %v1079
    %1143 = vmatpush.msra.mxu0 %v1077
    %1144 = vmatpush.msra.mxu0 %v1075
    %1145 = vmatpush.msra.mxu0 %v1073
    %1146 = vmatpush.msra.mxu0 %v1071
    %1147 = vmatpush.msra.mxu0 %v1069
    %1148 = vmatpush.msra.mxu0 %v1067
    %1149 = vmatmul.f32.gmra.mxu0 %v1059
    %v1150 = vpop.f32.mrf.mxu0
    %v1151 = vadd.f32 0.0, %v1150
    %1152 = vmatmul.f32.gmra.mxu0 %v1060
    %v1153 = vpop.f32.mrf.mxu0
    %v1154 = vadd.f32 0.0, %v1153
    %1155 = vmatmul.f32.gmra.mxu0 %v1061
    %v1156 = vpop.f32.mrf.mxu0
    %v1157 = vadd.f32 0.0, %v1156
    %1158 = vmatmul.f32.gmra.mxu0 %v1062
    %v1159 = vpop.f32.mrf.mxu0
    %v1160 = vadd.f32 0.0, %v1159
    %1161 = vmatmul.f32.gmra.mxu0 %v1063
    %v1162 = vpop.f32.mrf.mxu0
    %v1163 = vadd.f32 0.0, %v1162
    %1164 = vmatmul.f32.gmra.mxu0 %v1064
    %v1165 = vpop.f32.mrf.mxu0
    %v1166 = vadd.f32 0.0, %v1165
    %1167 = vdwg.mxu0
    %v1168 = vadd.f32 %v1007, %v1116
    %v1169 = vadd.f32 %v1042, %v1151
    %v1170 = vadd.f32 %v1010, %v1119
    %v1171 = vadd.f32 %v1045, %v1154
    %v1172 = vadd.f32 %v1013, %v1122
    %v1173 = vadd.f32 %v1048, %v1157
    %v1174 = vadd.f32 %v1016, %v1125
    %v1175 = vadd.f32 %v1051, %v1160
    %v1176 = vadd.f32 %v1019, %v1128
    %v1177 = vadd.f32 %v1054, %v1163
    %v1178 = vadd.f32 %v1022, %v1131
    %v1179 = vadd.f32 %v1057, %v1166
    %s1180 = scalar_lea.vmem %s4, 4
    %v1181 = vld [vmem:[%s1180] ss:$2 sm:$0x3]
    %v1183 = vperm.slane %v1181, 0
    %v1184 = vperm.slane %v1181, 1
    %v1187 = vmul.f32 %v1168, %v1183
    %v1188 = vmul.f32 %v1169, %v1184
    %v1189 = vmul.f32 %v1170, %v1183
    %v1190 = vmul.f32 %v1171, %v1184
    %v1191 = vmul.f32 %v1172, %v1183
    %v1192 = vmul.f32 %v1173, %v1184
    %v1193 = vmul.f32 %v1174, %v1183
    %v1194 = vmul.f32 %v1175, %v1184
    %v1195 = vmul.f32 %v1176, %v1183
    %v1196 = vmul.f32 %v1177, %v1184
    %v1197 = vmul.f32 %v1178, %v1183
    %v1198 = vmul.f32 %v1179, %v1184
    %s1199 = scalar_lea.vmem %s1180, 1
    %v1200 = vld [vmem:[%s1199] ss:$2 sm:$0x3]
    %v1202 = vperm.slane %v1200, 0
    %v1203 = vperm.slane %v1200, 1
    %v1206 = vadd.f32 %v1187, %v1202
    %v1207 = vadd.f32 %v1188, %v1203
    %v1208 = vadd.f32 %v1189, %v1202
    %v1209 = vadd.f32 %v1190, %v1203
    %v1210 = vadd.f32 %v1191, %v1202
    %v1211 = vadd.f32 %v1192, %v1203
    %v1212 = vadd.f32 %v1193, %v1202
    %v1213 = vadd.f32 %v1194, %v1203
    %v1214 = vadd.f32 %v1195, %v1202
    %v1215 = vadd.f32 %v1196, %v1203
    %v1216 = vadd.f32 %v1197, %v1202
    %v1217 = vadd.f32 %v1198, %v1203
    %v1218 = vmax.f32 %v1206, 0.0
    %v1219 = vmax.f32 %v1207, 0.0
    %v1220 = vmax.f32 %v1208, 0.0
    %v1221 = vmax.f32 %v1209, 0.0
    %v1222 = vmax.f32 %v1210, 0.0
    %v1223 = vmax.f32 %v1211, 0.0
    %v1224 = vmax.f32 %v1212, 0.0
    %v1225 = vmax.f32 %v1213, 0.0
    %v1226 = vmax.f32 %v1214, 0.0
    %v1227 = vmax.f32 %v1215, 0.0
    %v1228 = vmax.f32 %v1216, 0.0
    %v1229 = vmax.f32 %v1217, 0.0
    %1230 = vst [vmem:[#allocation3] sm:$0xff] %v1218
    %1231 = vst.msk [vmem:[#allocation3 + $0x8] sm:$0xff] %vm428, %v1219
    %1232 = vst [vmem:[#allocation3 + $0x10] sm:$0xff] %v1220
    %1233 = vst.msk [vmem:[#allocation3 + $0x18] sm:$0xff] %vm428, %v1221
    %1234 = vst [vmem:[#allocation3 + $0x20] sm:$0xff] %v1222
    %1235 = vst.msk [vmem:[#allocation3 + $0x28] sm:$0xff] %vm428, %v1223
    %1236 = vst [vmem:[#allocation3 + $0x30] sm:$0xff] %v1224
    %1237 = vst.msk [vmem:[#allocation3 + $0x38] sm:$0xff] %vm428, %v1225
    %1238 = vst [vmem:[#allocation3 + $0x40] sm:$0xff] %v1226
    %1239 = vst.msk [vmem:[#allocation3 + $0x48] sm:$0xff] %vm428, %v1227
    %1240 = vst [vmem:[#allocation3 + $0x50] sm:$0x3] %v1228
    %1241 = vst.msk [vmem:[#allocation3 + $0x58] sm:$0x3] %vm439, %v1229
    %v1242 = vld [vmem:[#allocation3] sm:$0xff]
    %v1243 = vld [vmem:[#allocation3 + $0x8] sm:$0xff]
    %v1244 = vld [vmem:[#allocation3 + $0x10] sm:$0xff]
    %v1245 = vld [vmem:[#allocation3 + $0x18] sm:$0xff]
    %v1246 = vld [vmem:[#allocation3 + $0x20] sm:$0xff]
    %v1247 = vld [vmem:[#allocation3 + $0x28] sm:$0xff]
    %v1248 = vld [vmem:[#allocation3 + $0x30] sm:$0xff]
    %v1249 = vld [vmem:[#allocation3 + $0x38] sm:$0xff]
    %v1250 = vld [vmem:[#allocation3 + $0x40] sm:$0xff]
    %v1251 = vld [vmem:[#allocation3 + $0x48] sm:$0xff]
    %s1252 = scalar_lea.vmem %s3, 432
    %v1253 = vld [vmem:[%s1252] sm:$0xff]
    %v1254 = vld [vmem:[%s1252 + $0x8] sm:$0xff]
    %v1255 = vld [vmem:[%s1252 + $0x10] sm:$0xff]
    %v1256 = vld [vmem:[%s1252 + $0x18] sm:$0xff]
    %v1257 = vld [vmem:[%s1252 + $0x20] sm:$0xff]
    %v1258 = vld [vmem:[%s1252 + $0x28] sm:$0xff]
    %v1259 = vld [vmem:[%s1252 + $0x30] sm:$0xff]
    %v1260 = vld [vmem:[%s1252 + $0x38] sm:$0xff]
    %v1261 = vld [vmem:[%s1252 + $0x40] sm:$0xff]
    %v1262 = vld [vmem:[%s1252 + $0x48] sm:$0xff]
    %v1263 = vld [vmem:[%s1252 + $0x50] sm:$0xff]
    %v1264 = vld [vmem:[%s1252 + $0x58] sm:$0xff]
    %v1265 = vld [vmem:[%s1252 + $0x60] sm:$0xff]
    %v1266 = vld [vmem:[%s1252 + $0x68] sm:$0xff]
    %v1267 = vld [vmem:[%s1252 + $0x70] sm:$0xff]
    %v1268 = vld [vmem:[%s1252 + $0x78] sm:$0xff]
    %v1269 = vld [vmem:[%s1252 + $0x80] sm:$0xff]
    %v1270 = vld [vmem:[%s1252 + $0x88] sm:$0xff]
    %v1271 = vld [vmem:[#allocation3] sm:$0xfe]
    %v1272 = vld [vmem:[#allocation3 + $0x8] sm:$0xfe]
    %v1273 = vld [vmem:[#allocation3 + $0x50] sm:$0x1]
    %v1274 = vld [vmem:[#allocation3 + $0x58] sm:$0x1]
    %s1275 = scalar_lea.vmem %s3, 576
    %v1276 = vld [vmem:[%s1275] sm:$0xff]
    %v1277 = vld [vmem:[%s1275 + $0x8] sm:$0xff]
    %v1278 = vld [vmem:[%s1275 + $0x10] sm:$0xff]
    %v1279 = vld [vmem:[%s1275 + $0x18] sm:$0xff]
    %v1280 = vld [vmem:[%s1275 + $0x20] sm:$0xff]
    %v1281 = vld [vmem:[%s1275 + $0x28] sm:$0xff]
    %v1282 = vld [vmem:[%s1275 + $0x30] sm:$0xff]
    %v1283 = vld [vmem:[%s1275 + $0x38] sm:$0xff]
    %v1284 = vld [vmem:[%s1275 + $0x40] sm:$0xff]
    %v1285 = vld [vmem:[%s1275 + $0x48] sm:$0xff]
    %v1286 = vld [vmem:[%s1275 + $0x50] sm:$0xff]
    %v1287 = vld [vmem:[%s1275 + $0x58] sm:$0xff]
    %v1288 = vld [vmem:[%s1275 + $0x60] sm:$0xff]
    %v1289 = vld [vmem:[%s1275 + $0x68] sm:$0xff]
    %v1290 = vld [vmem:[%s1275 + $0x70] sm:$0xff]
    %v1291 = vld [vmem:[%s1275 + $0x78] sm:$0xff]
    %v1292 = vld [vmem:[%s1275 + $0x80] sm:$0xff]
    %v1293 = vld [vmem:[%s1275 + $0x88] sm:$0xff]
    %v1306 = vrot.slane %v1271, 1
    %v1307 = vrot.slane %v1244, 1
    %v1308 = vsel %vm504, %v1306, %v1307
    %v1309 = vrot.slane %v1272, 1
    %v1310 = vrot.slane %v1245, 1
    %v1311 = vsel %vm504, %v1309, %v1310
    %v1312 = vrot.slane %v1246, 1
    %v1313 = vsel %vm504, %v1307, %v1312
    %v1314 = vrot.slane %v1247, 1
    %v1315 = vsel %vm504, %v1310, %v1314
    %v1316 = vrot.slane %v1248, 1
    %v1317 = vsel %vm504, %v1312, %v1316
    %v1318 = vrot.slane %v1249, 1
    %v1319 = vsel %vm504, %v1314, %v1318
    %v1320 = vrot.slane %v1250, 1
    %v1321 = vsel %vm504, %v1316, %v1320
    %v1322 = vrot.slane %v1251, 1
    %v1323 = vsel %vm504, %v1318, %v1322
    %v1324 = vrot.slane %v1273, 1
    %v1325 = vsel %vm504, %v1320, %v1324
    %v1326 = vrot.slane %v1274, 1
    %v1327 = vsel %vm504, %v1322, %v1326
    %v1333 = vsel %vm428, %v1311, 0
    %v1335 = vsel %vm428, %v1315, 0
    %v1337 = vsel %vm428, %v1319, 0
    %v1339 = vsel %vm428, %v1323, 0
    %v1341 = vsel %vm428, %v1327, 0
    %1343 = vmatpush.msra.mxu0 %v1291
    %1344 = vmatpush.msra.mxu0 %v1290
    %1345 = vmatpush.msra.mxu0 %v1289
    %1346 = vmatpush.msra.mxu0 %v1288
    %1347 = vmatpush.msra.mxu0 %v1287
    %1348 = vmatpush.msra.mxu0 %v1286
    %1349 = vmatpush.msra.mxu0 %v1285
    %1350 = vmatpush.msra.mxu0 %v1284
    %1351 = vmatpush.msra.mxu0 %v1283
    %1352 = vmatpush.msra.mxu0 %v1282
    %1353 = vmatpush.msra.mxu0 %v1281
    %1354 = vmatpush.msra.mxu0 %v1280
    %1355 = vmatpush.msra.mxu0 %v1279
    %1356 = vmatpush.msra.mxu0 %v1278
    %1357 = vmatpush.msra.mxu0 %v1277
    %1358 = vmatpush.msra.mxu0 %v1276
    %1359 = vmatmul.f32.gmra.mxu0 %v1308
    %v1360 = vpop.f32.mrf.mxu0
    %v1361 = vadd.f32 0.0, %v1360
    %1362 = vmatmul.f32.gmra.mxu0 %v1313
    %v1363 = vpop.f32.mrf.mxu0
    %v1364 = vadd.f32 0.0, %v1363
    %1365 = vmatmul.f32.gmra.mxu0 %v1317
    %v1366 = vpop.f32.mrf.mxu0
    %1367 = vmatmul.f32.gmra.mxu0 %v1321
    %v1368 = vpop.f32.mrf.mxu0
    %v1369 = vadd.f32 0.0, %v1368
    %1370 = vmatmul.f32.gmra.mxu0 %v1325
    %v1371 = vpop.f32.mrf.mxu0
    %v1372 = vadd.f32 0.0, %v1371
    %1373 = vdwg.mxu0
    %1374 = vmatpush.msra.mxu0 0.0
    %1375 = vmatpush.msra.mxu0 0.0
    %1376 = vmatpush.msra.mxu0 0.0
    %1377 = vmatpush.msra.mxu0 0.0
    %1378 = vmatpush.msra.mxu0 0.0
    %1379 = vmatpush.msra.mxu0 0.0
    %1380 = vmatpush.msra.mxu0 0.0
    %1381 = vmatpush.msra.mxu0 0.0
    %1382 = vmatpush.msra.mxu0 0.0
    %1383 = vmatpush.msra.mxu0 0.0
    %1384 = vmatpush.msra.mxu0 0.0
    %1385 = vmatpush.msra.mxu0 0.0
    %1386 = vmatpush.msra.mxu0 0.0
    %1387 = vmatpush.msra.mxu0 0.0
    %1388 = vmatpush.msra.mxu0 %v1293
    %1389 = vmatpush.msra.mxu0 %v1292
    %1390 = vmatmul.f32.gmra.mxu0 %v1333
    %v1391 = vpop.f32.mrf.mxu0
    %v1392 = vadd.f32 %v1361, %v1391
    %1393 = vmatmul.f32.gmra.mxu0 %v1335
    %v1394 = vpop.f32.mrf.mxu0
    %v1395 = vadd.f32 %v1364, %v1394
    %1396 = vmatmul.f32.gmra.mxu0 %v1337
    %v1397 = vpop.f32.mrf.mxu0
    %1398 = vmatmul.f32.gmra.mxu0 %v1339
    %v1399 = vpop.f32.mrf.mxu0
    %v1400 = vadd.f32 %v1369, %v1399
    %1401 = vmatmul.f32.gmra.mxu0 %v1341
    %v1402 = vpop.f32.mrf.mxu0
    %v1403 = vadd.f32 %v1372, %v1402
    %1404 = vdwg.mxu0
    %v1406 = vsel %vm428, %v1243, 0
    %v1408 = vsel %vm428, %v1245, 0
    %v1410 = vsel %vm428, %v1247, 0
    %v1412 = vsel %vm428, %v1249, 0
    %v1414 = vsel %vm428, %v1251, 0
    %1416 = vmatpush.msra.mxu0 %v1268
    %1417 = vmatpush.msra.mxu0 %v1267
    %1418 = vmatpush.msra.mxu0 %v1266
    %1419 = vmatpush.msra.mxu0 %v1265
    %1420 = vmatpush.msra.mxu0 %v1264
    %1421 = vmatpush.msra.mxu0 %v1263
    %1422 = vmatpush.msra.mxu0 %v1262
    %1423 = vmatpush.msra.mxu0 %v1261
    %1424 = vmatpush.msra.mxu0 %v1260
    %1425 = vmatpush.msra.mxu0 %v1259
    %1426 = vmatpush.msra.mxu0 %v1258
    %1427 = vmatpush.msra.mxu0 %v1257
    %1428 = vmatpush.msra.mxu0 %v1256
    %1429 = vmatpush.msra.mxu0 %v1255
    %1430 = vmatpush.msra.mxu0 %v1254
    %1431 = vmatpush.msra.mxu0 %v1253
    %1432 = vmatmul.f32.gmra.mxu0 %v1242
    %v1433 = vpop.f32.mrf.mxu0
    %v1434 = vadd.f32 %v1392, %v1433
    %1435 = vmatmul.f32.gmra.mxu0 %v1244
    %v1436 = vpop.f32.mrf.mxu0
    %v1437 = vadd.f32 %v1395, %v1436
    %1438 = vmatmul.f32.gmra.mxu0 %v1246
    %v1439 = vpop.f32.mrf.mxu0
    %1440 = vmatmul.f32.gmra.mxu0 %v1248
    %v1441 = vpop.f32.mrf.mxu0
    %v1442 = vadd.f32 %v1400, %v1441
    %1443 = vmatmul.f32.gmra.mxu0 %v1250
    %v1444 = vpop.f32.mrf.mxu0
    %v1445 = vadd.f32 %v1403, %v1444
    %1446 = vdwg.mxu0
    %1447 = vmatpush.msra.mxu0 0.0
    %1448 = vmatpush.msra.mxu0 0.0
    %1449 = vmatpush.msra.mxu0 0.0
    %1450 = vmatpush.msra.mxu0 0.0
    %1451 = vmatpush.msra.mxu0 0.0
    %1452 = vmatpush.msra.mxu0 0.0
    %1453 = vmatpush.msra.mxu0 0.0
    %1454 = vmatpush.msra.mxu0 0.0
    %1455 = vmatpush.msra.mxu0 0.0
    %1456 = vmatpush.msra.mxu0 0.0
    %1457 = vmatpush.msra.mxu0 0.0
    %1458 = vmatpush.msra.mxu0 0.0
    %1459 = vmatpush.msra.mxu0 0.0
    %1460 = vmatpush.msra.mxu0 0.0
    %1461 = vmatpush.msra.mxu0 %v1270
    %1462 = vmatpush.msra.mxu0 %v1269
    %1463 = vmatmul.f32.gmra.mxu0 %v1406
    %v1464 = vpop.f32.mrf.mxu0
    %v1465 = vadd.f32 %v1434, %v1464
    %1466 = vmatmul.f32.gmra.mxu0 %v1408
    %v1467 = vpop.f32.mrf.mxu0
    %v1468 = vadd.f32 %v1437, %v1467
    %1469 = vmatmul.f32.gmra.mxu0 %v1410
    %v1470 = vpop.f32.mrf.mxu0
    %1471 = vmatmul.f32.gmra.mxu0 %v1412
    %v1472 = vpop.f32.mrf.mxu0
    %v1473 = vadd.f32 %v1442, %v1472
    %1474 = vmatmul.f32.gmra.mxu0 %v1414
    %v1475 = vpop.f32.mrf.mxu0
    %v1476 = vadd.f32 %v1445, %v1475
    %1477 = vdwg.mxu0
    %v1478 = vld [vmem:[#allocation3] sm:$0xfc]
    %v1479 = vld [vmem:[#allocation3 + $0x8] sm:$0xfc]
    %v1480 = vld [vmem:[#allocation3 + $0x50] sm:$0x3]
    %v1481 = vld [vmem:[#allocation3 + $0x58] sm:$0x3]
    %s1482 = scalar_lea.vmem %s3, 720
    %v1483 = vld [vmem:[%s1482] sm:$0xff]
    %v1484 = vld [vmem:[%s1482 + $0x8] sm:$0xff]
    %v1485 = vld [vmem:[%s1482 + $0x10] sm:$0xff]
    %v1486 = vld [vmem:[%s1482 + $0x18] sm:$0xff]
    %v1487 = vld [vmem:[%s1482 + $0x20] sm:$0xff]
    %v1488 = vld [vmem:[%s1482 + $0x28] sm:$0xff]
    %v1489 = vld [vmem:[%s1482 + $0x30] sm:$0xff]
    %v1490 = vld [vmem:[%s1482 + $0x38] sm:$0xff]
    %v1491 = vld [vmem:[%s1482 + $0x40] sm:$0xff]
    %v1492 = vld [vmem:[%s1482 + $0x48] sm:$0xff]
    %v1493 = vld [vmem:[%s1482 + $0x50] sm:$0xff]
    %v1494 = vld [vmem:[%s1482 + $0x58] sm:$0xff]
    %v1495 = vld [vmem:[%s1482 + $0x60] sm:$0xff]
    %v1496 = vld [vmem:[%s1482 + $0x68] sm:$0xff]
    %v1497 = vld [vmem:[%s1482 + $0x70] sm:$0xff]
    %v1498 = vld [vmem:[%s1482 + $0x78] sm:$0xff]
    %v1499 = vld [vmem:[%s1482 + $0x80] sm:$0xff]
    %v1500 = vld [vmem:[%s1482 + $0x88] sm:$0xff]
    %v1505 = vrot.slane %v1478, 2
    %v1506 = vrot.slane %v1244, 2
    %v1507 = vsel %vm704, %v1505, %v1506
    %v1508 = vrot.slane %v1479, 2
    %v1509 = vrot.slane %v1245, 2
    %v1510 = vsel %vm704, %v1508, %v1509
    %v1511 = vrot.slane %v1246, 2
    %v1512 = vsel %vm704, %v1506, %v1511
    %v1513 = vrot.slane %v1247, 2
    %v1514 = vsel %vm704, %v1509, %v1513
    %v1515 = vrot.slane %v1248, 2
    %v1516 = vsel %vm704, %v1511, %v1515
    %v1517 = vrot.slane %v1249, 2
    %v1518 = vsel %vm704, %v1513, %v1517
    %v1519 = vrot.slane %v1250, 2
    %v1520 = vsel %vm704, %v1515, %v1519
    %v1521 = vrot.slane %v1251, 2
    %v1522 = vsel %vm704, %v1517, %v1521
    %v1523 = vrot.slane %v1480, 2
    %v1524 = vsel %vm704, %v1519, %v1523
    %v1525 = vrot.slane %v1481, 2
    %v1526 = vsel %vm704, %v1521, %v1525
    %v1532 = vsel %vm428, %v1510, 0
    %v1534 = vsel %vm428, %v1514, 0
    %v1536 = vsel %vm428, %v1518, 0
    %v1538 = vsel %vm428, %v1522, 0
    %v1540 = vsel %vm428, %v1526, 0
    %1542 = vmatpush.msra.mxu0 %v1498
    %1543 = vmatpush.msra.mxu0 %v1497
    %1544 = vmatpush.msra.mxu0 %v1496
    %1545 = vmatpush.msra.mxu0 %v1495
    %1546 = vmatpush.msra.mxu0 %v1494
    %1547 = vmatpush.msra.mxu0 %v1493
    %1548 = vmatpush.msra.mxu0 %v1492
    %1549 = vmatpush.msra.mxu0 %v1491
    %1550 = vmatpush.msra.mxu0 %v1490
    %1551 = vmatpush.msra.mxu0 %v1489
    %1552 = vmatpush.msra.mxu0 %v1488
    %1553 = vmatpush.msra.mxu0 %v1487
    %1554 = vmatpush.msra.mxu0 %v1486
    %1555 = vmatpush.msra.mxu0 %v1485
    %1556 = vmatpush.msra.mxu0 %v1484
    %1557 = vmatpush.msra.mxu0 %v1483
    %1558 = vmatmul.f32.gmra.mxu0 %v1507
    %v1559 = vpop.f32.mrf.mxu0
    %v1560 = vadd.f32 0.0, %v1559
    %1561 = vmatmul.f32.gmra.mxu0 %v1512
    %v1562 = vpop.f32.mrf.mxu0
    %v1563 = vadd.f32 0.0, %v1562
    %1564 = vmatmul.f32.gmra.mxu0 %v1516
    %v1565 = vpop.f32.mrf.mxu0
    %1566 = vmatmul.f32.gmra.mxu0 %v1520
    %v1567 = vpop.f32.mrf.mxu0
    %v1568 = vadd.f32 0.0, %v1567
    %1569 = vmatmul.f32.gmra.mxu0 %v1524
    %v1570 = vpop.f32.mrf.mxu0
    %v1571 = vadd.f32 0.0, %v1570
    %1572 = vdwg.mxu0
    %1573 = vmatpush.msra.mxu0 0.0
    %1574 = vmatpush.msra.mxu0 0.0
    %1575 = vmatpush.msra.mxu0 0.0
    %1576 = vmatpush.msra.mxu0 0.0
    %1577 = vmatpush.msra.mxu0 0.0
    %1578 = vmatpush.msra.mxu0 0.0
    %1579 = vmatpush.msra.mxu0 0.0
    %1580 = vmatpush.msra.mxu0 0.0
    %1581 = vmatpush.msra.mxu0 0.0
    %1582 = vmatpush.msra.mxu0 0.0
    %1583 = vmatpush.msra.mxu0 0.0
    %1584 = vmatpush.msra.mxu0 0.0
    %1585 = vmatpush.msra.mxu0 0.0
    %1586 = vmatpush.msra.mxu0 0.0
    %1587 = vmatpush.msra.mxu0 %v1500
    %1588 = vmatpush.msra.mxu0 %v1499
    %1589 = vmatmul.f32.gmra.mxu0 %v1532
    %v1590 = vpop.f32.mrf.mxu0
    %v1591 = vadd.f32 %v1560, %v1590
    %1592 = vmatmul.f32.gmra.mxu0 %v1534
    %v1593 = vpop.f32.mrf.mxu0
    %v1594 = vadd.f32 %v1563, %v1593
    %1595 = vmatmul.f32.gmra.mxu0 %v1536
    %v1596 = vpop.f32.mrf.mxu0
    %1597 = vmatmul.f32.gmra.mxu0 %v1538
    %v1598 = vpop.f32.mrf.mxu0
    %v1599 = vadd.f32 %v1568, %v1598
    %1600 = vmatmul.f32.gmra.mxu0 %v1540
    %v1601 = vpop.f32.mrf.mxu0
    %v1602 = vadd.f32 %v1571, %v1601
    %1603 = vdwg.mxu0
    %v1604 = vadd.f32 %v1465, %v1591
    %v1605 = vadd.f32 %v1468, %v1594
    %v1606 = vadd.f32 %v1473, %v1599
    %v1607 = vadd.f32 %v1476, %v1602
    %s1608 = scalar_lea.vmem %s5, 2
    %v1609 = vld [vmem:[%s1608] sm:$0x1]
    %v1610 = vld [vmem:[%s1608 + $0x1] sm:$0x1]
    %v1611 = vperm.slane %v1609, 0
    %v1612 = vmul.f32 %v1604, %v1611
    %v1613 = vmul.f32 %v1605, %v1611
    %v1614 = vperm.slane %v1610, 0
    %v1615 = vadd.f32 %v1612, %v1614
    %v1616 = vadd.f32 %v1613, %v1614
    %v1617 = vld [vmem:[%s1] sm:$0xff]
    %v1618 = vld [vmem:[%s1 + $0x8] sm:$0xff]
    %v1619 = vadd.f32 %v1615, %v1617
    %v1620 = vadd.f32 %v1616, %v1618
    %v1621 = vmul.f32 %v1619, 0.5
    %v1622 = vmul.f32 %v1620, 0.5
    %v1623 = vmax.f32 %v1621, 0.0
    %v1624 = vmax.f32 %v1622, 0.0
    %1625 = vst [vmem:[#allocation2 + $0x8] sm:$0xff] %v1623
    %1626 = vst [vmem:[#allocation2 + $0x10] sm:$0xff] %v1624
    %v1627 = vmul.f32 %v1606, %v1611
    %v1628 = vmul.f32 %v1607, %v1611
    %v1629 = vadd.f32 %v1627, %v1614
    %v1630 = vadd.f32 %v1628, %v1614
    %v1631 = vld [vmem:[%s830] sm:$0xff]
    %v1632 = vld [vmem:[%s830 + $0x8] sm:$0xff]
    %v1633 = vadd.f32 %v1629, %v1631
    %v1634 = vadd.f32 %v1630, %v1632
    %v1635 = vmul.f32 %v1633, 0.5
    %v1636 = vmul.f32 %v1634, 0.5
    %v1637 = vmax.f32 %v1635, 0.0
    %v1638 = vmax.f32 %v1636, 0.0
    %1639 = vst [vmem:[#allocation2 + $0x20] sm:$0xff] %v1637
    %1640 = vst [vmem:[#allocation2 + $0x28] sm:$0xff] %v1638
    %v1641 = vld [vmem:[#allocation2 + $0x6] sm:$0xff]
    %v1642 = vld [vmem:[#allocation2 + $0xe] sm:$0xff]
    %v1643 = vld [vmem:[#allocation2 + $0x16] sm:$0xff]
    %v1644 = vld [vmem:[#allocation2 + $0x1e] sm:$0xff]
    %v1645 = vld [vmem:[#allocation2 + $0x26] sm:$0xff]
    %v1646 = vld [vmem:[#allocation2 + $0x2e] sm:$0x3]
    %s1647 = scalar_lea.vmem %s2, 1536
    %v1648 = vld [vmem:[%s1647] sm:$0xff]
    %v1649 = vld [vmem:[%s1647 + $0x8] sm:$0xff]
    %v1650 = vld [vmem:[%s1647 + $0x10] sm:$0xff]
    %v1651 = vld [vmem:[%s1647 + $0x18] sm:$0xff]
    %v1652 = vld [vmem:[%s1647 + $0x20] sm:$0xff]
    %v1653 = vld [vmem:[%s1647 + $0x28] sm:$0xff]
    %v1654 = vld [vmem:[%s1647 + $0x30] sm:$0xff]
    %v1655 = vld [vmem:[%s1647 + $0x38] sm:$0xff]
    %v1656 = vld [vmem:[%s1647 + $0x40] sm:$0xff]
    %v1657 = vld [vmem:[%s1647 + $0x48] sm:$0xff]
    %v1658 = vld [vmem:[%s1647 + $0x50] sm:$0xff]
    %v1659 = vld [vmem:[%s1647 + $0x58] sm:$0xff]
    %v1660 = vld [vmem:[%s1647 + $0x60] sm:$0xff]
    %v1661 = vld [vmem:[%s1647 + $0x68] sm:$0xff]
    %v1662 = vld [vmem:[%s1647 + $0x70] sm:$0xff]
    %v1663 = vld [vmem:[%s1647 + $0x78] sm:$0xff]
    %v1664 = vld [vmem:[%s1647 + $0x80] sm:$0xff]
    %v1665 = vld [vmem:[%s1647 + $0x88] sm:$0xff]
    %v1666 = vld [vmem:[%s1647 + $0x90] sm:$0xff]
    %v1667 = vld [vmem:[%s1647 + $0x98] sm:$0xff]
    %v1668 = vld [vmem:[%s1647 + $0xa0] sm:$0xff]
    %v1669 = vld [vmem:[%s1647 + $0xa8] sm:$0xff]
    %v1670 = vld [vmem:[%s1647 + $0xb0] sm:$0xff]
    %v1671 = vld [vmem:[%s1647 + $0xb8] sm:$0xff]
    %v1672 = vld [vmem:[%s1647 + $0xc0] sm:$0xff]
    %v1673 = vld [vmem:[%s1647 + $0xc8] sm:$0xff]
    %v1674 = vld [vmem:[%s1647 + $0xd0] sm:$0xff]
    %v1675 = vld [vmem:[%s1647 + $0xd8] sm:$0xff]
    %v1676 = vld [vmem:[%s1647 + $0xe0] sm:$0xff]
    %v1677 = vld [vmem:[%s1647 + $0xe8] sm:$0xff]
    %v1678 = vld [vmem:[%s1647 + $0xf0] sm:$0xff]
    %v1679 = vld [vmem:[%s1647 + $0xf8] sm:$0xff]
    %v1680 = vld [vmem:[#allocation2 + $0x7] sm:$0xff]
    %v1681 = vld [vmem:[#allocation2 + $0xf] sm:$0xff]
    %v1682 = vld [vmem:[#allocation2 + $0x17] sm:$0xff]
    %v1683 = vld [vmem:[#allocation2 + $0x1f] sm:$0xff]
    %v1684 = vld [vmem:[#allocation2 + $0x27] sm:$0xff]
    %v1685 = vld [vmem:[#allocation2 + $0x2f] sm:$0x3]
    %s1686 = scalar_lea.vmem %s2, 1792
    %v1687 = vld [vmem:[%s1686] sm:$0xff]
    %v1688 = vld [vmem:[%s1686 + $0x8] sm:$0xff]
    %v1689 = vld [vmem:[%s1686 + $0x10] sm:$0xff]
    %v1690 = vld [vmem:[%s1686 + $0x18] sm:$0xff]
    %v1691 = vld [vmem:[%s1686 + $0x20] sm:$0xff]
    %v1692 = vld [vmem:[%s1686 + $0x28] sm:$0xff]
    %v1693 = vld [vmem:[%s1686 + $0x30] sm:$0xff]
    %v1694 = vld [vmem:[%s1686 + $0x38] sm:$0xff]
    %v1695 = vld [vmem:[%s1686 + $0x40] sm:$0xff]
    %v1696 = vld [vmem:[%s1686 + $0x48] sm:$0xff]
    %v1697 = vld [vmem:[%s1686 + $0x50] sm:$0xff]
    %v1698 = vld [vmem:[%s1686 + $0x58] sm:$0xff]
    %v1699 = vld [vmem:[%s1686 + $0x60] sm:$0xff]
    %v1700 = vld [vmem:[%s1686 + $0x68] sm:$0xff]
    %v1701 = vld [vmem:[%s1686 + $0x70] sm:$0xff]
    %v1702 = vld [vmem:[%s1686 + $0x78] sm:$0xff]
    %v1703 = vld [vmem:[%s1686 + $0x80] sm:$0xff]
    %v1704 = vld [vmem:[%s1686 + $0x88] sm:$0xff]
    %v1705 = vld [vmem:[%s1686 + $0x90] sm:$0xff]
    %v1706 = vld [vmem:[%s1686 + $0x98] sm:$0xff]
    %v1707 = vld [vmem:[%s1686 + $0xa0] sm:$0xff]
    %v1708 = vld [vmem:[%s1686 + $0xa8] sm:$0xff]
    %v1709 = vld [vmem:[%s1686 + $0xb0] sm:$0xff]
    %v1710 = vld [vmem:[%s1686 + $0xb8] sm:$0xff]
    %v1711 = vld [vmem:[%s1686 + $0xc0] sm:$0xff]
    %v1712 = vld [vmem:[%s1686 + $0xc8] sm:$0xff]
    %v1713 = vld [vmem:[%s1686 + $0xd0] sm:$0xff]
    %v1714 = vld [vmem:[%s1686 + $0xd8] sm:$0xff]
    %v1715 = vld [vmem:[%s1686 + $0xe0] sm:$0xff]
    %v1716 = vld [vmem:[%s1686 + $0xe8] sm:$0xff]
    %v1717 = vld [vmem:[%s1686 + $0xf0] sm:$0xff]
    %v1718 = vld [vmem:[%s1686 + $0xf8] sm:$0xff]
    %1719 = vmatpush.msra.mxu0 %v1717
    %1720 = vmatpush.msra.mxu0 %v1715
    %1721 = vmatpush.msra.mxu0 %v1713
    %1722 = vmatpush.msra.mxu0 %v1711
    %1723 = vmatpush.msra.mxu0 %v1709
    %1724 = vmatpush.msra.mxu0 %v1707
    %1725 = vmatpush.msra.mxu0 %v1705
    %1726 = vmatpush.msra.mxu0 %v1703
    %1727 = vmatpush.msra.mxu0 %v1701
    %1728 = vmatpush.msra.mxu0 %v1699
    %1729 = vmatpush.msra.mxu0 %v1697
    %1730 = vmatpush.msra.mxu0 %v1695
    %1731 = vmatpush.msra.mxu0 %v1693
    %1732 = vmatpush.msra.mxu0 %v1691
    %1733 = vmatpush.msra.mxu0 %v1689
    %1734 = vmatpush.msra.mxu0 %v1687
    %1735 = vmatmul.f32.gmra.mxu0 %v1680
    %v1736 = vpop.f32.mrf.mxu0
    %v1737 = vadd.f32 0.0, %v1736
    %1738 = vmatmul.f32.gmra.mxu0 %v1681
    %v1739 = vpop.f32.mrf.mxu0
    %v1740 = vadd.f32 0.0, %v1739
    %1741 = vmatmul.f32.gmra.mxu0 %v1682
    %v1742 = vpop.f32.mrf.mxu0
    %v1743 = vadd.f32 0.0, %v1742
    %1744 = vmatmul.f32.gmra.mxu0 %v1683
    %v1745 = vpop.f32.mrf.mxu0
    %v1746 = vadd.f32 0.0, %v1745
    %1747 = vmatmul.f32.gmra.mxu0 %v1684
    %v1748 = vpop.f32.mrf.mxu0
    %v1749 = vadd.f32 0.0, %v1748
    %1750 = vmatmul.f32.gmra.mxu0 %v1685
    %v1751 = vpop.f32.mrf.mxu0
    %v1752 = vadd.f32 0.0, %v1751
    %1753 = vdwg.mxu0
    %1754 = vmatpush.msra.mxu0 %v1718
    %1755 = vmatpush.msra.mxu0 %v1716
    %1756 = vmatpush.msra.mxu0 %v1714
    %1757 = vmatpush.msra.mxu0 %v1712
    %1758 = vmatpush.msra.mxu0 %v1710
    %1759 = vmatpush.msra.mxu0 %v1708
    %1760 = vmatpush.msra.mxu0 %v1706
    %1761 = vmatpush.msra.mxu0 %v1704
    %1762 = vmatpush.msra.mxu0 %v1702
    %1763 = vmatpush.msra.mxu0 %v1700
    %1764 = vmatpush.msra.mxu0 %v1698
    %1765 = vmatpush.msra.mxu0 %v1696
    %1766 = vmatpush.msra.mxu0 %v1694
    %1767 = vmatpush.msra.mxu0 %v1692
    %1768 = vmatpush.msra.mxu0 %v1690
    %1769 = vmatpush.msra.mxu0 %v1688
    %1770 = vmatmul.f32.gmra.mxu0 %v1680
    %v1771 = vpop.f32.mrf.mxu0
    %v1772 = vadd.f32 0.0, %v1771
    %1773 = vmatmul.f32.gmra.mxu0 %v1681
    %v1774 = vpop.f32.mrf.mxu0
    %v1775 = vadd.f32 0.0, %v1774
    %1776 = vmatmul.f32.gmra.mxu0 %v1682
    %v1777 = vpop.f32.mrf.mxu0
    %v1778 = vadd.f32 0.0, %v1777
    %1779 = vmatmul.f32.gmra.mxu0 %v1683
    %v1780 = vpop.f32.mrf.mxu0
    %v1781 = vadd.f32 0.0, %v1780
    %1782 = vmatmul.f32.gmra.mxu0 %v1684
    %v1783 = vpop.f32.mrf.mxu0
    %v1784 = vadd.f32 0.0, %v1783
    %1785 = vmatmul.f32.gmra.mxu0 %v1685
    %v1786 = vpop.f32.mrf.mxu0
    %v1787 = vadd.f32 0.0, %v1786
    %1788 = vdwg.mxu0
    %1789 = vmatpush.msra.mxu0 %v1678
    %1790 = vmatpush.msra.mxu0 %v1676
    %1791 = vmatpush.msra.mxu0 %v1674
    %1792 = vmatpush.msra.mxu0 %v1672
    %1793 = vmatpush.msra.mxu0 %v1670
    %1794 = vmatpush.msra.mxu0 %v1668
    %1795 = vmatpush.msra.mxu0 %v1666
    %1796 = vmatpush.msra.mxu0 %v1664
    %1797 = vmatpush.msra.mxu0 %v1662
    %1798 = vmatpush.msra.mxu0 %v1660
    %1799 = vmatpush.msra.mxu0 %v1658
    %1800 = vmatpush.msra.mxu0 %v1656
    %1801 = vmatpush.msra.mxu0 %v1654
    %1802 = vmatpush.msra.mxu0 %v1652
    %1803 = vmatpush.msra.mxu0 %v1650
    %1804 = vmatpush.msra.mxu0 %v1648
    %1805 = vmatmul.f32.gmra.mxu0 %v1641
    %v1806 = vpop.f32.mrf.mxu0
    %v1807 = vadd.f32 %v1737, %v1806
    %1808 = vmatmul.f32.gmra.mxu0 %v1642
    %v1809 = vpop.f32.mrf.mxu0
    %v1810 = vadd.f32 %v1740, %v1809
    %1811 = vmatmul.f32.gmra.mxu0 %v1643
    %v1812 = vpop.f32.mrf.mxu0
    %v1813 = vadd.f32 %v1743, %v1812
    %1814 = vmatmul.f32.gmra.mxu0 %v1644
    %v1815 = vpop.f32.mrf.mxu0
    %v1816 = vadd.f32 %v1746, %v1815
    %1817 = vmatmul.f32.gmra.mxu0 %v1645
    %v1818 = vpop.f32.mrf.mxu0
    %v1819 = vadd.f32 %v1749, %v1818
    %1820 = vmatmul.f32.gmra.mxu0 %v1646
    %v1821 = vpop.f32.mrf.mxu0
    %v1822 = vadd.f32 %v1752, %v1821
    %1823 = vdwg.mxu0
    %1824 = vmatpush.msra.mxu0 %v1679
    %1825 = vmatpush.msra.mxu0 %v1677
    %1826 = vmatpush.msra.mxu0 %v1675
    %1827 = vmatpush.msra.mxu0 %v1673
    %1828 = vmatpush.msra.mxu0 %v1671
    %1829 = vmatpush.msra.mxu0 %v1669
    %1830 = vmatpush.msra.mxu0 %v1667
    %1831 = vmatpush.msra.mxu0 %v1665
    %1832 = vmatpush.msra.mxu0 %v1663
    %1833 = vmatpush.msra.mxu0 %v1661
    %1834 = vmatpush.msra.mxu0 %v1659
    %1835 = vmatpush.msra.mxu0 %v1657
    %1836 = vmatpush.msra.mxu0 %v1655
    %1837 = vmatpush.msra.mxu0 %v1653
    %1838 = vmatpush.msra.mxu0 %v1651
    %1839 = vmatpush.msra.mxu0 %v1649
    %1840 = vmatmul.f32.gmra.mxu0 %v1641
    %v1841 = vpop.f32.mrf.mxu0
    %v1842 = vadd.f32 %v1772, %v1841
    %1843 = vmatmul.f32.gmra.mxu0 %v1642
    %v1844 = vpop.f32.mrf.mxu0
    %v1845 = vadd.f32 %v1775, %v1844
    %1846 = vmatmul.f32.gmra.mxu0 %v1643
    %v1847 = vpop.f32.mrf.mxu0
    %v1848 = vadd.f32 %v1778, %v1847
    %1849 = vmatmul.f32.gmra.mxu0 %v1644
    %v1850 = vpop.f32.mrf.mxu0
    %v1851 = vadd.f32 %v1781, %v1850
    %1852 = vmatmul.f32.gmra.mxu0 %v1645
    %v1853 = vpop.f32.mrf.mxu0
    %v1854 = vadd.f32 %v1784, %v1853
    %1855 = vmatmul.f32.gmra.mxu0 %v1646
    %v1856 = vpop.f32.mrf.mxu0
    %v1857 = vadd.f32 %v1787, %v1856
    %1858 = vdwg.mxu0
    %v1859 = vld [vmem:[#allocation2 + $0x8] sm:$0xff]
    %v1860 = vld [vmem:[#allocation2 + $0x10] sm:$0xff]
    %v1861 = vld [vmem:[#allocation2 + $0x18] sm:$0xff]
    %v1862 = vld [vmem:[#allocation2 + $0x20] sm:$0xff]
    %v1863 = vld [vmem:[#allocation2 + $0x28] sm:$0xff]
    %v1864 = vld [vmem:[#allocation2 + $0x30] sm:$0x3]
    %s1865 = scalar_lea.vmem %s2, 2048
    %v1866 = vld [vmem:[%s1865] sm:$0xff]
    %v1867 = vld [vmem:[%s1865 + $0x8] sm:$0xff]
    %v1868 = vld [vmem:[%s1865 + $0x10] sm:$0xff]
    %v1869 = vld [vmem:[%s1865 + $0x18] sm:$0xff]
    %v1870 = vld [vmem:[%s1865 + $0x20] sm:$0xff]
    %v1871 = vld [vmem:[%s1865 + $0x28] sm:$0xff]
    %v1872 = vld [vmem:[%s1865 + $0x30] sm:$0xff]
    %v1873 = vld [vmem:[%s1865 + $0x38] sm:$0xff]
    %v1874 = vld [vmem:[%s1865 + $0x40] sm:$0xff]
    %v1875 = vld [vmem:[%s1865 + $0x48] sm:$0xff]
    %v1876 = vld [vmem:[%s1865 + $0x50] sm:$0xff]
    %v1877 = vld [vmem:[%s1865 + $0x58] sm:$0xff]
    %v1878 = vld [vmem:[%s1865 + $0x60] sm:$0xff]
    %v1879 = vld [vmem:[%s1865 + $0x68] sm:$0xff]
    %v1880 = vld [vmem:[%s1865 + $0x70] sm:$0xff]
    %v1881 = vld [vmem:[%s1865 + $0x78] sm:$0xff]
    %v1882 = vld [vmem:[%s1865 + $0x80] sm:$0xff]
    %v1883 = vld [vmem:[%s1865 + $0x88] sm:$0xff]
    %v1884 = vld [vmem:[%s1865 + $0x90] sm:$0xff]
    %v1885 = vld [vmem:[%s1865 + $0x98] sm:$0xff]
    %v1886 = vld [vmem:[%s1865 + $0xa0] sm:$0xff]
    %v1887 = vld [vmem:[%s1865 + $0xa8] sm:$0xff]
    %v1888 = vld [vmem:[%s1865 + $0xb0] sm:$0xff]
    %v1889 = vld [vmem:[%s1865 + $0xb8] sm:$0xff]
    %v1890 = vld [vmem:[%s1865 + $0xc0] sm:$0xff]
    %v1891 = vld [vmem:[%s1865 + $0xc8] sm:$0xff]
    %v1892 = vld [vmem:[%s1865 + $0xd0] sm:$0xff]
    %v1893 = vld [vmem:[%s1865 + $0xd8] sm:$0xff]
    %v1894 = vld [vmem:[%s1865 + $0xe0] sm:$0xff]
    %v1895 = vld [vmem:[%s1865 + $0xe8] sm:$0xff]
    %v1896 = vld [vmem:[%s1865 + $0xf0] sm:$0xff]
    %v1897 = vld [vmem:[%s1865 + $0xf8] sm:$0xff]
    %1898 = vmatpush.msra.mxu0 %v1896
    %1899 = vmatpush.msra.mxu0 %v1894
    %1900 = vmatpush.msra.mxu0 %v1892
    %1901 = vmatpush.msra.mxu0 %v1890
    %1902 = vmatpush.msra.mxu0 %v1888
    %1903 = vmatpush.msra.mxu0 %v1886
    %1904 = vmatpush.msra.mxu0 %v1884
    %1905 = vmatpush.msra.mxu0 %v1882
    %1906 = vmatpush.msra.mxu0 %v1880
    %1907 = vmatpush.msra.mxu0 %v1878
    %1908 = vmatpush.msra.mxu0 %v1876
    %1909 = vmatpush.msra.mxu0 %v1874
    %1910 = vmatpush.msra.mxu0 %v1872
    %1911 = vmatpush.msra.mxu0 %v1870
    %1912 = vmatpush.msra.mxu0 %v1868
    %1913 = vmatpush.msra.mxu0 %v1866
    %1914 = vmatmul.f32.gmra.mxu0 %v1859
    %v1915 = vpop.f32.mrf.mxu0
    %v1916 = vadd.f32 0.0, %v1915
    %1917 = vmatmul.f32.gmra.mxu0 %v1860
    %v1918 = vpop.f32.mrf.mxu0
    %v1919 = vadd.f32 0.0, %v1918
    %1920 = vmatmul.f32.gmra.mxu0 %v1861
    %v1921 = vpop.f32.mrf.mxu0
    %v1922 = vadd.f32 0.0, %v1921
    %1923 = vmatmul.f32.gmra.mxu0 %v1862
    %v1924 = vpop.f32.mrf.mxu0
    %v1925 = vadd.f32 0.0, %v1924
    %1926 = vmatmul.f32.gmra.mxu0 %v1863
    %v1927 = vpop.f32.mrf.mxu0
    %v1928 = vadd.f32 0.0, %v1927
    %1929 = vmatmul.f32.gmra.mxu0 %v1864
    %v1930 = vpop.f32.mrf.mxu0
    %v1931 = vadd.f32 0.0, %v1930
    %1932 = vdwg.mxu0
    %1933 = vmatpush.msra.mxu0 %v1897
    %1934 = vmatpush.msra.mxu0 %v1895
    %1935 = vmatpush.msra.mxu0 %v1893
    %1936 = vmatpush.msra.mxu0 %v1891
    %1937 = vmatpush.msra.mxu0 %v1889
    %1938 = vmatpush.msra.mxu0 %v1887
    %1939 = vmatpush.msra.mxu0 %v1885
    %1940 = vmatpush.msra.mxu0 %v1883
    %1941 = vmatpush.msra.mxu0 %v1881
    %1942 = vmatpush.msra.mxu0 %v1879
    %1943 = vmatpush.msra.mxu0 %v1877
    %1944 = vmatpush.msra.mxu0 %v1875
    %1945 = vmatpush.msra.mxu0 %v1873
    %1946 = vmatpush.msra.mxu0 %v1871
    %1947 = vmatpush.msra.mxu0 %v1869
    %1948 = vmatpush.msra.mxu0 %v1867
    %1949 = vmatmul.f32.gmra.mxu0 %v1859
    %v1950 = vpop.f32.mrf.mxu0
    %v1951 = vadd.f32 0.0, %v1950
    %1952 = vmatmul.f32.gmra.mxu0 %v1860
    %v1953 = vpop.f32.mrf.mxu0
    %v1954 = vadd.f32 0.0, %v1953
    %1955 = vmatmul.f32.gmra.mxu0 %v1861
    %v1956 = vpop.f32.mrf.mxu0
    %v1957 = vadd.f32 0.0, %v1956
    %1958 = vmatmul.f32.gmra.mxu0 %v1862
    %v1959 = vpop.f32.mrf.mxu0
    %v1960 = vadd.f32 0.0, %v1959
    %1961 = vmatmul.f32.gmra.mxu0 %v1863
    %v1962 = vpop.f32.mrf.mxu0
    %v1963 = vadd.f32 0.0, %v1962
    %1964 = vmatmul.f32.gmra.mxu0 %v1864
    %v1965 = vpop.f32.mrf.mxu0
    %v1966 = vadd.f32 0.0, %v1965
    %1967 = vdwg.mxu0
    %v1968 = vadd.f32 %v1807, %v1916
    %v1969 = vadd.f32 %v1842, %v1951
    %v1970 = vadd.f32 %v1810, %v1919
    %v1971 = vadd.f32 %v1845, %v1954
    %v1972 = vadd.f32 %v1813, %v1922
    %v1973 = vadd.f32 %v1848, %v1957
    %v1974 = vadd.f32 %v1816, %v1925
    %v1975 = vadd.f32 %v1851, %v1960
    %v1976 = vadd.f32 %v1819, %v1928
    %v1977 = vadd.f32 %v1854, %v1963
    %v1978 = vadd.f32 %v1822, %v1931
    %v1979 = vadd.f32 %v1857, %v1966
    %s1980 = scalar_lea.vmem %s4, 8
    %v1981 = vld [vmem:[%s1980] ss:$2 sm:$0x3]
    %v1983 = vperm.slane %v1981, 0
    %v1984 = vperm.slane %v1981, 1
    %v1987 = vmul.f32 %v1968, %v1983
    %v1988 = vmul.f32 %v1969, %v1984
    %v1989 = vmul.f32 %v1970, %v1983
    %v1990 = vmul.f32 %v1971, %v1984
    %v1991 = vmul.f32 %v1972, %v1983
    %v1992 = vmul.f32 %v1973, %v1984
    %v1993 = vmul.f32 %v1974, %v1983
    %v1994 = vmul.f32 %v1975, %v1984
    %v1995 = vmul.f32 %v1976, %v1983
    %v1996 = vmul.f32 %v1977, %v1984
    %v1997 = vmul.f32 %v1978, %v1983
    %v1998 = vmul.f32 %v1979, %v1984
    %s1999 = scalar_lea.vmem %s1980, 1
    %v2000 = vld [vmem:[%s1999] ss:$2 sm:$0x3]
    %v2002 = vperm.slane %v2000, 0
    %v2003 = vperm.slane %v2000, 1
    %v2006 = vadd.f32 %v1987, %v2002
    %v2007 = vadd.f32 %v1988, %v2003
    %v2008 = vadd.f32 %v1989, %v2002
    %v2009 = vadd.f32 %v1990, %v2003
    %v2010 = vadd.f32 %v1991, %v2002
    %v2011 = vadd.f32 %v1992, %v2003
    %v2012 = vadd.f32 %v1993, %v2002
    %v2013 = vadd.f32 %v1994, %v2003
    %v2014 = vadd.f32 %v1995, %v2002
    %v2015 = vadd.f32 %v1996, %v2003
    %v2016 = vadd.f32 %v1997, %v2002
    %v2017 = vadd.f32 %v1998, %v2003
    %v2018 = vmax.f32 %v2006, 0.0
    %v2019 = vmax.f32 %v2007, 0.0
    %v2020 = vmax.f32 %v2008, 0.0
    %v2021 = vmax.f32 %v2009, 0.0
    %v2022 = vmax.f32 %v2010, 0.0
    %v2023 = vmax.f32 %v2011, 0.0
    %v2024 = vmax.f32 %v2012, 0.0
    %v2025 = vmax.f32 %v2013, 0.0
    %v2026 = vmax.f32 %v2014, 0.0
    %v2027 = vmax.f32 %v2015, 0.0
    %v2028 = vmax.f32 %v2016, 0.0
    %v2029 = vmax.f32 %v2017, 0.0
    %2030 = vst [vmem:[#allocation3] sm:$0xff] %v2018
    %2031 = vst.msk [vmem:[#allocation3 + $0x8] sm:$0xff] %vm428, %v2019
    %2032 = vst [vmem:[#allocation3 + $0x10] sm:$0xff] %v2020
    %2033 = vst.msk [vmem:[#allocation3 + $0x18] sm:$0xff] %vm428, %v2021
    %2034 = vst [vmem:[#allocation3 + $0x20] sm:$0xff] %v2022
    %2035 = vst.msk [vmem:[#allocation3 + $0x28] sm:$0xff] %vm428, %v2023
    %2036 = vst [vmem:[#allocation3 + $0x30] sm:$0xff] %v2024
    %2037 = vst.msk [vmem:[#allocation3 + $0x38] sm:$0xff] %vm428, %v2025
    %2038 = vst [vmem:[#allocation3 + $0x40] sm:$0xff] %v2026
    %2039 = vst.msk [vmem:[#allocation3 + $0x48] sm:$0xff] %vm428, %v2027
    %2040 = vst [vmem:[#allocation3 + $0x50] sm:$0x3] %v2028
    %2041 = vst.msk [vmem:[#allocation3 + $0x58] sm:$0x3] %vm439, %v2029
    %v2042 = vld [vmem:[#allocation3] sm:$0xff]
    %v2043 = vld [vmem:[#allocation3 + $0x8] sm:$0xff]
    %v2044 = vld [vmem:[#allocation3 + $0x10] sm:$0xff]
    %v2045 = vld [vmem:[#allocation3 + $0x18] sm:$0xff]
    %v2046 = vld [vmem:[#allocation3 + $0x20] sm:$0xff]
    %v2047 = vld [vmem:[#allocation3 + $0x28] sm:$0xff]
    %v2048 = vld [vmem:[#allocation3 + $0x30] sm:$0xff]
    %v2049 = vld [vmem:[#allocation3 + $0x38] sm:$0xff]
    %v2050 = vld [vmem:[#allocation3 + $0x40] sm:$0xff]
    %v2051 = vld [vmem:[#allocation3 + $0x48] sm:$0xff]
    %s2052 = scalar_lea.vmem %s3, 864
    %v2053 = vld [vmem:[%s2052] sm:$0xff]
    %v2054 = vld [vmem:[%s2052 + $0x8] sm:$0xff]
    %v2055 = vld [vmem:[%s2052 + $0x10] sm:$0xff]
    %v2056 = vld [vmem:[%s2052 + $0x18] sm:$0xff]
    %v2057 = vld [vmem:[%s2052 + $0x20] sm:$0xff]
    %v2058 = vld [vmem:[%s2052 + $0x28] sm:$0xff]
    %v2059 = vld [vmem:[%s2052 + $0x30] sm:$0xff]
    %v2060 = vld [vmem:[%s2052 + $0x38] sm:$0xff]
    %v2061 = vld [vmem:[%s2052 + $0x40] sm:$0xff]
    %v2062 = vld [vmem:[%s2052 + $0x48] sm:$0xff]
    %v2063 = vld [vmem:[%s2052 + $0x50] sm:$0xff]
    %v2064 = vld [vmem:[%s2052 + $0x58] sm:$0xff]
    %v2065 = vld [vmem:[%s2052 + $0x60] sm:$0xff]
    %v2066 = vld [vmem:[%s2052 + $0x68] sm:$0xff]
    %v2067 = vld [vmem:[%s2052 + $0x70] sm:$0xff]
    %v2068 = vld [vmem:[%s2052 + $0x78] sm:$0xff]
    %v2069 = vld [vmem:[%s2052 + $0x80] sm:$0xff]
    %v2070 = vld [vmem:[%s2052 + $0x88] sm:$0xff]
    %v2071 = vld [vmem:[#allocation3] sm:$0xfe]
    %v2072 = vld [vmem:[#allocation3 + $0x8] sm:$0xfe]
    %v2073 = vld [vmem:[#allocation3 + $0x50] sm:$0x1]
    %v2074 = vld [vmem:[#allocation3 + $0x58] sm:$0x1]
    %s2075 = scalar_lea.vmem %s3, 1008
    %v2076 = vld [vmem:[%s2075] sm:$0xff]
    %v2077 = vld [vmem:[%s2075 + $0x8] sm:$0xff]
    %v2078 = vld [vmem:[%s2075 + $0x10] sm:$0xff]
    %v2079 = vld [vmem:[%s2075 + $0x18] sm:$0xff]
    %v2080 = vld [vmem:[%s2075 + $0x20] sm:$0xff]
    %v2081 = vld [vmem:[%s2075 + $0x28] sm:$0xff]
    %v2082 = vld [vmem:[%s2075 + $0x30] sm:$0xff]
    %v2083 = vld [vmem:[%s2075 + $0x38] sm:$0xff]
    %v2084 = vld [vmem:[%s2075 + $0x40] sm:$0xff]
    %v2085 = vld [vmem:[%s2075 + $0x48] sm:$0xff]
    %v2086 = vld [vmem:[%s2075 + $0x50] sm:$0xff]
    %v2087 = vld [vmem:[%s2075 + $0x58] sm:$0xff]
    %v2088 = vld [vmem:[%s2075 + $0x60] sm:$0xff]
    %v2089 = vld [vmem:[%s2075 + $0x68] sm:$0xff]
    %v2090 = vld [vmem:[%s2075 + $0x70] sm:$0xff]
    %v2091 = vld [vmem:[%s2075 + $0x78] sm:$0xff]
    %v2092 = vld [vmem:[%s2075 + $0x80] sm:$0xff]
    %v2093 = vld [vmem:[%s2075 + $0x88] sm:$0xff]
    %v2106 = vrot.slane %v2071, 1
    %v2107 = vrot.slane %v2044, 1
    %v2108 = vsel %vm504, %v2106, %v2107
    %v2109 = vrot.slane %v2072, 1
    %v2110 = vrot.slane %v2045, 1
    %v2111 = vsel %vm504, %v2109, %v2110
    %v2112 = vrot.slane %v2046, 1
    %v2113 = vsel %vm504, %v2107, %v2112
    %v2114 = vrot.slane %v2047, 1
    %v2115 = vsel %vm504, %v2110, %v2114
    %v2116 = vrot.slane %v2048, 1
    %v2117 = vsel %vm504, %v2112, %v2116
    %v2118 = vrot.slane %v2049, 1
    %v2119 = vsel %vm504, %v2114, %v2118
    %v2120 = vrot.slane %v2050, 1
    %v2121 = vsel %vm504, %v2116, %v2120
    %v2122 = vrot.slane %v2051, 1
    %v2123 = vsel %vm504, %v2118, %v2122
    %v2124 = vrot.slane %v2073, 1
    %v2125 = vsel %vm504, %v2120, %v2124
    %v2126 = vrot.slane %v2074, 1
    %v2127 = vsel %vm504, %v2122, %v2126
    %v2133 = vsel %vm428, %v2111, 0
    %v2135 = vsel %vm428, %v2115, 0
    %v2137 = vsel %vm428, %v2119, 0
    %v2139 = vsel %vm428, %v2123, 0
    %v2141 = vsel %vm428, %v2127, 0
    %2143 = vmatpush.msra.mxu0 %v2091
    %2144 = vmatpush.msra.mxu0 %v2090
    %2145 = vmatpush.msra.mxu0 %v2089
    %2146 = vmatpush.msra.mxu0 %v2088
    %2147 = vmatpush.msra.mxu0 %v2087
    %2148 = vmatpush.msra.mxu0 %v2086
    %2149 = vmatpush.msra.mxu0 %v2085
    %2150 = vmatpush.msra.mxu0 %v2084
    %2151 = vmatpush.msra.mxu0 %v2083
    %2152 = vmatpush.msra.mxu0 %v2082
    %2153 = vmatpush.msra.mxu0 %v2081
    %2154 = vmatpush.msra.mxu0 %v2080
    %2155 = vmatpush.msra.mxu0 %v2079
    %2156 = vmatpush.msra.mxu0 %v2078
    %2157 = vmatpush.msra.mxu0 %v2077
    %2158 = vmatpush.msra.mxu0 %v2076
    %2159 = vmatmul.f32.gmra.mxu0 %v2108
    %v2160 = vpop.f32.mrf.mxu0
    %v2161 = vadd.f32 0.0, %v2160
    %2162 = vmatmul.f32.gmra.mxu0 %v2113
    %v2163 = vpop.f32.mrf.mxu0
    %v2164 = vadd.f32 0.0, %v2163
    %2165 = vmatmul.f32.gmra.mxu0 %v2117
    %v2166 = vpop.f32.mrf.mxu0
    %2167 = vmatmul.f32.gmra.mxu0 %v2121
    %v2168 = vpop.f32.mrf.mxu0
    %v2169 = vadd.f32 0.0, %v2168
    %2170 = vmatmul.f32.gmra.mxu0 %v2125
    %v2171 = vpop.f32.mrf.mxu0
    %v2172 = vadd.f32 0.0, %v2171
    %2173 = vdwg.mxu0
    %2174 = vmatpush.msra.mxu0 0.0
    %2175 = vmatpush.msra.mxu0 0.0
    %2176 = vmatpush.msra.mxu0 0.0
    %2177 = vmatpush.msra.mxu0 0.0
    %2178 = vmatpush.msra.mxu0 0.0
    %2179 = vmatpush.msra.mxu0 0.0
    %2180 = vmatpush.msra.mxu0 0.0
    %2181 = vmatpush.msra.mxu0 0.0
    %2182 = vmatpush.msra.mxu0 0.0
    %2183 = vmatpush.msra.mxu0 0.0
    %2184 = vmatpush.msra.mxu0 0.0
    %2185 = vmatpush.msra.mxu0 0.0
    %2186 = vmatpush.msra.mxu0 0.0
    %2187 = vmatpush.msra.mxu0 0.0
    %2188 = vmatpush.msra.mxu0 %v2093
    %2189 = vmatpush.msra.mxu0 %v2092
    %2190 = vmatmul.f32.gmra.mxu0 %v2133
    %v2191 = vpop.f32.mrf.mxu0
    %v2192 = vadd.f32 %v2161, %v2191
    %2193 = vmatmul.f32.gmra.mxu0 %v2135
    %v2194 = vpop.f32.mrf.mxu0
    %v2195 = vadd.f32 %v2164, %v2194
    %2196 = vmatmul.f32.gmra.mxu0 %v2137
    %v2197 = vpop.f32.mrf.mxu0
    %2198 = vmatmul.f32.gmra.mxu0 %v2139
    %v2199 = vpop.f32.mrf.mxu0
    %v2200 = vadd.f32 %v2169, %v2199
    %2201 = vmatmul.f32.gmra.mxu0 %v2141
    %v2202 = vpop.f32.mrf.mxu0
    %v2203 = vadd.f32 %v2172, %v2202
    %2204 = vdwg.mxu0
    %v2206 = vsel %vm428, %v2043, 0
    %v2208 = vsel %vm428, %v2045, 0
    %v2210 = vsel %vm428, %v2047, 0
    %v2212 = vsel %vm428, %v2049, 0
    %v2214 = vsel %vm428, %v2051, 0
    %2216 = vmatpush.msra.mxu0 %v2068
    %2217 = vmatpush.msra.mxu0 %v2067
    %2218 = vmatpush.msra.mxu0 %v2066
    %2219 = vmatpush.msra.mxu0 %v2065
    %2220 = vmatpush.msra.mxu0 %v2064
    %2221 = vmatpush.msra.mxu0 %v2063
    %2222 = vmatpush.msra.mxu0 %v2062
    %2223 = vmatpush.msra.mxu0 %v2061
    %2224 = vmatpush.msra.mxu0 %v2060
    %2225 = vmatpush.msra.mxu0 %v2059
    %2226 = vmatpush.msra.mxu0 %v2058
    %2227 = vmatpush.msra.mxu0 %v2057
    %2228 = vmatpush.msra.mxu0 %v2056
    %2229 = vmatpush.msra.mxu0 %v2055
    %2230 = vmatpush.msra.mxu0 %v2054
    %2231 = vmatpush.msra.mxu0 %v2053
    %2232 = vmatmul.f32.gmra.mxu0 %v2042
    %v2233 = vpop.f32.mrf.mxu0
    %v2234 = vadd.f32 %v2192, %v2233
    %2235 = vmatmul.f32.gmra.mxu0 %v2044
    %v2236 = vpop.f32.mrf.mxu0
    %v2237 = vadd.f32 %v2195, %v2236
    %2238 = vmatmul.f32.gmra.mxu0 %v2046
    %v2239 = vpop.f32.mrf.mxu0
    %2240 = vmatmul.f32.gmra.mxu0 %v2048
    %v2241 = vpop.f32.mrf.mxu0
    %v2242 = vadd.f32 %v2200, %v2241
    %2243 = vmatmul.f32.gmra.mxu0 %v2050
    %v2244 = vpop.f32.mrf.mxu0
    %v2245 = vadd.f32 %v2203, %v2244
    %2246 = vdwg.mxu0
    %2247 = vmatpush.msra.mxu0 0.0
    %2248 = vmatpush.msra.mxu0 0.0
    %2249 = vmatpush.msra.mxu0 0.0
    %2250 = vmatpush.msra.mxu0 0.0
    %2251 = vmatpush.msra.mxu0 0.0
    %2252 = vmatpush.msra.mxu0 0.0
    %2253 = vmatpush.msra.mxu0 0.0
    %2254 = vmatpush.msra.mxu0 0.0
    %2255 = vmatpush.msra.mxu0 0.0
    %2256 = vmatpush.msra.mxu0 0.0
    %2257 = vmatpush.msra.mxu0 0.0
    %2258 = vmatpush.msra.mxu0 0.0
    %2259 = vmatpush.msra.mxu0 0.0
    %2260 = vmatpush.msra.mxu0 0.0
    %2261 = vmatpush.msra.mxu0 %v2070
    %2262 = vmatpush.msra.mxu0 %v2069
    %2263 = vmatmul.f32.gmra.mxu0 %v2206
    %v2264 = vpop.f32.mrf.mxu0
    %v2265 = vadd.f32 %v2234, %v2264
    %2266 = vmatmul.f32.gmra.mxu0 %v2208
    %v2267 = vpop.f32.mrf.mxu0
    %v2268 = vadd.f32 %v2237, %v2267
    %2269 = vmatmul.f32.gmra.mxu0 %v2210
    %v2270 = vpop.f32.mrf.mxu0
    %2271 = vmatmul.f32.gmra.mxu0 %v2212
    %v2272 = vpop.f32.mrf.mxu0
    %v2273 = vadd.f32 %v2242, %v2272
    %2274 = vmatmul.f32.gmra.mxu0 %v2214
    %v2275 = vpop.f32.mrf.mxu0
    %v2276 = vadd.f32 %v2245, %v2275
    %2277 = vdwg.mxu0
    %v2278 = vld [vmem:[#allocation3] sm:$0xfc]
    %v2279 = vld [vmem:[#allocation3 + $0x8] sm:$0xfc]
    %v2280 = vld [vmem:[#allocation3 + $0x50] sm:$0x3]
    %v2281 = vld [vmem:[#allocation3 + $0x58] sm:$0x3]
    %s2282 = scalar_lea.vmem %s3, 1152
    %v2283 = vld [vmem:[%s2282] sm:$0xff]
    %v2284 = vld [vmem:[%s2282 + $0x8] sm:$0xff]
    %v2285 = vld [vmem:[%s2282 + $0x10] sm:$0xff]
    %v2286 = vld [vmem:[%s2282 + $0x18] sm:$0xff]
    %v2287 = vld [vmem:[%s2282 + $0x20] sm:$0xff]
    %v2288 = vld [vmem:[%s2282 + $0x28] sm:$0xff]
    %v2289 = vld [vmem:[%s2282 + $0x30] sm:$0xff]
    %v2290 = vld [vmem:[%s2282 + $0x38] sm:$0xff]
    %v2291 = vld [vmem:[%s2282 + $0x40] sm:$0xff]
    %v2292 = vld [vmem:[%s2282 + $0x48] sm:$0xff]
    %v2293 = vld [vmem:[%s2282 + $0x50] sm:$0xff]
    %v2294 = vld [vmem:[%s2282 + $0x58] sm:$0xff]
    %v2295 = vld [vmem:[%s2282 + $0x60] sm:$0xff]
    %v2296 = vld [vmem:[%s2282 + $0x68] sm:$0xff]
    %v2297 = vld [vmem:[%s2282 + $0x70] sm:$0xff]
    %v2298 = vld [vmem:[%s2282 + $0x78] sm:$0xff]
    %v2299 = vld [vmem:[%s2282 + $0x80] sm:$0xff]
    %v2300 = vld [vmem:[%s2282 + $0x88] sm:$0xff]
    %v2305 = vrot.slane %v2278, 2
    %v2306 = vrot.slane %v2044, 2
    %v2307 = vsel %vm704, %v2305, %v2306
    %v2308 = vrot.slane %v2279, 2
    %v2309 = vrot.slane %v2045, 2
    %v2310 = vsel %vm704, %v2308, %v2309
    %v2311 = vrot.slane %v2046, 2
    %v2312 = vsel %vm704, %v2306, %v2311
    %v2313 = vrot.slane %v2047, 2
    %v2314 = vsel %vm704, %v2309, %v2313
    %v2315 = vrot.slane %v2048, 2
    %v2316 = vsel %vm704, %v2311, %v2315
    %v2317 = vrot.slane %v2049, 2
    %v2318 = vsel %vm704, %v2313, %v2317
    %v2319 = vrot.slane %v2050, 2
    %v2320 = vsel %vm704, %v2315, %v2319
    %v2321 = vrot.slane %v2051, 2
    %v2322 = vsel %vm704, %v2317, %v2321
    %v2323 = vrot.slane %v2280, 2
    %v2324 = vsel %vm704, %v2319, %v2323
    %v2325 = vrot.slane %v2281, 2
    %v2326 = vsel %vm704, %v2321, %v2325
    %v2332 = vsel %vm428, %v2310, 0
    %v2334 = vsel %vm428, %v2314, 0
    %v2336 = vsel %vm428, %v2318, 0
    %v2338 = vsel %vm428, %v2322, 0
    %v2340 = vsel %vm428, %v2326, 0
    %2342 = vmatpush.msra.mxu0 %v2298
    %2343 = vmatpush.msra.mxu0 %v2297
    %2344 = vmatpush.msra.mxu0 %v2296
    %2345 = vmatpush.msra.mxu0 %v2295
    %2346 = vmatpush.msra.mxu0 %v2294
    %2347 = vmatpush.msra.mxu0 %v2293
    %2348 = vmatpush.msra.mxu0 %v2292
    %2349 = vmatpush.msra.mxu0 %v2291
    %2350 = vmatpush.msra.mxu0 %v2290
    %2351 = vmatpush.msra.mxu0 %v2289
    %2352 = vmatpush.msra.mxu0 %v2288
    %2353 = vmatpush.msra.mxu0 %v2287
    %2354 = vmatpush.msra.mxu0 %v2286
    %2355 = vmatpush.msra.mxu0 %v2285
    %2356 = vmatpush.msra.mxu0 %v2284
    %2357 = vmatpush.msra.mxu0 %v2283
    %2358 = vmatmul.f32.gmra.mxu0 %v2307
    %v2359 = vpop.f32.mrf.mxu0
    %v2360 = vadd.f32 0.0, %v2359
    %2361 = vmatmul.f32.gmra.mxu0 %v2312
    %v2362 = vpop.f32.mrf.mxu0
    %v2363 = vadd.f32 0.0, %v2362
    %2364 = vmatmul.f32.gmra.mxu0 %v2316
    %v2365 = vpop.f32.mrf.mxu0
    %2366 = vmatmul.f32.gmra.mxu0 %v2320
    %v2367 = vpop.f32.mrf.mxu0
    %v2368 = vadd.f32 0.0, %v2367
    %2369 = vmatmul.f32.gmra.mxu0 %v2324
    %v2370 = vpop.f32.mrf.mxu0
    %v2371 = vadd.f32 0.0, %v2370
    %2372 = vdwg.mxu0
    %2373 = vmatpush.msra.mxu0 0.0
    %2374 = vmatpush.msra.mxu0 0.0
    %2375 = vmatpush.msra.mxu0 0.0
    %2376 = vmatpush.msra.mxu0 0.0
    %2377 = vmatpush.msra.mxu0 0.0
    %2378 = vmatpush.msra.mxu0 0.0
    %2379 = vmatpush.msra.mxu0 0.0
    %2380 = vmatpush.msra.mxu0 0.0
    %2381 = vmatpush.msra.mxu0 0.0
    %2382 = vmatpush.msra.mxu0 0.0
    %2383 = vmatpush.msra.mxu0 0.0
    %2384 = vmatpush.msra.mxu0 0.0
    %2385 = vmatpush.msra.mxu0 0.0
    %2386 = vmatpush.msra.mxu0 0.0
    %2387 = vmatpush.msra.mxu0 %v2300
    %2388 = vmatpush.msra.mxu0 %v2299
    %2389 = vmatmul.f32.gmra.mxu0 %v2332
    %v2390 = vpop.f32.mrf.mxu0
    %v2391 = vadd.f32 %v2360, %v2390
    %2392 = vmatmul.f32.gmra.mxu0 %v2334
    %v2393 = vpop.f32.mrf.mxu0
    %v2394 = vadd.f32 %v2363, %v2393
    %2395 = vmatmul.f32.gmra.mxu0 %v2336
    %v2396 = vpop.f32.mrf.mxu0
    %2397 = vmatmul.f32.gmra.mxu0 %v2338
    %v2398 = vpop.f32.mrf.mxu0
    %v2399 = vadd.f32 %v2368, %v2398
    %2400 = vmatmul.f32.gmra.mxu0 %v2340
    %v2401 = vpop.f32.mrf.mxu0
    %v2402 = vadd.f32 %v2371, %v2401
    %2403 = vdwg.mxu0
    %v2404 = vadd.f32 %v2265, %v2391
    %v2405 = vadd.f32 %v2268, %v2394
    %v2406 = vadd.f32 %v2273, %v2399
    %v2407 = vadd.f32 %v2276, %v2402
    %s2408 = scalar_lea.vmem %s5, 4
    %v2409 = vld [vmem:[%s2408] sm:$0x1]
    %v2410 = vld [vmem:[%s2408 + $0x1] sm:$0x1]
    %v2411 = vperm.slane %v2409, 0
    %v2412 = vmul.f32 %v2404, %v2411
    %v2413 = vmul.f32 %v2405, %v2411
    %v2414 = vperm.slane %v2410, 0
    %v2415 = vadd.f32 %v2412, %v2414
    %v2416 = vadd.f32 %v2413, %v2414
    %v2417 = vld [vmem:[%s1] sm:$0xff]
    %v2418 = vld [vmem:[%s1 + $0x8] sm:$0xff]
    %v2419 = vadd.f32 %v2415, %v2417
    %v2420 = vadd.f32 %v2416, %v2418
    %v2421 = vmul.f32 %v2419, 0.5
    %v2422 = vmul.f32 %v2420, 0.5
    %2423 = vst [vmem:[#allocation4] sm:$0xff] %v2421
    %2424 = vst [vmem:[#allocation4 + $0x8] sm:$0xff] %v2422
    %v2425 = vmul.f32 %v2406, %v2411
    %v2426 = vmul.f32 %v2407, %v2411
    %v2427 = vadd.f32 %v2425, %v2414
    %v2428 = vadd.f32 %v2426, %v2414
    %v2429 = vld [vmem:[%s830] sm:$0xff]
    %v2430 = vld [vmem:[%s830 + $0x8] sm:$0xff]
    %v2431 = vadd.f32 %v2427, %v2429
    %v2432 = vadd.f32 %v2428, %v2430
    %v2433 = vmul.f32 %v2431, 0.5
    %v2434 = vmul.f32 %v2432, 0.5
    %s2435 = scalar_lea.vmem [#allocation4], 16
    %2436 = vst [vmem:[%s2435] sm:$0xff] %v2433
    %2437 = vst [vmem:[%s2435 + $0x8] sm:$0xff] %v2434
    // Predicated region
    $region26: #{tpu_custom_call.1} parent=1 // pred_check
      _
    $region27: #{tpu_custom_call.1} parent=1 // pred_check_branch
      %2439 = sbr.rel (0) target = $region29
    $region28: #{tpu_custom_call.1} parent=1 // pred_region
      %2441 = vsyncadd [#allocation5], 0
      %s2442 = sshll.u32 [#allocation4], 4
      %s2443 = int_to_ptr.vmem [resolvable:$true] %s2442
      %s2444 = sshll.u32 %s6, 4
      %s2445 = int_to_ptr.hbm [resolvable:$true] %s2444
      %2450 = dma.vmem_to_hbm [thread:$0]  %s2443, 512, %s2445, [#allocation5], 128, 128, 8
    $region29: #{tpu_custom_call.1} parent=1 // pred_fallthru
      _
    // Predicated region
    $region30: #{tpu_custom_call.1} parent=1 // pred_check
      _
    $region31: #{tpu_custom_call.1} parent=1 // pred_check_branch
      %2452 = sbr.rel (0) target = $region33
    $region32: #{tpu_custom_call.1} parent=1 // pred_region
      %2454 = dma.done [#allocation5], 512
    $region33: #{tpu_custom_call.1} parent=1 // pred_fallthru
      _
    %2455 = vsyncpa [#allocation5], 1

</llo_original>
